<compile_context>
chip_gen: v5e
topology: v5e:2x2
jax: 0.10.0
libtpu: 0.0.40
codegen_flags: <defaults>
</compile_context>

<pallas_src>
import jax
import jax.numpy as jnp
from jax.experimental import pallas as pl
from jax.experimental.pallas import tpu as pltpu

NUM_LAYERS = 2
HIDDEN = 32
BATCH = 8          # torch "batch_size": number of decode steps == attn logit width
LANES = 128
NEG_INF = -1e9     # bias padding for the final full-width softmax

OUT_ROWS = 16                       # packed output slab rows (>= BATCH + 2*L)
H_ROW = BATCH                       # h_out rows start here
C_ROW = BATCH + NUM_LAYERS          # c_out rows start here


def _weight_layout(H, L):
    """Row offsets of the packed bf16 weight slab (every block is 128 lanes wide)."""
    rows = {}
    r = 0

    def add(name, n):
        nonlocal r
        rows[name] = r
        r += n

    add("attn_x", H)                 # decoder_input -> attn logits
    add("attn_h", H)                 # hidden[0]     -> attn logits
    add("comb_x", H)                 # decoder_input -> combine
    add("comb_a", H)                 # attn_applied  -> combine
    for l in range(L):
        for g in range(4):           # per-gate input weights  (i, f, g, o)
            add(f"ih{l}{g}", H)
        for g in range(4):           # per-gate hidden weights (i, f, g, o)
            add(f"hh{l}{g}", H)
    add("w1", H)                     # Linear(H, 64)
    add("w2", 64)                    # Linear(64, 2)
    total = ((r + 15) // 16) * 16    # bf16 sublane tile = 16
    return rows, total


W_ROWS_MAP, W_TOTAL_ROWS = _weight_layout(HIDDEN, NUM_LAYERS)

# bias slab rows (f32)
B_ATTN_ROW = 0
B_COMB_ROW = 1


def _b_gate_row(l, g):
    return 2 + l * 4 + g


B1_ROW = 2 + 4 * NUM_LAYERS
B2_ROW = B1_ROW + 1
B_TOTAL_ROWS = ((B2_ROW + 1 + 7) // 8) * 8


def decoder_kernel(enc_ref, h0_ref, c0_ref, w_ref, b_ref, out_ref, out_buf):
    H, B, L = HIDDEN, BATCH, NUM_LAYERS

    def W(name, rows=H):
        r = W_ROWS_MAP[name]
        return w_ref[r:r + rows, :]          # full 128-lane RHS view (no col slicing)

    def dot(a_bf, w_blk):
        return jnp.dot(a_bf, w_blk, preferred_element_type=jnp.float32)

    enc_bf = enc_ref[...].astype(jnp.bfloat16)                  # (B, H), cast once

    w_attn_x, w_attn_h = W("attn_x"), W("attn_h")
    w_comb_x, w_comb_a = W("comb_x"), W("comb_a")
    w_ih = [[W(f"ih{l}{g}") for g in range(4)] for l in range(L)]
    w_hh = [[W(f"hh{l}{g}") for g in range(4)] for l in range(L)]
    w1 = W("w1")
    w2 = W("w2", 64)

    b_attn = b_ref[B_ATTN_ROW:B_ATTN_ROW + 1, 0:B]              # (1, B)
    b_comb = b_ref[B_COMB_ROW:B_COMB_ROW + 1, 0:H]              # (1, H)
    b_gate = [[b_ref[_b_gate_row(l, g):_b_gate_row(l, g) + 1, 0:H] for g in range(4)]
              for l in range(L)]
    b1 = b_ref[B1_ROW:B1_ROW + 1, :]                            # (1, 128), pads = 0
    b2 = b_ref[B2_ROW:B2_ROW + 1, :]                            # (1, 128), pads = -1e9

    # deterministic pad region of the packed output slab (cheap, off critical path)
    out_ref[B:OUT_ROWS, :] = jnp.zeros((OUT_ROWS - B, LANES), jnp.float32)

    # recurrent state lives in vregs at lane offset 0; bf16 copies cached for dots
    h = [h0_ref[l] for l in range(L)]                           # (1, H) f32
    c = [c0_ref[l] for l in range(L)]
    h_bf = [h[l].astype(jnp.bfloat16) for l in range(L)]
    x_bf = jnp.zeros((1, H), jnp.bfloat16)                      # decoder_input (t=0: zeros)

    # fully-unrolled decode loop (B is small and static)
    for step in range(B):
        # attention: softmax([x ; h0] @ Wa + b) -- two un-fused dots, no lane concat
        logits = (dot(x_bf, w_attn_x) + dot(h_bf[0], w_attn_h))[:, 0:B] + b_attn
        e = jnp.exp(logits - jnp.max(logits, axis=-1, keepdims=True))
        inv = pl.reciprocal(jnp.sum(e, axis=-1, keepdims=True), approx=True)
        applied = dot(e.astype(jnp.bfloat16), enc_bf) * inv                 # (1, H) f32
        applied_bf = applied.astype(jnp.bfloat16)

        # attn_combine([x ; attn_applied]) + ReLU -- two un-fused dots
        comb = (dot(x_bf, w_comb_x) + dot(applied_bf, w_comb_a))[:, 0:H] + b_comb
        inp = jnp.maximum(comb, 0.0)                                        # (1, H) f32
        inp_bf = inp.astype(jnp.bfloat16)

        # one time step of the L-layer LSTM (torch gate order i, f, g, o).
        # Per-gate 128-lane weight blocks keep every elementwise operand at
        # lane offset 0 -> no cross-lane rolls on the serial chain.
        for l in range(L):
            pre = [(dot(inp_bf, w_ih[l][g]) + dot(h_bf[l], w_hh[l][g]))[:, 0:H]
                   + b_gate[l][g] for g in range(4)]
            i_g = jax.nn.sigmoid(pre[0])
            f_g = jax.nn.sigmoid(pre[1])
            g_g = jnp.tanh(pre[2])
            o_g = jax.nn.sigmoid(pre[3])
            c[l] = f_g * c[l] + i_g * g_g                      # f32 state update
            h[l] = o_g * jnp.tanh(c[l])
            h_bf[l] = h[l].astype(jnp.bfloat16)                # cast once, reused
            inp_bf = h_bf[l]

        x_bf = h_bf[L - 1]                                     # next decoder_input
        out_buf[step:step + 1, 0:H] = h[L - 1]                 # per-step row store

    # final head: Linear(H,64) -> ReLU -> Linear(64,2) -> softmax(dim=1)
    out_bf = out_buf[:, 0:H].astype(jnp.bfloat16)              # (B, H)
    z1 = jnp.maximum(dot(out_bf, w1) + b1, 0.0)                # (B, 128), pads = 0
    z2 = dot(z1[:, 0:64].astype(jnp.bfloat16), w2) + b2        # (B, 128), pads = -1e9
    e2 = jnp.exp(z2 - jnp.max(z2, axis=-1, keepdims=True))     # pad lanes exp() to 0
    probs_full = e2 * pl.reciprocal(jnp.sum(e2, axis=-1, keepdims=True), approx=True)

    # single lane-dense output slab: rows 0:B probs (unmasked full-width store),
    # then h layers, then c layers.
    out_ref[0:B, :] = probs_full
    for l in range(L):
        out_ref[H_ROW + l:H_ROW + l + 1, 0:H] = h[l]
        out_ref[C_ROW + l:C_ROW + l + 1, 0:H] = c[l]


def pack_params(p):
    """Pack weights (bf16) / biases (f32) into lane-padded slabs. Call ONCE at init."""
    H, B, L = HIDDEN, BATCH, NUM_LAYERS
    w = jnp.zeros((W_TOTAL_ROWS, LANES), jnp.bfloat16)

    def put(slab, name, mat):
        r = W_ROWS_MAP[name]
        rows, cols = mat.shape
        return slab.at[r:r + rows, 0:cols].set(mat.astype(jnp.bfloat16))

    w = put(w, "attn_x", p["w_attn"][0:H])          # rows for decoder_input
    w = put(w, "attn_h", p["w_attn"][H:2 * H])      # rows for hidden[0]
    w = put(w, "comb_x", p["w_comb"][0:H])
    w = put(w, "comb_a", p["w_comb"][H:2 * H])
    for l in range(L):
        for g in range(4):
            w = put(w, f"ih{l}{g}", p["w_ih"][l][:, g * H:(g + 1) * H])
            w = put(w, f"hh{l}{g}", p["w_hh"][l][:, g * H:(g + 1) * H])
    w = put(w, "w1", p["w1"])
    w = put(w, "w2", p["w2"])

    b = jnp.zeros((B_TOTAL_ROWS, LANES), jnp.float32)
    b = b.at[B_ATTN_ROW, 0:B].set(p["b_attn"][0])
    b = b.at[B_COMB_ROW, 0:H].set(p["b_comb"][0])
    for l in range(L):
        for g in range(4):
            b = b.at[_b_gate_row(l, g), 0:H].set(p["b_lstm"][l, 0, g * H:(g + 1) * H])
    b = b.at[B1_ROW, 0:64].set(p["b1"][0])
    b = b.at[B2_ROW, :].set(jnp.full((LANES,), NEG_INF, jnp.float32))
    b = b.at[B2_ROW, 0:2].set(p["b2"][0])
    return w, b


def decoder_forward(enc, h0, c0, w_slab, b_slab):
    """Jitted forward: takes pre-packed weight/bias slabs (packed once at init)."""
    B, H = enc.shape
    L = h0.shape[0]
    vmem = lambda: pl.BlockSpec(memory_space=pltpu.MemorySpace.VMEM)
    out = pl.pallas_call(
        decoder_kernel,
        out_shape=jax.ShapeDtypeStruct((OUT_ROWS, LANES), jnp.float32),
        in_specs=[vmem() for _ in range(5)],
        out_specs=vmem(),
        scratch_shapes=[pltpu.VMEM((BATCH, LANES), jnp.float32)],
    )(enc, h0, c0, w_slab, b_slab)
    probs = out[0:B, 0:2]
    h_out = out[H_ROW:H_ROW + L, 0:H].reshape(L, 1, H)
    c_out = out[C_ROW:C_ROW + L, 0:H].reshape(L, 1, H)
    return probs, h_out, c_out


def init_params(key, H, B, L):
    ks = jax.random.split(key, 12)

    def u(k, shape, fan_in):
        bound = 1.0 / jnp.sqrt(jnp.float32(fan_in))
        return jax.random.uniform(k, shape, jnp.float32, -bound, bound)

    return dict(
        w_attn=u(ks[0], (2 * H, B), 2 * H),       # nn.Linear(2H, B).weight.T
        b_attn=u(ks[1], (1, B), 2 * H),
        w_comb=u(ks[2], (2 * H, H), 2 * H),       # nn.Linear(2H, H).weight.T
        b_comb=u(ks[3], (1, H), 2 * H),
        w_ih=u(ks[4], (L, H, 4 * H), H),          # LSTM W_ih (transposed, stacked)
        w_hh=u(ks[5], (L, H, 4 * H), H),          # LSTM W_hh (transposed, stacked)
        b_lstm=u(ks[6], (L, 1, 4 * H), H),        # b_ih + b_hh folded together
        w1=u(ks[7], (H, 64), H),                  # nn.Linear(H, 64).weight.T
        b1=u(ks[8], (1, 64), H),
        w2=u(ks[9], (64, 2), 64),                 # nn.Linear(64, 2).weight.T
        b2=u(ks[10], (1, 2), 64),
    )


def decoder_reference(enc, h0, c0, p):
    """Pure-JAX f32 reference mirroring the PyTorch forward exactly."""
    B, H = enc.shape
    L = h0.shape[0]
    dec = jnp.zeros((1, H), jnp.float32)
    h, c = h0, c0
    outs = []
    for _ in range(B):
        z = jnp.concatenate([dec, h[0]], axis=1)
        aw = jax.nn.softmax(z @ p["w_attn"] + p["b_attn"], axis=1)
        applied = aw @ enc
        comb = jnp.concatenate([dec, applied], axis=1) @ p["w_comb"] + p["b_comb"]
        xl = jnp.maximum(comb, 0.0)
        new_h, new_c = [], []
        for l in range(L):
            gates = xl @ p["w_ih"][l] + h[l] @ p["w_hh"][l] + p["b_lstm"][l]
            i_g = jax.nn.sigmoid(gates[:, :H])
            f_g = jax.nn.sigmoid(gates[:, H:2 * H])
            g_g = jnp.tanh(gates[:, 2 * H:3 * H])
            o_g = jax.nn.sigmoid(gates[:, 3 * H:])
            c_l = f_g * c[l] + i_g * g_g
            h_l = o_g * jnp.tanh(c_l)
            new_h.append(h_l)
            new_c.append(c_l)
            xl = h_l
        h = jnp.stack(new_h, 0)
        c = jnp.stack(new_c, 0)
        dec = xl
        outs.append(xl)
    out = jnp.concatenate(outs, 0)
    z1 = jnp.maximum(out @ p["w1"] + p["b1"], 0.0)
    z2 = z1 @ p["w2"] + p["b2"]
    return jax.nn.softmax(z2, axis=1), h, c


if __name__ == "__main__":
    key = jax.random.PRNGKey(0)
    k_enc, k_h, k_c, k_p = jax.random.split(key, 4)

    encoder_outputs = jax.random.normal(k_enc, (BATCH, HIDDEN), jnp.float32)
    hidden0 = 0.1 * jax.random.normal(k_h, (NUM_LAYERS, 1, HIDDEN), jnp.float32)
    cell0 = 0.1 * jax.random.normal(k_c, (NUM_LAYERS, 1, HIDDEN), jnp.float32)
    params = init_params(k_p, HIDDEN, BATCH, NUM_LAYERS)

    # Pack parameter slabs ONCE (outside the steady-state forward path).
    w_slab, b_slab = pack_params(params)

    fwd = jax.jit(decoder_forward)
    probs, h_out, c_out = jax.block_until_ready(
        fwd(encoder_outputs, hidden0, cell0, w_slab, b_slab))

    ref_probs, ref_h, ref_c = decoder_reference(encoder_outputs, hidden0, cell0, params)
    # bf16 MXU operands (f32 accumulation / f32 state) + approx reciprocals ->
    # slightly looser tolerance vs. the pure-f32 reference.
    assert jnp.allclose(probs, ref_probs, atol=2e-2, rtol=2e-2)
    assert jnp.allclose(h_out, ref_h, atol=2e-2, rtol=2e-2)
    assert jnp.allclose(c_out, ref_c, atol=2e-2, rtol=2e-2)
    # TODO(synk): the torch __init__ desc-file writing and save()/load() are host
    # I/O with no kernel equivalent; forward-pass math is fully implemented.
    print("KERNEL_OK")
</pallas_src>

<mosaic_0001>
module attributes {stable_mosaic.version = 11 : i64} {
  func.func @decoder_kernel(%arg0: memref<8x32xf32, #tpu.memory_space<vmem>>, %arg1: memref<2x1x32xf32, #tpu.memory_space<vmem>>, %arg2: memref<2x1x32xf32, #tpu.memory_space<vmem>>, %arg3: memref<736x128xbf16, #tpu.memory_space<vmem>>, %arg4: memref<16x128xf32, #tpu.memory_space<vmem>>, %arg5: memref<16x128xf32, #tpu.memory_space<vmem>>, %arg6: memref<8x128xf32, #tpu.memory_space<vmem>>) attributes {dimension_semantics = [], scalar_prefetch = 0 : i64, scratch_operands = 1 : i64, tpu.core_type = #tpu.core_type<tc>} {
    %c0 = arith.constant 0 : index
    %c0_0 = arith.constant 0 : index
    %0 = vector.load %arg0[%c0, %c0_0] : memref<8x32xf32, #tpu.memory_space<vmem>>, vector<8x32xf32>
    %1 = arith.truncf %0 : vector<8x32xf32> to vector<8x32xbf16>
    %c0_1 = arith.constant 0 : index
    %c0_2 = arith.constant 0 : index
    %2 = vector.load %arg3[%c0_1, %c0_2] : memref<736x128xbf16, #tpu.memory_space<vmem>>, vector<32x128xbf16>
    %c32 = arith.constant 32 : index
    %c0_3 = arith.constant 0 : index
    %3 = vector.load %arg3[%c32, %c0_3] : memref<736x128xbf16, #tpu.memory_space<vmem>>, vector<32x128xbf16>
    %c64 = arith.constant 64 : index
    %c0_4 = arith.constant 0 : index
    %4 = vector.load %arg3[%c64, %c0_4] : memref<736x128xbf16, #tpu.memory_space<vmem>>, vector<32x128xbf16>
    %c96 = arith.constant 96 : index
    %c0_5 = arith.constant 0 : index
    %5 = vector.load %arg3[%c96, %c0_5] : memref<736x128xbf16, #tpu.memory_space<vmem>>, vector<32x128xbf16>
    %c128 = arith.constant 128 : index
    %c0_6 = arith.constant 0 : index
    %6 = vector.load %arg3[%c128, %c0_6] : memref<736x128xbf16, #tpu.memory_space<vmem>>, vector<32x128xbf16>
    %c160 = arith.constant 160 : index
    %c0_7 = arith.constant 0 : index
    %7 = vector.load %arg3[%c160, %c0_7] : memref<736x128xbf16, #tpu.memory_space<vmem>>, vector<32x128xbf16>
    %c192 = arith.constant 192 : index
    %c0_8 = arith.constant 0 : index
    %8 = vector.load %arg3[%c192, %c0_8] : memref<736x128xbf16, #tpu.memory_space<vmem>>, vector<32x128xbf16>
    %c224 = arith.constant 224 : index
    %c0_9 = arith.constant 0 : index
    %9 = vector.load %arg3[%c224, %c0_9] : memref<736x128xbf16, #tpu.memory_space<vmem>>, vector<32x128xbf16>
    %c384 = arith.constant 384 : index
    %c0_10 = arith.constant 0 : index
    %10 = vector.load %arg3[%c384, %c0_10] : memref<736x128xbf16, #tpu.memory_space<vmem>>, vector<32x128xbf16>
    %c416 = arith.constant 416 : index
    %c0_11 = arith.constant 0 : index
    %11 = vector.load %arg3[%c416, %c0_11] : memref<736x128xbf16, #tpu.memory_space<vmem>>, vector<32x128xbf16>
    %c448 = arith.constant 448 : index
    %c0_12 = arith.constant 0 : index
    %12 = vector.load %arg3[%c448, %c0_12] : memref<736x128xbf16, #tpu.memory_space<vmem>>, vector<32x128xbf16>
    %c480 = arith.constant 480 : index
    %c0_13 = arith.constant 0 : index
    %13 = vector.load %arg3[%c480, %c0_13] : memref<736x128xbf16, #tpu.memory_space<vmem>>, vector<32x128xbf16>
    %c256 = arith.constant 256 : index
    %c0_14 = arith.constant 0 : index
    %14 = vector.load %arg3[%c256, %c0_14] : memref<736x128xbf16, #tpu.memory_space<vmem>>, vector<32x128xbf16>
    %c288 = arith.constant 288 : index
    %c0_15 = arith.constant 0 : index
    %15 = vector.load %arg3[%c288, %c0_15] : memref<736x128xbf16, #tpu.memory_space<vmem>>, vector<32x128xbf16>
    %c320 = arith.constant 320 : index
    %c0_16 = arith.constant 0 : index
    %16 = vector.load %arg3[%c320, %c0_16] : memref<736x128xbf16, #tpu.memory_space<vmem>>, vector<32x128xbf16>
    %c352 = arith.constant 352 : index
    %c0_17 = arith.constant 0 : index
    %17 = vector.load %arg3[%c352, %c0_17] : memref<736x128xbf16, #tpu.memory_space<vmem>>, vector<32x128xbf16>
    %c512 = arith.constant 512 : index
    %c0_18 = arith.constant 0 : index
    %18 = vector.load %arg3[%c512, %c0_18] : memref<736x128xbf16, #tpu.memory_space<vmem>>, vector<32x128xbf16>
    %c544 = arith.constant 544 : index
    %c0_19 = arith.constant 0 : index
    %19 = vector.load %arg3[%c544, %c0_19] : memref<736x128xbf16, #tpu.memory_space<vmem>>, vector<32x128xbf16>
    %c576 = arith.constant 576 : index
    %c0_20 = arith.constant 0 : index
    %20 = vector.load %arg3[%c576, %c0_20] : memref<736x128xbf16, #tpu.memory_space<vmem>>, vector<32x128xbf16>
    %c608 = arith.constant 608 : index
    %c0_21 = arith.constant 0 : index
    %21 = vector.load %arg3[%c608, %c0_21] : memref<736x128xbf16, #tpu.memory_space<vmem>>, vector<32x128xbf16>
    %c640 = arith.constant 640 : index
    %c0_22 = arith.constant 0 : index
    %22 = vector.load %arg3[%c640, %c0_22] : memref<736x128xbf16, #tpu.memory_space<vmem>>, vector<32x128xbf16>
    %c672 = arith.constant 672 : index
    %c0_23 = arith.constant 0 : index
    %23 = vector.load %arg3[%c672, %c0_23] : memref<736x128xbf16, #tpu.memory_space<vmem>>, vector<64x128xbf16>
    %c0_24 = arith.constant 0 : index
    %c0_25 = arith.constant 0 : index
    %24 = vector.load %arg4[%c0_24, %c0_25] : memref<16x128xf32, #tpu.memory_space<vmem>>, vector<1x8xf32>
    %c1 = arith.constant 1 : index
    %c0_26 = arith.constant 0 : index
    %25 = vector.load %arg4[%c1, %c0_26] : memref<16x128xf32, #tpu.memory_space<vmem>>, vector<1x32xf32>
    %c2 = arith.constant 2 : index
    %c0_27 = arith.constant 0 : index
    %26 = vector.load %arg4[%c2, %c0_27] : memref<16x128xf32, #tpu.memory_space<vmem>>, vector<1x32xf32>
    %c3 = arith.constant 3 : index
    %c0_28 = arith.constant 0 : index
    %27 = vector.load %arg4[%c3, %c0_28] : memref<16x128xf32, #tpu.memory_space<vmem>>, vector<1x32xf32>
    %c4 = arith.constant 4 : index
    %c0_29 = arith.constant 0 : index
    %28 = vector.load %arg4[%c4, %c0_29] : memref<16x128xf32, #tpu.memory_space<vmem>>, vector<1x32xf32>
    %c5 = arith.constant 5 : index
    %c0_30 = arith.constant 0 : index
    %29 = vector.load %arg4[%c5, %c0_30] : memref<16x128xf32, #tpu.memory_space<vmem>>, vector<1x32xf32>
    %c6 = arith.constant 6 : index
    %c0_31 = arith.constant 0 : index
    %30 = vector.load %arg4[%c6, %c0_31] : memref<16x128xf32, #tpu.memory_space<vmem>>, vector<1x32xf32>
    %c7 = arith.constant 7 : index
    %c0_32 = arith.constant 0 : index
    %31 = vector.load %arg4[%c7, %c0_32] : memref<16x128xf32, #tpu.memory_space<vmem>>, vector<1x32xf32>
    %c8 = arith.constant 8 : index
    %c0_33 = arith.constant 0 : index
    %32 = vector.load %arg4[%c8, %c0_33] : memref<16x128xf32, #tpu.memory_space<vmem>>, vector<1x32xf32>
    %c9 = arith.constant 9 : index
    %c0_34 = arith.constant 0 : index
    %33 = vector.load %arg4[%c9, %c0_34] : memref<16x128xf32, #tpu.memory_space<vmem>>, vector<1x32xf32>
    %c10 = arith.constant 10 : index
    %c0_35 = arith.constant 0 : index
    %34 = vector.load %arg4[%c10, %c0_35] : memref<16x128xf32, #tpu.memory_space<vmem>>, vector<1x128xf32>
    %c11 = arith.constant 11 : index
    %c0_36 = arith.constant 0 : index
    %35 = vector.load %arg4[%c11, %c0_36] : memref<16x128xf32, #tpu.memory_space<vmem>>, vector<1x128xf32>
    %cst = arith.constant 0.000000e+00 : f32
    %36 = vector.broadcast %cst : f32 to vector<8x128xf32>
    %c8_37 = arith.constant 8 : index
    %c0_38 = arith.constant 0 : index
    %37 = vector.load %arg5[%c8_37, %c0_38] : memref<16x128xf32, #tpu.memory_space<vmem>>, vector<8x128xf32>
    tpu.vector_store %arg5[%c8_37, %c0_38], %36 {strides = array<i32>} : memref<16x128xf32, #tpu.memory_space<vmem>>, vector<8x128xf32>,
    %c0_39 = arith.constant 0 : index
    %c0_40 = arith.constant 0 : index
    %c0_41 = arith.constant 0 : index
    %38 = vector.load %arg1[%c0_39, %c0_40, %c0_41] : memref<2x1x32xf32, #tpu.memory_space<vmem>>, vector<1x1x32xf32>
    %39 = vector.shape_cast %38 : vector<1x1x32xf32> to vector<1x32xf32>
    %c1_42 = arith.constant 1 : index
    %c0_43 = arith.constant 0 : index
    %c0_44 = arith.constant 0 : index
    %40 = vector.load %arg1[%c1_42, %c0_43, %c0_44] : memref<2x1x32xf32, #tpu.memory_space<vmem>>, vector<1x1x32xf32>
    %41 = vector.shape_cast %40 : vector<1x1x32xf32> to vector<1x32xf32>
    %c0_45 = arith.constant 0 : index
    %c0_46 = arith.constant 0 : index
    %c0_47 = arith.constant 0 : index
    %42 = vector.load %arg2[%c0_45, %c0_46, %c0_47] : memref<2x1x32xf32, #tpu.memory_space<vmem>>, vector<1x1x32xf32>
    %43 = vector.shape_cast %42 : vector<1x1x32xf32> to vector<1x32xf32>
    %c1_48 = arith.constant 1 : index
    %c0_49 = arith.constant 0 : index
    %c0_50 = arith.constant 0 : index
    %44 = vector.load %arg2[%c1_48, %c0_49, %c0_50] : memref<2x1x32xf32, #tpu.memory_space<vmem>>, vector<1x1x32xf32>
    %45 = vector.shape_cast %44 : vector<1x1x32xf32> to vector<1x32xf32>
    %46 = arith.truncf %39 : vector<1x32xf32> to vector<1x32xbf16>
    %47 = arith.truncf %41 : vector<1x32xf32> to vector<1x32xbf16>
    %cst_51 = arith.constant 0.000000e+00 : bf16
    %48 = vector.broadcast %cst_51 : bf16 to vector<1x32xbf16>
    %cst_52 = arith.constant dense<0.000000e+00> : vector<1x128xf32>
    %49 = tpu.matmul %48, %2, %cst_52 {dimension_numbers = #tpu.dot_dimension_numbers<[1], [0], [0], [1], [0, 0, 1, 1], [], []>} : vector<1x32xbf16>, vector<32x128xbf16>, vector<1x128xf32> -> vector<1x128xf32>
    %cst_53 = arith.constant dense<0.000000e+00> : vector<1x128xf32>
    %50 = tpu.matmul %46, %3, %cst_53 {dimension_numbers = #tpu.dot_dimension_numbers<[1], [0], [0], [1], [0, 0, 1, 1], [], []>} : vector<1x32xbf16>, vector<32x128xbf16>, vector<1x128xf32> -> vector<1x128xf32>
    %51 = arith.addf %49, %50 : vector<1x128xf32>
    %52 = vector.extract_strided_slice %51 {offsets = [0, 0], sizes = [1, 8], strides = [1, 1]} : vector<1x128xf32> to vector<1x8xf32>
    %53 = arith.addf %52, %24 : vector<1x8xf32>
    %cst_54 = arith.constant dense<0xFF800000> : vector<1xf32>
    %54 = vector.multi_reduction <maximumf>, %53, %cst_54 [1] : vector<1x8xf32> to vector<1xf32>
    %55 = vector.shape_cast %54 : vector<1xf32> to vector<1x1xf32>
    %56 = vector.broadcast %55 : vector<1x1xf32> to vector<1x8xf32>
    %57 = arith.subf %53, %56 : vector<1x8xf32>
    %58 = math.exp %57 : vector<1x8xf32>
    %cst_55 = arith.constant dense<0.000000e+00> : vector<1xf32>
    %59 = vector.multi_reduction <add>, %58, %cst_55 [1] : vector<1x8xf32> to vector<1xf32>
    %60 = vector.shape_cast %59 : vector<1xf32> to vector<1x1xf32>
    %61 = tpu.reciprocal %60 {approx = true} : vector<1x1xf32> -> vector<1x1xf32>
    %62 = arith.truncf %58 : vector<1x8xf32> to vector<1x8xbf16>
    %cst_56 = arith.constant dense<0.000000e+00> : vector<1x32xf32>
    %63 = tpu.matmul %62, %1, %cst_56 {dimension_numbers = #tpu.dot_dimension_numbers<[1], [0], [0], [1], [0, 0, 1, 1], [], []>} : vector<1x8xbf16>, vector<8x32xbf16>, vector<1x32xf32> -> vector<1x32xf32>
    %64 = vector.broadcast %61 : vector<1x1xf32> to vector<1x32xf32>
    %65 = arith.mulf %63, %64 : vector<1x32xf32>
    %66 = arith.truncf %65 : vector<1x32xf32> to vector<1x32xbf16>
    %cst_57 = arith.constant dense<0.000000e+00> : vector<1x128xf32>
    %67 = tpu.matmul %48, %4, %cst_57 {dimension_numbers = #tpu.dot_dimension_numbers<[1], [0], [0], [1], [0, 0, 1, 1], [], []>} : vector<1x32xbf16>, vector<32x128xbf16>, vector<1x128xf32> -> vector<1x128xf32>
    %cst_58 = arith.constant dense<0.000000e+00> : vector<1x128xf32>
    %68 = tpu.matmul %66, %5, %cst_58 {dimension_numbers = #tpu.dot_dimension_numbers<[1], [0], [0], [1], [0, 0, 1, 1], [], []>} : vector<1x32xbf16>, vector<32x128xbf16>, vector<1x128xf32> -> vector<1x128xf32>
    %69 = arith.addf %67, %68 : vector<1x128xf32>
    %70 = vector.extract_strided_slice %69 {offsets = [0, 0], sizes = [1, 32], strides = [1, 1]} : vector<1x128xf32> to vector<1x32xf32>
    %71 = arith.addf %70, %25 : vector<1x32xf32>
    %cst_59 = arith.constant 0.000000e+00 : f32
    %72 = vector.broadcast %cst_59 : f32 to vector<1x32xf32>
    %73 = arith.maximumf %71, %72 : vector<1x32xf32>
    %74 = arith.truncf %73 : vector<1x32xf32> to vector<1x32xbf16>
    %cst_60 = arith.constant dense<0.000000e+00> : vector<1x128xf32>
    %75 = tpu.matmul %74, %6, %cst_60 {dimension_numbers = #tpu.dot_dimension_numbers<[1], [0], [0], [1], [0, 0, 1, 1], [], []>} : vector<1x32xbf16>, vector<32x128xbf16>, vector<1x128xf32> -> vector<1x128xf32>
    %cst_61 = arith.constant dense<0.000000e+00> : vector<1x128xf32>
    %76 = tpu.matmul %46, %14, %cst_61 {dimension_numbers = #tpu.dot_dimension_numbers<[1], [0], [0], [1], [0, 0, 1, 1], [], []>} : vector<1x32xbf16>, vector<32x128xbf16>, vector<1x128xf32> -> vector<1x128xf32>
    %77 = arith.addf %75, %76 : vector<1x128xf32>
    %78 = vector.extract_strided_slice %77 {offsets = [0, 0], sizes = [1, 32], strides = [1, 1]} : vector<1x128xf32> to vector<1x32xf32>
    %79 = arith.addf %78, %26 : vector<1x32xf32>
    %cst_62 = arith.constant dense<0.000000e+00> : vector<1x128xf32>
    %80 = tpu.matmul %74, %7, %cst_62 {dimension_numbers = #tpu.dot_dimension_numbers<[1], [0], [0], [1], [0, 0, 1, 1], [], []>} : vector<1x32xbf16>, vector<32x128xbf16>, vector<1x128xf32> -> vector<1x128xf32>
    %cst_63 = arith.constant dense<0.000000e+00> : vector<1x128xf32>
    %81 = tpu.matmul %46, %15, %cst_63 {dimension_numbers = #tpu.dot_dimension_numbers<[1], [0], [0], [1], [0, 0, 1, 1], [], []>} : vector<1x32xbf16>, vector<32x128xbf16>, vector<1x128xf32> -> vector<1x128xf32>
    %82 = arith.addf %80, %81 : vector<1x128xf32>
    %83 = vector.extract_strided_slice %82 {offsets = [0, 0], sizes = [1, 32], strides = [1, 1]} : vector<1x128xf32> to vector<1x32xf32>
    %84 = arith.addf %83, %27 : vector<1x32xf32>
    %cst_64 = arith.constant dense<0.000000e+00> : vector<1x128xf32>
    %85 = tpu.matmul %74, %8, %cst_64 {dimension_numbers = #tpu.dot_dimension_numbers<[1], [0], [0], [1], [0, 0, 1, 1], [], []>} : vector<1x32xbf16>, vector<32x128xbf16>, vector<1x128xf32> -> vector<1x128xf32>
    %cst_65 = arith.constant dense<0.000000e+00> : vector<1x128xf32>
    %86 = tpu.matmul %46, %16, %cst_65 {dimension_numbers = #tpu.dot_dimension_numbers<[1], [0], [0], [1], [0, 0, 1, 1], [], []>} : vector<1x32xbf16>, vector<32x128xbf16>, vector<1x128xf32> -> vector<1x128xf32>
    %87 = arith.addf %85, %86 : vector<1x128xf32>
    %88 = vector.extract_strided_slice %87 {offsets = [0, 0], sizes = [1, 32], strides = [1, 1]} : vector<1x128xf32> to vector<1x32xf32>
    %89 = arith.addf %88, %28 : vector<1x32xf32>
    %cst_66 = arith.constant dense<0.000000e+00> : vector<1x128xf32>
    %90 = tpu.matmul %74, %9, %cst_66 {dimension_numbers = #tpu.dot_dimension_numbers<[1], [0], [0], [1], [0, 0, 1, 1], [], []>} : vector<1x32xbf16>, vector<32x128xbf16>, vector<1x128xf32> -> vector<1x128xf32>
    %cst_67 = arith.constant dense<0.000000e+00> : vector<1x128xf32>
    %91 = tpu.matmul %46, %17, %cst_67 {dimension_numbers = #tpu.dot_dimension_numbers<[1], [0], [0], [1], [0, 0, 1, 1], [], []>} : vector<1x32xbf16>, vector<32x128xbf16>, vector<1x128xf32> -> vector<1x128xf32>
    %92 = arith.addf %90, %91 : vector<1x128xf32>
    %93 = vector.extract_strided_slice %92 {offsets = [0, 0], sizes = [1, 32], strides = [1, 1]} : vector<1x128xf32> to vector<1x32xf32>
    %94 = arith.addf %93, %29 : vector<1x32xf32>
    %95 = arith.negf %79 : vector<1x32xf32>
    %96 = math.exp %95 : vector<1x32xf32>
    %cst_68 = arith.constant 1.000000e+00 : f32
    %97 = vector.broadcast %cst_68 : f32 to vector<1x32xf32>
    %98 = arith.addf %97, %96 : vector<1x32xf32>
    %99 = arith.divf %97, %98 : vector<1x32xf32>
    %100 = arith.negf %84 : vector<1x32xf32>
    %101 = math.exp %100 : vector<1x32xf32>
    %cst_69 = arith.constant 1.000000e+00 : f32
    %102 = vector.broadcast %cst_69 : f32 to vector<1x32xf32>
    %103 = arith.addf %102, %101 : vector<1x32xf32>
    %104 = arith.divf %102, %103 : vector<1x32xf32>
    %105 = math.tanh %89 : vector<1x32xf32>
    %106 = arith.negf %94 : vector<1x32xf32>
    %107 = math.exp %106 : vector<1x32xf32>
    %cst_70 = arith.constant 1.000000e+00 : f32
    %108 = vector.broadcast %cst_70 : f32 to vector<1x32xf32>
    %109 = arith.addf %108, %107 : vector<1x32xf32>
    %110 = arith.divf %108, %109 : vector<1x32xf32>
    %111 = arith.mulf %104, %43 : vector<1x32xf32>
    %112 = arith.mulf %99, %105 : vector<1x32xf32>
    %113 = arith.addf %111, %112 : vector<1x32xf32>
    %114 = math.tanh %113 : vector<1x32xf32>
    %115 = arith.mulf %110, %114 : vector<1x32xf32>
    %116 = arith.truncf %115 : vector<1x32xf32> to vector<1x32xbf16>
    %cst_71 = arith.constant dense<0.000000e+00> : vector<1x128xf32>
    %117 = tpu.matmul %116, %10, %cst_71 {dimension_numbers = #tpu.dot_dimension_numbers<[1], [0], [0], [1], [0, 0, 1, 1], [], []>} : vector<1x32xbf16>, vector<32x128xbf16>, vector<1x128xf32> -> vector<1x128xf32>
    %cst_72 = arith.constant dense<0.000000e+00> : vector<1x128xf32>
    %118 = tpu.matmul %47, %18, %cst_72 {dimension_numbers = #tpu.dot_dimension_numbers<[1], [0], [0], [1], [0, 0, 1, 1], [], []>} : vector<1x32xbf16>, vector<32x128xbf16>, vector<1x128xf32> -> vector<1x128xf32>
    %119 = arith.addf %117, %118 : vector<1x128xf32>
    %120 = vector.extract_strided_slice %119 {offsets = [0, 0], sizes = [1, 32], strides = [1, 1]} : vector<1x128xf32> to vector<1x32xf32>
    %121 = arith.addf %120, %30 : vector<1x32xf32>
    %cst_73 = arith.constant dense<0.000000e+00> : vector<1x128xf32>
    %122 = tpu.matmul %116, %11, %cst_73 {dimension_numbers = #tpu.dot_dimension_numbers<[1], [0], [0], [1], [0, 0, 1, 1], [], []>} : vector<1x32xbf16>, vector<32x128xbf16>, vector<1x128xf32> -> vector<1x128xf32>
    %cst_74 = arith.constant dense<0.000000e+00> : vector<1x128xf32>
    %123 = tpu.matmul %47, %19, %cst_74 {dimension_numbers = #tpu.dot_dimension_numbers<[1], [0], [0], [1], [0, 0, 1, 1], [], []>} : vector<1x32xbf16>, vector<32x128xbf16>, vector<1x128xf32> -> vector<1x128xf32>
    %124 = arith.addf %122, %123 : vector<1x128xf32>
    %125 = vector.extract_strided_slice %124 {offsets = [0, 0], sizes = [1, 32], strides = [1, 1]} : vector<1x128xf32> to vector<1x32xf32>
    %126 = arith.addf %125, %31 : vector<1x32xf32>
    %cst_75 = arith.constant dense<0.000000e+00> : vector<1x128xf32>
    %127 = tpu.matmul %116, %12, %cst_75 {dimension_numbers = #tpu.dot_dimension_numbers<[1], [0], [0], [1], [0, 0, 1, 1], [], []>} : vector<1x32xbf16>, vector<32x128xbf16>, vector<1x128xf32> -> vector<1x128xf32>
    %cst_76 = arith.constant dense<0.000000e+00> : vector<1x128xf32>
    %128 = tpu.matmul %47, %20, %cst_76 {dimension_numbers = #tpu.dot_dimension_numbers<[1], [0], [0], [1], [0, 0, 1, 1], [], []>} : vector<1x32xbf16>, vector<32x128xbf16>, vector<1x128xf32> -> vector<1x128xf32>
    %129 = arith.addf %127, %128 : vector<1x128xf32>
    %130 = vector.extract_strided_slice %129 {offsets = [0, 0], sizes = [1, 32], strides = [1, 1]} : vector<1x128xf32> to vector<1x32xf32>
    %131 = arith.addf %130, %32 : vector<1x32xf32>
    %cst_77 = arith.constant dense<0.000000e+00> : vector<1x128xf32>
    %132 = tpu.matmul %116, %13, %cst_77 {dimension_numbers = #tpu.dot_dimension_numbers<[1], [0], [0], [1], [0, 0, 1, 1], [], []>} : vector<1x32xbf16>, vector<32x128xbf16>, vector<1x128xf32> -> vector<1x128xf32>
    %cst_78 = arith.constant dense<0.000000e+00> : vector<1x128xf32>
    %133 = tpu.matmul %47, %21, %cst_78 {dimension_numbers = #tpu.dot_dimension_numbers<[1], [0], [0], [1], [0, 0, 1, 1], [], []>} : vector<1x32xbf16>, vector<32x128xbf16>, vector<1x128xf32> -> vector<1x128xf32>
    %134 = arith.addf %132, %133 : vector<1x128xf32>
    %135 = vector.extract_strided_slice %134 {offsets = [0, 0], sizes = [1, 32], strides = [1, 1]} : vector<1x128xf32> to vector<1x32xf32>
    %136 = arith.addf %135, %33 : vector<1x32xf32>
    %137 = arith.negf %121 : vector<1x32xf32>
    %138 = math.exp %137 : vector<1x32xf32>
    %cst_79 = arith.constant 1.000000e+00 : f32
    %139 = vector.broadcast %cst_79 : f32 to vector<1x32xf32>
    %140 = arith.addf %139, %138 : vector<1x32xf32>
    %141 = arith.divf %139, %140 : vector<1x32xf32>
    %142 = arith.negf %126 : vector<1x32xf32>
    %143 = math.exp %142 : vector<1x32xf32>
    %cst_80 = arith.constant 1.000000e+00 : f32
    %144 = vector.broadcast %cst_80 : f32 to vector<1x32xf32>
    %145 = arith.addf %144, %143 : vector<1x32xf32>
    %146 = arith.divf %144, %145 : vector<1x32xf32>
    %147 = math.tanh %131 : vector<1x32xf32>
    %148 = arith.negf %136 : vector<1x32xf32>
    %149 = math.exp %148 : vector<1x32xf32>
    %cst_81 = arith.constant 1.000000e+00 : f32
    %150 = vector.broadcast %cst_81 : f32 to vector<1x32xf32>
    %151 = arith.addf %150, %149 : vector<1x32xf32>
    %152 = arith.divf %150, %151 : vector<1x32xf32>
    %153 = arith.mulf %146, %45 : vector<1x32xf32>
    %154 = arith.mulf %141, %147 : vector<1x32xf32>
    %155 = arith.addf %153, %154 : vector<1x32xf32>
    %156 = math.tanh %155 : vector<1x32xf32>
    %157 = arith.mulf %152, %156 : vector<1x32xf32>
    %158 = arith.truncf %157 : vector<1x32xf32> to vector<1x32xbf16>
    %c0_82 = arith.constant 0 : index
    %c0_83 = arith.constant 0 : index
    %159 = vector.load %arg6[%c0_82, %c0_83] : memref<8x128xf32, #tpu.memory_space<vmem>>, vector<1x32xf32>
    tpu.vector_store %arg6[%c0_82, %c0_83], %157 {strides = array<i32>} : memref<8x128xf32, #tpu.memory_space<vmem>>, vector<1x32xf32>,
    %cst_84 = arith.constant dense<0.000000e+00> : vector<1x128xf32>
    %160 = tpu.matmul %158, %2, %cst_84 {dimension_numbers = #tpu.dot_dimension_numbers<[1], [0], [0], [1], [0, 0, 1, 1], [], []>} : vector<1x32xbf16>, vector<32x128xbf16>, vector<1x128xf32> -> vector<1x128xf32>
    %cst_85 = arith.constant dense<0.000000e+00> : vector<1x128xf32>
    %161 = tpu.matmul %116, %3, %cst_85 {dimension_numbers = #tpu.dot_dimension_numbers<[1], [0], [0], [1], [0, 0, 1, 1], [], []>} : vector<1x32xbf16>, vector<32x128xbf16>, vector<1x128xf32> -> vector<1x128xf32>
    %162 = arith.addf %160, %161 : vector<1x128xf32>
    %163 = vector.extract_strided_slice %162 {offsets = [0, 0], sizes = [1, 8], strides = [1, 1]} : vector<1x128xf32> to vector<1x8xf32>
    %164 = arith.addf %163, %24 : vector<1x8xf32>
    %cst_86 = arith.constant dense<0xFF800000> : vector<1xf32>
    %165 = vector.multi_reduction <maximumf>, %164, %cst_86 [1] : vector<1x8xf32> to vector<1xf32>
    %166 = vector.shape_cast %165 : vector<1xf32> to vector<1x1xf32>
    %167 = vector.broadcast %166 : vector<1x1xf32> to vector<1x8xf32>
    %168 = arith.subf %164, %167 : vector<1x8xf32>
    %169 = math.exp %168 : vector<1x8xf32>
    %cst_87 = arith.constant dense<0.000000e+00> : vector<1xf32>
    %170 = vector.multi_reduction <add>, %169, %cst_87 [1] : vector<1x8xf32> to vector<1xf32>
    %171 = vector.shape_cast %170 : vector<1xf32> to vector<1x1xf32>
    %172 = tpu.reciprocal %171 {approx = true} : vector<1x1xf32> -> vector<1x1xf32>
    %173 = arith.truncf %169 : vector<1x8xf32> to vector<1x8xbf16>
    %cst_88 = arith.constant dense<0.000000e+00> : vector<1x32xf32>
    %174 = tpu.matmul %173, %1, %cst_88 {dimension_numbers = #tpu.dot_dimension_numbers<[1], [0], [0], [1], [0, 0, 1, 1], [], []>} : vector<1x8xbf16>, vector<8x32xbf16>, vector<1x32xf32> -> vector<1x32xf32>
    %175 = vector.broadcast %172 : vector<1x1xf32> to vector<1x32xf32>
    %176 = arith.mulf %174, %175 : vector<1x32xf32>
    %177 = arith.truncf %176 : vector<1x32xf32> to vector<1x32xbf16>
    %cst_89 = arith.constant dense<0.000000e+00> : vector<1x128xf32>
    %178 = tpu.matmul %158, %4, %cst_89 {dimension_numbers = #tpu.dot_dimension_numbers<[1], [0], [0], [1], [0, 0, 1, 1], [], []>} : vector<1x32xbf16>, vector<32x128xbf16>, vector<1x128xf32> -> vector<1x128xf32>
    %cst_90 = arith.constant dense<0.000000e+00> : vector<1x128xf32>
    %179 = tpu.matmul %177, %5, %cst_90 {dimension_numbers = #tpu.dot_dimension_numbers<[1], [0], [0], [1], [0, 0, 1, 1], [], []>} : vector<1x32xbf16>, vector<32x128xbf16>, vector<1x128xf32> -> vector<1x128xf32>
    %180 = arith.addf %178, %179 : vector<1x128xf32>
    %181 = vector.extract_strided_slice %180 {offsets = [0, 0], sizes = [1, 32], strides = [1, 1]} : vector<1x128xf32> to vector<1x32xf32>
    %182 = arith.addf %181, %25 : vector<1x32xf32>
    %cst_91 = arith.constant 0.000000e+00 : f32
    %183 = vector.broadcast %cst_91 : f32 to vector<1x32xf32>
    %184 = arith.maximumf %182, %183 : vector<1x32xf32>
    %185 = arith.truncf %184 : vector<1x32xf32> to vector<1x32xbf16>
    %cst_92 = arith.constant dense<0.000000e+00> : vector<1x128xf32>
    %186 = tpu.matmul %185, %6, %cst_92 {dimension_numbers = #tpu.dot_dimension_numbers<[1], [0], [0], [1], [0, 0, 1, 1], [], []>} : vector<1x32xbf16>, vector<32x128xbf16>, vector<1x128xf32> -> vector<1x128xf32>
    %cst_93 = arith.constant dense<0.000000e+00> : vector<1x128xf32>
    %187 = tpu.matmul %116, %14, %cst_93 {dimension_numbers = #tpu.dot_dimension_numbers<[1], [0], [0], [1], [0, 0, 1, 1], [], []>} : vector<1x32xbf16>, vector<32x128xbf16>, vector<1x128xf32> -> vector<1x128xf32>
    %188 = arith.addf %186, %187 : vector<1x128xf32>
    %189 = vector.extract_strided_slice %188 {offsets = [0, 0], sizes = [1, 32], strides = [1, 1]} : vector<1x128xf32> to vector<1x32xf32>
    %190 = arith.addf %189, %26 : vector<1x32xf32>
    %cst_94 = arith.constant dense<0.000000e+00> : vector<1x128xf32>
    %191 = tpu.matmul %185, %7, %cst_94 {dimension_numbers = #tpu.dot_dimension_numbers<[1], [0], [0], [1], [0, 0, 1, 1], [], []>} : vector<1x32xbf16>, vector<32x128xbf16>, vector<1x128xf32> -> vector<1x128xf32>
    %cst_95 = arith.constant dense<0.000000e+00> : vector<1x128xf32>
    %192 = tpu.matmul %116, %15, %cst_95 {dimension_numbers = #tpu.dot_dimension_numbers<[1], [0], [0], [1], [0, 0, 1, 1], [], []>} : vector<1x32xbf16>, vector<32x128xbf16>, vector<1x128xf32> -> vector<1x128xf32>
    %193 = arith.addf %191, %192 : vector<1x128xf32>
    %194 = vector.extract_strided_slice %193 {offsets = [0, 0], sizes = [1, 32], strides = [1, 1]} : vector<1x128xf32> to vector<1x32xf32>
    %195 = arith.addf %194, %27 : vector<1x32xf32>
    %cst_96 = arith.constant dense<0.000000e+00> : vector<1x128xf32>
    %196 = tpu.matmul %185, %8, %cst_96 {dimension_numbers = #tpu.dot_dimension_numbers<[1], [0], [0], [1], [0, 0, 1, 1], [], []>} : vector<1x32xbf16>, vector<32x128xbf16>, vector<1x128xf32> -> vector<1x128xf32>
    %cst_97 = arith.constant dense<0.000000e+00> : vector<1x128xf32>
    %197 = tpu.matmul %116, %16, %cst_97 {dimension_numbers = #tpu.dot_dimension_numbers<[1], [0], [0], [1], [0, 0, 1, 1], [], []>} : vector<1x32xbf16>, vector<32x128xbf16>, vector<1x128xf32> -> vector<1x128xf32>
    %198 = arith.addf %196, %197 : vector<1x128xf32>
    %199 = vector.extract_strided_slice %198 {offsets = [0, 0], sizes = [1, 32], strides = [1, 1]} : vector<1x128xf32> to vector<1x32xf32>
    %200 = arith.addf %199, %28 : vector<1x32xf32>
    %cst_98 = arith.constant dense<0.000000e+00> : vector<1x128xf32>
    %201 = tpu.matmul %185, %9, %cst_98 {dimension_numbers = #tpu.dot_dimension_numbers<[1], [0], [0], [1], [0, 0, 1, 1], [], []>} : vector<1x32xbf16>, vector<32x128xbf16>, vector<1x128xf32> -> vector<1x128xf32>
    %cst_99 = arith.constant dense<0.000000e+00> : vector<1x128xf32>
    %202 = tpu.matmul %116, %17, %cst_99 {dimension_numbers = #tpu.dot_dimension_numbers<[1], [0], [0], [1], [0, 0, 1, 1], [], []>} : vector<1x32xbf16>, vector<32x128xbf16>, vector<1x128xf32> -> vector<1x128xf32>
    %203 = arith.addf %201, %202 : vector<1x128xf32>
    %204 = vector.extract_strided_slice %203 {offsets = [0, 0], sizes = [1, 32], strides = [1, 1]} : vector<1x128xf32> to vector<1x32xf32>
    %205 = arith.addf %204, %29 : vector<1x32xf32>
    %206 = arith.negf %190 : vector<1x32xf32>
    %207 = math.exp %206 : vector<1x32xf32>
    %cst_100 = arith.constant 1.000000e+00 : f32
    %208 = vector.broadcast %cst_100 : f32 to vector<1x32xf32>
    %209 = arith.addf %208, %207 : vector<1x32xf32>
    %210 = arith.divf %208, %209 : vector<1x32xf32>
    %211 = arith.negf %195 : vector<1x32xf32>
    %212 = math.exp %211 : vector<1x32xf32>
    %cst_101 = arith.constant 1.000000e+00 : f32
    %213 = vector.broadcast %cst_101 : f32 to vector<1x32xf32>
    %214 = arith.addf %213, %212 : vector<1x32xf32>
    %215 = arith.divf %213, %214 : vector<1x32xf32>
    %216 = math.tanh %200 : vector<1x32xf32>
    %217 = arith.negf %205 : vector<1x32xf32>
    %218 = math.exp %217 : vector<1x32xf32>
    %cst_102 = arith.constant 1.000000e+00 : f32
    %219 = vector.broadcast %cst_102 : f32 to vector<1x32xf32>
    %220 = arith.addf %219, %218 : vector<1x32xf32>
    %221 = arith.divf %219, %220 : vector<1x32xf32>
    %222 = arith.mulf %215, %113 : vector<1x32xf32>
    %223 = arith.mulf %210, %216 : vector<1x32xf32>
    %224 = arith.addf %222, %223 : vector<1x32xf32>
    %225 = math.tanh %224 : vector<1x32xf32>
    %226 = arith.mulf %221, %225 : vector<1x32xf32>
    %227 = arith.truncf %226 : vector<1x32xf32> to vector<1x32xbf16>
    %cst_103 = arith.constant dense<0.000000e+00> : vector<1x128xf32>
    %228 = tpu.matmul %227, %10, %cst_103 {dimension_numbers = #tpu.dot_dimension_numbers<[1], [0], [0], [1], [0, 0, 1, 1], [], []>} : vector<1x32xbf16>, vector<32x128xbf16>, vector<1x128xf32> -> vector<1x128xf32>
    %cst_104 = arith.constant dense<0.000000e+00> : vector<1x128xf32>
    %229 = tpu.matmul %158, %18, %cst_104 {dimension_numbers = #tpu.dot_dimension_numbers<[1], [0], [0], [1], [0, 0, 1, 1], [], []>} : vector<1x32xbf16>, vector<32x128xbf16>, vector<1x128xf32> -> vector<1x128xf32>
    %230 = arith.addf %228, %229 : vector<1x128xf32>
    %231 = vector.extract_strided_slice %230 {offsets = [0, 0], sizes = [1, 32], strides = [1, 1]} : vector<1x128xf32> to vector<1x32xf32>
    %232 = arith.addf %231, %30 : vector<1x32xf32>
    %cst_105 = arith.constant dense<0.000000e+00> : vector<1x128xf32>
    %233 = tpu.matmul %227, %11, %cst_105 {dimension_numbers = #tpu.dot_dimension_numbers<[1], [0], [0], [1], [0, 0, 1, 1], [], []>} : vector<1x32xbf16>, vector<32x128xbf16>, vector<1x128xf32> -> vector<1x128xf32>
    %cst_106 = arith.constant dense<0.000000e+00> : vector<1x128xf32>
    %234 = tpu.matmul %158, %19, %cst_106 {dimension_numbers = #tpu.dot_dimension_numbers<[1], [0], [0], [1], [0, 0, 1, 1], [], []>} : vector<1x32xbf16>, vector<32x128xbf16>, vector<1x128xf32> -> vector<1x128xf32>
    %235 = arith.addf %233, %234 : vector<1x128xf32>
    %236 = vector.extract_strided_slice %235 {offsets = [0, 0], sizes = [1, 32], strides = [1, 1]} : vector<1x128xf32> to vector<1x32xf32>
    %237 = arith.addf %236, %31 : vector<1x32xf32>
    %cst_107 = arith.constant dense<0.000000e+00> : vector<1x128xf32>
    %238 = tpu.matmul %227, %12, %cst_107 {dimension_numbers = #tpu.dot_dimension_numbers<[1], [0], [0], [1], [0, 0, 1, 1], [], []>} : vector<1x32xbf16>, vector<32x128xbf16>, vector<1x128xf32> -> vector<1x128xf32>
    %cst_108 = arith.constant dense<0.000000e+00> : vector<1x128xf32>
    %239 = tpu.matmul %158, %20, %cst_108 {dimension_numbers = #tpu.dot_dimension_numbers<[1], [0], [0], [1], [0, 0, 1, 1], [], []>} : vector<1x32xbf16>, vector<32x128xbf16>, vector<1x128xf32> -> vector<1x128xf32>
    %240 = arith.addf %238, %239 : vector<1x128xf32>
    %241 = vector.extract_strided_slice %240 {offsets = [0, 0], sizes = [1, 32], strides = [1, 1]} : vector<1x128xf32> to vector<1x32xf32>
    %242 = arith.addf %241, %32 : vector<1x32xf32>
    %cst_109 = arith.constant dense<0.000000e+00> : vector<1x128xf32>
    %243 = tpu.matmul %227, %13, %cst_109 {dimension_numbers = #tpu.dot_dimension_numbers<[1], [0], [0], [1], [0, 0, 1, 1], [], []>} : vector<1x32xbf16>, vector<32x128xbf16>, vector<1x128xf32> -> vector<1x128xf32>
    %cst_110 = arith.constant dense<0.000000e+00> : vector<1x128xf32>
    %244 = tpu.matmul %158, %21, %cst_110 {dimension_numbers = #tpu.dot_dimension_numbers<[1], [0], [0], [1], [0, 0, 1, 1], [], []>} : vector<1x32xbf16>, vector<32x128xbf16>, vector<1x128xf32> -> vector<1x128xf32>
    %245 = arith.addf %243, %244 : vector<1x128xf32>
    %246 = vector.extract_strided_slice %245 {offsets = [0, 0], sizes = [1, 32], strides = [1, 1]} : vector<1x128xf32> to vector<1x32xf32>
    %247 = arith.addf %246, %33 : vector<1x32xf32>
    %248 = arith.negf %232 : vector<1x32xf32>
    %249 = math.exp %248 : vector<1x32xf32>
    %cst_111 = arith.constant 1.000000e+00 : f32
    %250 = vector.broadcast %cst_111 : f32 to vector<1x32xf32>
    %251 = arith.addf %250, %249 : vector<1x32xf32>
    %252 = arith.divf %250, %251 : vector<1x32xf32>
    %253 = arith.negf %237 : vector<1x32xf32>
    %254 = math.exp %253 : vector<1x32xf32>
    %cst_112 = arith.constant 1.000000e+00 : f32
    %255 = vector.broadcast %cst_112 : f32 to vector<1x32xf32>
    %256 = arith.addf %255, %254 : vector<1x32xf32>
    %257 = arith.divf %255, %256 : vector<1x32xf32>
    %258 = math.tanh %242 : vector<1x32xf32>
    %259 = arith.negf %247 : vector<1x32xf32>
    %260 = math.exp %259 : vector<1x32xf32>
    %cst_113 = arith.constant 1.000000e+00 : f32
    %261 = vector.broadcast %cst_113 : f32 to vector<1x32xf32>
    %262 = arith.addf %261, %260 : vector<1x32xf32>
    %263 = arith.divf %261, %262 : vector<1x32xf32>
    %264 = arith.mulf %257, %155 : vector<1x32xf32>
    %265 = arith.mulf %252, %258 : vector<1x32xf32>
    %266 = arith.addf %264, %265 : vector<1x32xf32>
    %267 = math.tanh %266 : vector<1x32xf32>
    %268 = arith.mulf %263, %267 : vector<1x32xf32>
    %269 = arith.truncf %268 : vector<1x32xf32> to vector<1x32xbf16>
    %c1_114 = arith.constant 1 : index
    %c0_115 = arith.constant 0 : index
    %270 = vector.load %arg6[%c1_114, %c0_115] : memref<8x128xf32, #tpu.memory_space<vmem>>, vector<1x32xf32>
    tpu.vector_store %arg6[%c1_114, %c0_115], %268 {strides = array<i32>} : memref<8x128xf32, #tpu.memory_space<vmem>>, vector<1x32xf32>,
    %cst_116 = arith.constant dense<0.000000e+00> : vector<1x128xf32>
    %271 = tpu.matmul %269, %2, %cst_116 {dimension_numbers = #tpu.dot_dimension_numbers<[1], [0], [0], [1], [0, 0, 1, 1], [], []>} : vector<1x32xbf16>, vector<32x128xbf16>, vector<1x128xf32> -> vector<1x128xf32>
    %cst_117 = arith.constant dense<0.000000e+00> : vector<1x128xf32>
    %272 = tpu.matmul %227, %3, %cst_117 {dimension_numbers = #tpu.dot_dimension_numbers<[1], [0], [0], [1], [0, 0, 1, 1], [], []>} : vector<1x32xbf16>, vector<32x128xbf16>, vector<1x128xf32> -> vector<1x128xf32>
    %273 = arith.addf %271, %272 : vector<1x128xf32>
    %274 = vector.extract_strided_slice %273 {offsets = [0, 0], sizes = [1, 8], strides = [1, 1]} : vector<1x128xf32> to vector<1x8xf32>
    %275 = arith.addf %274, %24 : vector<1x8xf32>
    %cst_118 = arith.constant dense<0xFF800000> : vector<1xf32>
    %276 = vector.multi_reduction <maximumf>, %275, %cst_118 [1] : vector<1x8xf32> to vector<1xf32>
    %277 = vector.shape_cast %276 : vector<1xf32> to vector<1x1xf32>
    %278 = vector.broadcast %277 : vector<1x1xf32> to vector<1x8xf32>
    %279 = arith.subf %275, %278 : vector<1x8xf32>
    %280 = math.exp %279 : vector<1x8xf32>
    %cst_119 = arith.constant dense<0.000000e+00> : vector<1xf32>
    %281 = vector.multi_reduction <add>, %280, %cst_119 [1] : vector<1x8xf32> to vector<1xf32>
    %282 = vector.shape_cast %281 : vector<1xf32> to vector<1x1xf32>
    %283 = tpu.reciprocal %282 {approx = true} : vector<1x1xf32> -> vector<1x1xf32>
    %284 = arith.truncf %280 : vector<1x8xf32> to vector<1x8xbf16>
    %cst_120 = arith.constant dense<0.000000e+00> : vector<1x32xf32>
    %285 = tpu.matmul %284, %1, %cst_120 {dimension_numbers = #tpu.dot_dimension_numbers<[1], [0], [0], [1], [0, 0, 1, 1], [], []>} : vector<1x8xbf16>, vector<8x32xbf16>, vector<1x32xf32> -> vector<1x32xf32>
    %286 = vector.broadcast %283 : vector<1x1xf32> to vector<1x32xf32>
    %287 = arith.mulf %285, %286 : vector<1x32xf32>
    %288 = arith.truncf %287 : vector<1x32xf32> to vector<1x32xbf16>
    %cst_121 = arith.constant dense<0.000000e+00> : vector<1x128xf32>
    %289 = tpu.matmul %269, %4, %cst_121 {dimension_numbers = #tpu.dot_dimension_numbers<[1], [0], [0], [1], [0, 0, 1, 1], [], []>} : vector<1x32xbf16>, vector<32x128xbf16>, vector<1x128xf32> -> vector<1x128xf32>
    %cst_122 = arith.constant dense<0.000000e+00> : vector<1x128xf32>
    %290 = tpu.matmul %288, %5, %cst_122 {dimension_numbers = #tpu.dot_dimension_numbers<[1], [0], [0], [1], [0, 0, 1, 1], [], []>} : vector<1x32xbf16>, vector<32x128xbf16>, vector<1x128xf32> -> vector<1x128xf32>
    %291 = arith.addf %289, %290 : vector<1x128xf32>
    %292 = vector.extract_strided_slice %291 {offsets = [0, 0], sizes = [1, 32], strides = [1, 1]} : vector<1x128xf32> to vector<1x32xf32>
    %293 = arith.addf %292, %25 : vector<1x32xf32>
    %cst_123 = arith.constant 0.000000e+00 : f32
    %294 = vector.broadcast %cst_123 : f32 to vector<1x32xf32>
    %295 = arith.maximumf %293, %294 : vector<1x32xf32>
    %296 = arith.truncf %295 : vector<1x32xf32> to vector<1x32xbf16>
    %cst_124 = arith.constant dense<0.000000e+00> : vector<1x128xf32>
    %297 = tpu.matmul %296, %6, %cst_124 {dimension_numbers = #tpu.dot_dimension_numbers<[1], [0], [0], [1], [0, 0, 1, 1], [], []>} : vector<1x32xbf16>, vector<32x128xbf16>, vector<1x128xf32> -> vector<1x128xf32>
    %cst_125 = arith.constant dense<0.000000e+00> : vector<1x128xf32>
    %298 = tpu.matmul %227, %14, %cst_125 {dimension_numbers = #tpu.dot_dimension_numbers<[1], [0], [0], [1], [0, 0, 1, 1], [], []>} : vector<1x32xbf16>, vector<32x128xbf16>, vector<1x128xf32> -> vector<1x128xf32>
    %299 = arith.addf %297, %298 : vector<1x128xf32>
    %300 = vector.extract_strided_slice %299 {offsets = [0, 0], sizes = [1, 32], strides = [1, 1]} : vector<1x128xf32> to vector<1x32xf32>
    %301 = arith.addf %300, %26 : vector<1x32xf32>
    %cst_126 = arith.constant dense<0.000000e+00> : vector<1x128xf32>
    %302 = tpu.matmul %296, %7, %cst_126 {dimension_numbers = #tpu.dot_dimension_numbers<[1], [0], [0], [1], [0, 0, 1, 1], [], []>} : vector<1x32xbf16>, vector<32x128xbf16>, vector<1x128xf32> -> vector<1x128xf32>
    %cst_127 = arith.constant dense<0.000000e+00> : vector<1x128xf32>
    %303 = tpu.matmul %227, %15, %cst_127 {dimension_numbers = #tpu.dot_dimension_numbers<[1], [0], [0], [1], [0, 0, 1, 1], [], []>} : vector<1x32xbf16>, vector<32x128xbf16>, vector<1x128xf32> -> vector<1x128xf32>
    %304 = arith.addf %302, %303 : vector<1x128xf32>
    %305 = vector.extract_strided_slice %304 {offsets = [0, 0], sizes = [1, 32], strides = [1, 1]} : vector<1x128xf32> to vector<1x32xf32>
    %306 = arith.addf %305, %27 : vector<1x32xf32>
    %cst_128 = arith.constant dense<0.000000e+00> : vector<1x128xf32>
    %307 = tpu.matmul %296, %8, %cst_128 {dimension_numbers = #tpu.dot_dimension_numbers<[1], [0], [0], [1], [0, 0, 1, 1], [], []>} : vector<1x32xbf16>, vector<32x128xbf16>, vector<1x128xf32> -> vector<1x128xf32>
    %cst_129 = arith.constant dense<0.000000e+00> : vector<1x128xf32>
    %308 = tpu.matmul %227, %16, %cst_129 {dimension_numbers = #tpu.dot_dimension_numbers<[1], [0], [0], [1], [0, 0, 1, 1], [], []>} : vector<1x32xbf16>, vector<32x128xbf16>, vector<1x128xf32> -> vector<1x128xf32>
    %309 = arith.addf %307, %308 : vector<1x128xf32>
    %310 = vector.extract_strided_slice %309 {offsets = [0, 0], sizes = [1, 32], strides = [1, 1]} : vector<1x128xf32> to vector<1x32xf32>
    %311 = arith.addf %310, %28 : vector<1x32xf32>
    %cst_130 = arith.constant dense<0.000000e+00> : vector<1x128xf32>
    %312 = tpu.matmul %296, %9, %cst_130 {dimension_numbers = #tpu.dot_dimension_numbers<[1], [0], [0], [1], [0, 0, 1, 1], [], []>} : vector<1x32xbf16>, vector<32x128xbf16>, vector<1x128xf32> -> vector<1x128xf32>
    %cst_131 = arith.constant dense<0.000000e+00> : vector<1x128xf32>
    %313 = tpu.matmul %227, %17, %cst_131 {dimension_numbers = #tpu.dot_dimension_numbers<[1], [0], [0], [1], [0, 0, 1, 1], [], []>} : vector<1x32xbf16>, vector<32x128xbf16>, vector<1x128xf32> -> vector<1x128xf32>
    %314 = arith.addf %312, %313 : vector<1x128xf32>
    %315 = vector.extract_strided_slice %314 {offsets = [0, 0], sizes = [1, 32], strides = [1, 1]} : vector<1x128xf32> to vector<1x32xf32>
    %316 = arith.addf %315, %29 : vector<1x32xf32>
    %317 = arith.negf %301 : vector<1x32xf32>
    %318 = math.exp %317 : vector<1x32xf32>
    %cst_132 = arith.constant 1.000000e+00 : f32
    %319 = vector.broadcast %cst_132 : f32 to vector<1x32xf32>
    %320 = arith.addf %319, %318 : vector<1x32xf32>
    %321 = arith.divf %319, %320 : vector<1x32xf32>
    %322 = arith.negf %306 : vector<1x32xf32>
    %323 = math.exp %322 : vector<1x32xf32>
    %cst_133 = arith.constant 1.000000e+00 : f32
    %324 = vector.broadcast %cst_133 : f32 to vector<1x32xf32>
    %325 = arith.addf %324, %323 : vector<1x32xf32>
    %326 = arith.divf %324, %325 : vector<1x32xf32>
    %327 = math.tanh %311 : vector<1x32xf32>
    %328 = arith.negf %316 : vector<1x32xf32>
    %329 = math.exp %328 : vector<1x32xf32>
    %cst_134 = arith.constant 1.000000e+00 : f32
    %330 = vector.broadcast %cst_134 : f32 to vector<1x32xf32>
    %331 = arith.addf %330, %329 : vector<1x32xf32>
    %332 = arith.divf %330, %331 : vector<1x32xf32>
    %333 = arith.mulf %326, %224 : vector<1x32xf32>
    %334 = arith.mulf %321, %327 : vector<1x32xf32>
    %335 = arith.addf %333, %334 : vector<1x32xf32>
    %336 = math.tanh %335 : vector<1x32xf32>
    %337 = arith.mulf %332, %336 : vector<1x32xf32>
    %338 = arith.truncf %337 : vector<1x32xf32> to vector<1x32xbf16>
    %cst_135 = arith.constant dense<0.000000e+00> : vector<1x128xf32>
    %339 = tpu.matmul %338, %10, %cst_135 {dimension_numbers = #tpu.dot_dimension_numbers<[1], [0], [0], [1], [0, 0, 1, 1], [], []>} : vector<1x32xbf16>, vector<32x128xbf16>, vector<1x128xf32> -> vector<1x128xf32>
    %cst_136 = arith.constant dense<0.000000e+00> : vector<1x128xf32>
    %340 = tpu.matmul %269, %18, %cst_136 {dimension_numbers = #tpu.dot_dimension_numbers<[1], [0], [0], [1], [0, 0, 1, 1], [], []>} : vector<1x32xbf16>, vector<32x128xbf16>, vector<1x128xf32> -> vector<1x128xf32>
    %341 = arith.addf %339, %340 : vector<1x128xf32>
    %342 = vector.extract_strided_slice %341 {offsets = [0, 0], sizes = [1, 32], strides = [1, 1]} : vector<1x128xf32> to vector<1x32xf32>
    %343 = arith.addf %342, %30 : vector<1x32xf32>
    %cst_137 = arith.constant dense<0.000000e+00> : vector<1x128xf32>
    %344 = tpu.matmul %338, %11, %cst_137 {dimension_numbers = #tpu.dot_dimension_numbers<[1], [0], [0], [1], [0, 0, 1, 1], [], []>} : vector<1x32xbf16>, vector<32x128xbf16>, vector<1x128xf32> -> vector<1x128xf32>
    %cst_138 = arith.constant dense<0.000000e+00> : vector<1x128xf32>
    %345 = tpu.matmul %269, %19, %cst_138 {dimension_numbers = #tpu.dot_dimension_numbers<[1], [0], [0], [1], [0, 0, 1, 1], [], []>} : vector<1x32xbf16>, vector<32x128xbf16>, vector<1x128xf32> -> vector<1x128xf32>
    %346 = arith.addf %344, %345 : vector<1x128xf32>
    %347 = vector.extract_strided_slice %346 {offsets = [0, 0], sizes = [1, 32], strides = [1, 1]} : vector<1x128xf32> to vector<1x32xf32>
    %348 = arith.addf %347, %31 : vector<1x32xf32>
    %cst_139 = arith.constant dense<0.000000e+00> : vector<1x128xf32>
    %349 = tpu.matmul %338, %12, %cst_139 {dimension_numbers = #tpu.dot_dimension_numbers<[1], [0], [0], [1], [0, 0, 1, 1], [], []>} : vector<1x32xbf16>, vector<32x128xbf16>, vector<1x128xf32> -> vector<1x128xf32>
    %cst_140 = arith.constant dense<0.000000e+00> : vector<1x128xf32>
    %350 = tpu.matmul %269, %20, %cst_140 {dimension_numbers = #tpu.dot_dimension_numbers<[1], [0], [0], [1], [0, 0, 1, 1], [], []>} : vector<1x32xbf16>, vector<32x128xbf16>, vector<1x128xf32> -> vector<1x128xf32>
    %351 = arith.addf %349, %350 : vector<1x128xf32>
    %352 = vector.extract_strided_slice %351 {offsets = [0, 0], sizes = [1, 32], strides = [1, 1]} : vector<1x128xf32> to vector<1x32xf32>
    %353 = arith.addf %352, %32 : vector<1x32xf32>
    %cst_141 = arith.constant dense<0.000000e+00> : vector<1x128xf32>
    %354 = tpu.matmul %338, %13, %cst_141 {dimension_numbers = #tpu.dot_dimension_numbers<[1], [0], [0], [1], [0, 0, 1, 1], [], []>} : vector<1x32xbf16>, vector<32x128xbf16>, vector<1x128xf32> -> vector<1x128xf32>
    %cst_142 = arith.constant dense<0.000000e+00> : vector<1x128xf32>
    %355 = tpu.matmul %269, %21, %cst_142 {dimension_numbers = #tpu.dot_dimension_numbers<[1], [0], [0], [1], [0, 0, 1, 1], [], []>} : vector<1x32xbf16>, vector<32x128xbf16>, vector<1x128xf32> -> vector<1x128xf32>
    %356 = arith.addf %354, %355 : vector<1x128xf32>
    %357 = vector.extract_strided_slice %356 {offsets = [0, 0], sizes = [1, 32], strides = [1, 1]} : vector<1x128xf32> to vector<1x32xf32>
    %358 = arith.addf %357, %33 : vector<1x32xf32>
    %359 = arith.negf %343 : vector<1x32xf32>
    %360 = math.exp %359 : vector<1x32xf32>
    %cst_143 = arith.constant 1.000000e+00 : f32
    %361 = vector.broadcast %cst_143 : f32 to vector<1x32xf32>
    %362 = arith.addf %361, %360 : vector<1x32xf32>
    %363 = arith.divf %361, %362 : vector<1x32xf32>
    %364 = arith.negf %348 : vector<1x32xf32>
    %365 = math.exp %364 : vector<1x32xf32>
    %cst_144 = arith.constant 1.000000e+00 : f32
    %366 = vector.broadcast %cst_144 : f32 to vector<1x32xf32>
    %367 = arith.addf %366, %365 : vector<1x32xf32>
    %368 = arith.divf %366, %367 : vector<1x32xf32>
    %369 = math.tanh %353 : vector<1x32xf32>
    %370 = arith.negf %358 : vector<1x32xf32>
    %371 = math.exp %370 : vector<1x32xf32>
    %cst_145 = arith.constant 1.000000e+00 : f32
    %372 = vector.broadcast %cst_145 : f32 to vector<1x32xf32>
    %373 = arith.addf %372, %371 : vector<1x32xf32>
    %374 = arith.divf %372, %373 : vector<1x32xf32>
    %375 = arith.mulf %368, %266 : vector<1x32xf32>
    %376 = arith.mulf %363, %369 : vector<1x32xf32>
    %377 = arith.addf %375, %376 : vector<1x32xf32>
    %378 = math.tanh %377 : vector<1x32xf32>
    %379 = arith.mulf %374, %378 : vector<1x32xf32>
    %380 = arith.truncf %379 : vector<1x32xf32> to vector<1x32xbf16>
    %c2_146 = arith.constant 2 : index
    %c0_147 = arith.constant 0 : index
    %381 = vector.load %arg6[%c2_146, %c0_147] : memref<8x128xf32, #tpu.memory_space<vmem>>, vector<1x32xf32>
    tpu.vector_store %arg6[%c2_146, %c0_147], %379 {strides = array<i32>} : memref<8x128xf32, #tpu.memory_space<vmem>>, vector<1x32xf32>,
    %cst_148 = arith.constant dense<0.000000e+00> : vector<1x128xf32>
    %382 = tpu.matmul %380, %2, %cst_148 {dimension_numbers = #tpu.dot_dimension_numbers<[1], [0], [0], [1], [0, 0, 1, 1], [], []>} : vector<1x32xbf16>, vector<32x128xbf16>, vector<1x128xf32> -> vector<1x128xf32>
    %cst_149 = arith.constant dense<0.000000e+00> : vector<1x128xf32>
    %383 = tpu.matmul %338, %3, %cst_149 {dimension_numbers = #tpu.dot_dimension_numbers<[1], [0], [0], [1], [0, 0, 1, 1], [], []>} : vector<1x32xbf16>, vector<32x128xbf16>, vector<1x128xf32> -> vector<1x128xf32>
    %384 = arith.addf %382, %383 : vector<1x128xf32>
    %385 = vector.extract_strided_slice %384 {offsets = [0, 0], sizes = [1, 8], strides = [1, 1]} : vector<1x128xf32> to vector<1x8xf32>
    %386 = arith.addf %385, %24 : vector<1x8xf32>
    %cst_150 = arith.constant dense<0xFF800000> : vector<1xf32>
    %387 = vector.multi_reduction <maximumf>, %386, %cst_150 [1] : vector<1x8xf32> to vector<1xf32>
    %388 = vector.shape_cast %387 : vector<1xf32> to vector<1x1xf32>
    %389 = vector.broadcast %388 : vector<1x1xf32> to vector<1x8xf32>
    %390 = arith.subf %386, %389 : vector<1x8xf32>
    %391 = math.exp %390 : vector<1x8xf32>
    %cst_151 = arith.constant dense<0.000000e+00> : vector<1xf32>
    %392 = vector.multi_reduction <add>, %391, %cst_151 [1] : vector<1x8xf32> to vector<1xf32>
    %393 = vector.shape_cast %392 : vector<1xf32> to vector<1x1xf32>
    %394 = tpu.reciprocal %393 {approx = true} : vector<1x1xf32> -> vector<1x1xf32>
    %395 = arith.truncf %391 : vector<1x8xf32> to vector<1x8xbf16>
    %cst_152 = arith.constant dense<0.000000e+00> : vector<1x32xf32>
    %396 = tpu.matmul %395, %1, %cst_152 {dimension_numbers = #tpu.dot_dimension_numbers<[1], [0], [0], [1], [0, 0, 1, 1], [], []>} : vector<1x8xbf16>, vector<8x32xbf16>, vector<1x32xf32> -> vector<1x32xf32>
    %397 = vector.broadcast %394 : vector<1x1xf32> to vector<1x32xf32>
    %398 = arith.mulf %396, %397 : vector<1x32xf32>
    %399 = arith.truncf %398 : vector<1x32xf32> to vector<1x32xbf16>
    %cst_153 = arith.constant dense<0.000000e+00> : vector<1x128xf32>
    %400 = tpu.matmul %380, %4, %cst_153 {dimension_numbers = #tpu.dot_dimension_numbers<[1], [0], [0], [1], [0, 0, 1, 1], [], []>} : vector<1x32xbf16>, vector<32x128xbf16>, vector<1x128xf32> -> vector<1x128xf32>
    %cst_154 = arith.constant dense<0.000000e+00> : vector<1x128xf32>
    %401 = tpu.matmul %399, %5, %cst_154 {dimension_numbers = #tpu.dot_dimension_numbers<[1], [0], [0], [1], [0, 0, 1, 1], [], []>} : vector<1x32xbf16>, vector<32x128xbf16>, vector<1x128xf32> -> vector<1x128xf32>
    %402 = arith.addf %400, %401 : vector<1x128xf32>
    %403 = vector.extract_strided_slice %402 {offsets = [0, 0], sizes = [1, 32], strides = [1, 1]} : vector<1x128xf32> to vector<1x32xf32>
    %404 = arith.addf %403, %25 : vector<1x32xf32>
    %cst_155 = arith.constant 0.000000e+00 : f32
    %405 = vector.broadcast %cst_155 : f32 to vector<1x32xf32>
    %406 = arith.maximumf %404, %405 : vector<1x32xf32>
    %407 = arith.truncf %406 : vector<1x32xf32> to vector<1x32xbf16>
    %cst_156 = arith.constant dense<0.000000e+00> : vector<1x128xf32>
    %408 = tpu.matmul %407, %6, %cst_156 {dimension_numbers = #tpu.dot_dimension_numbers<[1], [0], [0], [1], [0, 0, 1, 1], [], []>} : vector<1x32xbf16>, vector<32x128xbf16>, vector<1x128xf32> -> vector<1x128xf32>
    %cst_157 = arith.constant dense<0.000000e+00> : vector<1x128xf32>
    %409 = tpu.matmul %338, %14, %cst_157 {dimension_numbers = #tpu.dot_dimension_numbers<[1], [0], [0], [1], [0, 0, 1, 1], [], []>} : vector<1x32xbf16>, vector<32x128xbf16>, vector<1x128xf32> -> vector<1x128xf32>
    %410 = arith.addf %408, %409 : vector<1x128xf32>
    %411 = vector.extract_strided_slice %410 {offsets = [0, 0], sizes = [1, 32], strides = [1, 1]} : vector<1x128xf32> to vector<1x32xf32>
    %412 = arith.addf %411, %26 : vector<1x32xf32>
    %cst_158 = arith.constant dense<0.000000e+00> : vector<1x128xf32>
    %413 = tpu.matmul %407, %7, %cst_158 {dimension_numbers = #tpu.dot_dimension_numbers<[1], [0], [0], [1], [0, 0, 1, 1], [], []>} : vector<1x32xbf16>, vector<32x128xbf16>, vector<1x128xf32> -> vector<1x128xf32>
    %cst_159 = arith.constant dense<0.000000e+00> : vector<1x128xf32>
    %414 = tpu.matmul %338, %15, %cst_159 {dimension_numbers = #tpu.dot_dimension_numbers<[1], [0], [0], [1], [0, 0, 1, 1], [], []>} : vector<1x32xbf16>, vector<32x128xbf16>, vector<1x128xf32> -> vector<1x128xf32>
    %415 = arith.addf %413, %414 : vector<1x128xf32>
    %416 = vector.extract_strided_slice %415 {offsets = [0, 0], sizes = [1, 32], strides = [1, 1]} : vector<1x128xf32> to vector<1x32xf32>
    %417 = arith.addf %416, %27 : vector<1x32xf32>
    %cst_160 = arith.constant dense<0.000000e+00> : vector<1x128xf32>
    %418 = tpu.matmul %407, %8, %cst_160 {dimension_numbers = #tpu.dot_dimension_numbers<[1], [0], [0], [1], [0, 0, 1, 1], [], []>} : vector<1x32xbf16>, vector<32x128xbf16>, vector<1x128xf32> -> vector<1x128xf32>
    %cst_161 = arith.constant dense<0.000000e+00> : vector<1x128xf32>
    %419 = tpu.matmul %338, %16, %cst_161 {dimension_numbers = #tpu.dot_dimension_numbers<[1], [0], [0], [1], [0, 0, 1, 1], [], []>} : vector<1x32xbf16>, vector<32x128xbf16>, vector<1x128xf32> -> vector<1x128xf32>
    %420 = arith.addf %418, %419 : vector<1x128xf32>
    %421 = vector.extract_strided_slice %420 {offsets = [0, 0], sizes = [1, 32], strides = [1, 1]} : vector<1x128xf32> to vector<1x32xf32>
    %422 = arith.addf %421, %28 : vector<1x32xf32>
    %cst_162 = arith.constant dense<0.000000e+00> : vector<1x128xf32>
    %423 = tpu.matmul %407, %9, %cst_162 {dimension_numbers = #tpu.dot_dimension_numbers<[1], [0], [0], [1], [0, 0, 1, 1], [], []>} : vector<1x32xbf16>, vector<32x128xbf16>, vector<1x128xf32> -> vector<1x128xf32>
    %cst_163 = arith.constant dense<0.000000e+00> : vector<1x128xf32>
    %424 = tpu.matmul %338, %17, %cst_163 {dimension_numbers = #tpu.dot_dimension_numbers<[1], [0], [0], [1], [0, 0, 1, 1], [], []>} : vector<1x32xbf16>, vector<32x128xbf16>, vector<1x128xf32> -> vector<1x128xf32>
    %425 = arith.addf %423, %424 : vector<1x128xf32>
    %426 = vector.extract_strided_slice %425 {offsets = [0, 0], sizes = [1, 32], strides = [1, 1]} : vector<1x128xf32> to vector<1x32xf32>
    %427 = arith.addf %426, %29 : vector<1x32xf32>
    %428 = arith.negf %412 : vector<1x32xf32>
    %429 = math.exp %428 : vector<1x32xf32>
    %cst_164 = arith.constant 1.000000e+00 : f32
    %430 = vector.broadcast %cst_164 : f32 to vector<1x32xf32>
    %431 = arith.addf %430, %429 : vector<1x32xf32>
    %432 = arith.divf %430, %431 : vector<1x32xf32>
    %433 = arith.negf %417 : vector<1x32xf32>
    %434 = math.exp %433 : vector<1x32xf32>
    %cst_165 = arith.constant 1.000000e+00 : f32
    %435 = vector.broadcast %cst_165 : f32 to vector<1x32xf32>
    %436 = arith.addf %435, %434 : vector<1x32xf32>
    %437 = arith.divf %435, %436 : vector<1x32xf32>
    %438 = math.tanh %422 : vector<1x32xf32>
    %439 = arith.negf %427 : vector<1x32xf32>
    %440 = math.exp %439 : vector<1x32xf32>
    %cst_166 = arith.constant 1.000000e+00 : f32
    %441 = vector.broadcast %cst_166 : f32 to vector<1x32xf32>
    %442 = arith.addf %441, %440 : vector<1x32xf32>
    %443 = arith.divf %441, %442 : vector<1x32xf32>
    %444 = arith.mulf %437, %335 : vector<1x32xf32>
    %445 = arith.mulf %432, %438 : vector<1x32xf32>
    %446 = arith.addf %444, %445 : vector<1x32xf32>
    %447 = math.tanh %446 : vector<1x32xf32>
    %448 = arith.mulf %443, %447 : vector<1x32xf32>
    %449 = arith.truncf %448 : vector<1x32xf32> to vector<1x32xbf16>
    %cst_167 = arith.constant dense<0.000000e+00> : vector<1x128xf32>
    %450 = tpu.matmul %449, %10, %cst_167 {dimension_numbers = #tpu.dot_dimension_numbers<[1], [0], [0], [1], [0, 0, 1, 1], [], []>} : vector<1x32xbf16>, vector<32x128xbf16>, vector<1x128xf32> -> vector<1x128xf32>
    %cst_168 = arith.constant dense<0.000000e+00> : vector<1x128xf32>
    %451 = tpu.matmul %380, %18, %cst_168 {dimension_numbers = #tpu.dot_dimension_numbers<[1], [0], [0], [1], [0, 0, 1, 1], [], []>} : vector<1x32xbf16>, vector<32x128xbf16>, vector<1x128xf32> -> vector<1x128xf32>
    %452 = arith.addf %450, %451 : vector<1x128xf32>
    %453 = vector.extract_strided_slice %452 {offsets = [0, 0], sizes = [1, 32], strides = [1, 1]} : vector<1x128xf32> to vector<1x32xf32>
    %454 = arith.addf %453, %30 : vector<1x32xf32>
    %cst_169 = arith.constant dense<0.000000e+00> : vector<1x128xf32>
    %455 = tpu.matmul %449, %11, %cst_169 {dimension_numbers = #tpu.dot_dimension_numbers<[1], [0], [0], [1], [0, 0, 1, 1], [], []>} : vector<1x32xbf16>, vector<32x128xbf16>, vector<1x128xf32> -> vector<1x128xf32>
    %cst_170 = arith.constant dense<0.000000e+00> : vector<1x128xf32>
    %456 = tpu.matmul %380, %19, %cst_170 {dimension_numbers = #tpu.dot_dimension_numbers<[1], [0], [0], [1], [0, 0, 1, 1], [], []>} : vector<1x32xbf16>, vector<32x128xbf16>, vector<1x128xf32> -> vector<1x128xf32>
    %457 = arith.addf %455, %456 : vector<1x128xf32>
    %458 = vector.extract_strided_slice %457 {offsets = [0, 0], sizes = [1, 32], strides = [1, 1]} : vector<1x128xf32> to vector<1x32xf32>
    %459 = arith.addf %458, %31 : vector<1x32xf32>
    %cst_171 = arith.constant dense<0.000000e+00> : vector<1x128xf32>
    %460 = tpu.matmul %449, %12, %cst_171 {dimension_numbers = #tpu.dot_dimension_numbers<[1], [0], [0], [1], [0, 0, 1, 1], [], []>} : vector<1x32xbf16>, vector<32x128xbf16>, vector<1x128xf32> -> vector<1x128xf32>
    %cst_172 = arith.constant dense<0.000000e+00> : vector<1x128xf32>
    %461 = tpu.matmul %380, %20, %cst_172 {dimension_numbers = #tpu.dot_dimension_numbers<[1], [0], [0], [1], [0, 0, 1, 1], [], []>} : vector<1x32xbf16>, vector<32x128xbf16>, vector<1x128xf32> -> vector<1x128xf32>
    %462 = arith.addf %460, %461 : vector<1x128xf32>
    %463 = vector.extract_strided_slice %462 {offsets = [0, 0], sizes = [1, 32], strides = [1, 1]} : vector<1x128xf32> to vector<1x32xf32>
    %464 = arith.addf %463, %32 : vector<1x32xf32>
    %cst_173 = arith.constant dense<0.000000e+00> : vector<1x128xf32>
    %465 = tpu.matmul %449, %13, %cst_173 {dimension_numbers = #tpu.dot_dimension_numbers<[1], [0], [0], [1], [0, 0, 1, 1], [], []>} : vector<1x32xbf16>, vector<32x128xbf16>, vector<1x128xf32> -> vector<1x128xf32>
    %cst_174 = arith.constant dense<0.000000e+00> : vector<1x128xf32>
    %466 = tpu.matmul %380, %21, %cst_174 {dimension_numbers = #tpu.dot_dimension_numbers<[1], [0], [0], [1], [0, 0, 1, 1], [], []>} : vector<1x32xbf16>, vector<32x128xbf16>, vector<1x128xf32> -> vector<1x128xf32>
    %467 = arith.addf %465, %466 : vector<1x128xf32>
    %468 = vector.extract_strided_slice %467 {offsets = [0, 0], sizes = [1, 32], strides = [1, 1]} : vector<1x128xf32> to vector<1x32xf32>
    %469 = arith.addf %468, %33 : vector<1x32xf32>
    %470 = arith.negf %454 : vector<1x32xf32>
    %471 = math.exp %470 : vector<1x32xf32>
    %cst_175 = arith.constant 1.000000e+00 : f32
    %472 = vector.broadcast %cst_175 : f32 to vector<1x32xf32>
    %473 = arith.addf %472, %471 : vector<1x32xf32>
    %474 = arith.divf %472, %473 : vector<1x32xf32>
    %475 = arith.negf %459 : vector<1x32xf32>
    %476 = math.exp %475 : vector<1x32xf32>
    %cst_176 = arith.constant 1.000000e+00 : f32
    %477 = vector.broadcast %cst_176 : f32 to vector<1x32xf32>
    %478 = arith.addf %477, %476 : vector<1x32xf32>
    %479 = arith.divf %477, %478 : vector<1x32xf32>
    %480 = math.tanh %464 : vector<1x32xf32>
    %481 = arith.negf %469 : vector<1x32xf32>
    %482 = math.exp %481 : vector<1x32xf32>
    %cst_177 = arith.constant 1.000000e+00 : f32
    %483 = vector.broadcast %cst_177 : f32 to vector<1x32xf32>
    %484 = arith.addf %483, %482 : vector<1x32xf32>
    %485 = arith.divf %483, %484 : vector<1x32xf32>
    %486 = arith.mulf %479, %377 : vector<1x32xf32>
    %487 = arith.mulf %474, %480 : vector<1x32xf32>
    %488 = arith.addf %486, %487 : vector<1x32xf32>
    %489 = math.tanh %488 : vector<1x32xf32>
    %490 = arith.mulf %485, %489 : vector<1x32xf32>
    %491 = arith.truncf %490 : vector<1x32xf32> to vector<1x32xbf16>
    %c3_178 = arith.constant 3 : index
    %c0_179 = arith.constant 0 : index
    %492 = vector.load %arg6[%c3_178, %c0_179] : memref<8x128xf32, #tpu.memory_space<vmem>>, vector<1x32xf32>
    tpu.vector_store %arg6[%c3_178, %c0_179], %490 {strides = array<i32>} : memref<8x128xf32, #tpu.memory_space<vmem>>, vector<1x32xf32>,
    %cst_180 = arith.constant dense<0.000000e+00> : vector<1x128xf32>
    %493 = tpu.matmul %491, %2, %cst_180 {dimension_numbers = #tpu.dot_dimension_numbers<[1], [0], [0], [1], [0, 0, 1, 1], [], []>} : vector<1x32xbf16>, vector<32x128xbf16>, vector<1x128xf32> -> vector<1x128xf32>
    %cst_181 = arith.constant dense<0.000000e+00> : vector<1x128xf32>
    %494 = tpu.matmul %449, %3, %cst_181 {dimension_numbers = #tpu.dot_dimension_numbers<[1], [0], [0], [1], [0, 0, 1, 1], [], []>} : vector<1x32xbf16>, vector<32x128xbf16>, vector<1x128xf32> -> vector<1x128xf32>
    %495 = arith.addf %493, %494 : vector<1x128xf32>
    %496 = vector.extract_strided_slice %495 {offsets = [0, 0], sizes = [1, 8], strides = [1, 1]} : vector<1x128xf32> to vector<1x8xf32>
    %497 = arith.addf %496, %24 : vector<1x8xf32>
    %cst_182 = arith.constant dense<0xFF800000> : vector<1xf32>
    %498 = vector.multi_reduction <maximumf>, %497, %cst_182 [1] : vector<1x8xf32> to vector<1xf32>
    %499 = vector.shape_cast %498 : vector<1xf32> to vector<1x1xf32>
    %500 = vector.broadcast %499 : vector<1x1xf32> to vector<1x8xf32>
    %501 = arith.subf %497, %500 : vector<1x8xf32>
    %502 = math.exp %501 : vector<1x8xf32>
    %cst_183 = arith.constant dense<0.000000e+00> : vector<1xf32>
    %503 = vector.multi_reduction <add>, %502, %cst_183 [1] : vector<1x8xf32> to vector<1xf32>
    %504 = vector.shape_cast %503 : vector<1xf32> to vector<1x1xf32>
    %505 = tpu.reciprocal %504 {approx = true} : vector<1x1xf32> -> vector<1x1xf32>
    %506 = arith.truncf %502 : vector<1x8xf32> to vector<1x8xbf16>
    %cst_184 = arith.constant dense<0.000000e+00> : vector<1x32xf32>
    %507 = tpu.matmul %506, %1, %cst_184 {dimension_numbers = #tpu.dot_dimension_numbers<[1], [0], [0], [1], [0, 0, 1, 1], [], []>} : vector<1x8xbf16>, vector<8x32xbf16>, vector<1x32xf32> -> vector<1x32xf32>
    %508 = vector.broadcast %505 : vector<1x1xf32> to vector<1x32xf32>
    %509 = arith.mulf %507, %508 : vector<1x32xf32>
    %510 = arith.truncf %509 : vector<1x32xf32> to vector<1x32xbf16>
    %cst_185 = arith.constant dense<0.000000e+00> : vector<1x128xf32>
    %511 = tpu.matmul %491, %4, %cst_185 {dimension_numbers = #tpu.dot_dimension_numbers<[1], [0], [0], [1], [0, 0, 1, 1], [], []>} : vector<1x32xbf16>, vector<32x128xbf16>, vector<1x128xf32> -> vector<1x128xf32>
    %cst_186 = arith.constant dense<0.000000e+00> : vector<1x128xf32>
    %512 = tpu.matmul %510, %5, %cst_186 {dimension_numbers = #tpu.dot_dimension_numbers<[1], [0], [0], [1], [0, 0, 1, 1], [], []>} : vector<1x32xbf16>, vector<32x128xbf16>, vector<1x128xf32> -> vector<1x128xf32>
    %513 = arith.addf %511, %512 : vector<1x128xf32>
    %514 = vector.extract_strided_slice %513 {offsets = [0, 0], sizes = [1, 32], strides = [1, 1]} : vector<1x128xf32> to vector<1x32xf32>
    %515 = arith.addf %514, %25 : vector<1x32xf32>
    %cst_187 = arith.constant 0.000000e+00 : f32
    %516 = vector.broadcast %cst_187 : f32 to vector<1x32xf32>
    %517 = arith.maximumf %515, %516 : vector<1x32xf32>
    %518 = arith.truncf %517 : vector<1x32xf32> to vector<1x32xbf16>
    %cst_188 = arith.constant dense<0.000000e+00> : vector<1x128xf32>
    %519 = tpu.matmul %518, %6, %cst_188 {dimension_numbers = #tpu.dot_dimension_numbers<[1], [0], [0], [1], [0, 0, 1, 1], [], []>} : vector<1x32xbf16>, vector<32x128xbf16>, vector<1x128xf32> -> vector<1x128xf32>
    %cst_189 = arith.constant dense<0.000000e+00> : vector<1x128xf32>
    %520 = tpu.matmul %449, %14, %cst_189 {dimension_numbers = #tpu.dot_dimension_numbers<[1], [0], [0], [1], [0, 0, 1, 1], [], []>} : vector<1x32xbf16>, vector<32x128xbf16>, vector<1x128xf32> -> vector<1x128xf32>
    %521 = arith.addf %519, %520 : vector<1x128xf32>
    %522 = vector.extract_strided_slice %521 {offsets = [0, 0], sizes = [1, 32], strides = [1, 1]} : vector<1x128xf32> to vector<1x32xf32>
    %523 = arith.addf %522, %26 : vector<1x32xf32>
    %cst_190 = arith.constant dense<0.000000e+00> : vector<1x128xf32>
    %524 = tpu.matmul %518, %7, %cst_190 {dimension_numbers = #tpu.dot_dimension_numbers<[1], [0], [0], [1], [0, 0, 1, 1], [], []>} : vector<1x32xbf16>, vector<32x128xbf16>, vector<1x128xf32> -> vector<1x128xf32>
    %cst_191 = arith.constant dense<0.000000e+00> : vector<1x128xf32>
    %525 = tpu.matmul %449, %15, %cst_191 {dimension_numbers = #tpu.dot_dimension_numbers<[1], [0], [0], [1], [0, 0, 1, 1], [], []>} : vector<1x32xbf16>, vector<32x128xbf16>, vector<1x128xf32> -> vector<1x128xf32>
    %526 = arith.addf %524, %525 : vector<1x128xf32>
    %527 = vector.extract_strided_slice %526 {offsets = [0, 0], sizes = [1, 32], strides = [1, 1]} : vector<1x128xf32> to vector<1x32xf32>
    %528 = arith.addf %527, %27 : vector<1x32xf32>
    %cst_192 = arith.constant dense<0.000000e+00> : vector<1x128xf32>
    %529 = tpu.matmul %518, %8, %cst_192 {dimension_numbers = #tpu.dot_dimension_numbers<[1], [0], [0], [1], [0, 0, 1, 1], [], []>} : vector<1x32xbf16>, vector<32x128xbf16>, vector<1x128xf32> -> vector<1x128xf32>
    %cst_193 = arith.constant dense<0.000000e+00> : vector<1x128xf32>
    %530 = tpu.matmul %449, %16, %cst_193 {dimension_numbers = #tpu.dot_dimension_numbers<[1], [0], [0], [1], [0, 0, 1, 1], [], []>} : vector<1x32xbf16>, vector<32x128xbf16>, vector<1x128xf32> -> vector<1x128xf32>
    %531 = arith.addf %529, %530 : vector<1x128xf32>
    %532 = vector.extract_strided_slice %531 {offsets = [0, 0], sizes = [1, 32], strides = [1, 1]} : vector<1x128xf32> to vector<1x32xf32>
    %533 = arith.addf %532, %28 : vector<1x32xf32>
    %cst_194 = arith.constant dense<0.000000e+00> : vector<1x128xf32>
    %534 = tpu.matmul %518, %9, %cst_194 {dimension_numbers = #tpu.dot_dimension_numbers<[1], [0], [0], [1], [0, 0, 1, 1], [], []>} : vector<1x32xbf16>, vector<32x128xbf16>, vector<1x128xf32> -> vector<1x128xf32>
    %cst_195 = arith.constant dense<0.000000e+00> : vector<1x128xf32>
    %535 = tpu.matmul %449, %17, %cst_195 {dimension_numbers = #tpu.dot_dimension_numbers<[1], [0], [0], [1], [0, 0, 1, 1], [], []>} : vector<1x32xbf16>, vector<32x128xbf16>, vector<1x128xf32> -> vector<1x128xf32>
    %536 = arith.addf %534, %535 : vector<1x128xf32>
    %537 = vector.extract_strided_slice %536 {offsets = [0, 0], sizes = [1, 32], strides = [1, 1]} : vector<1x128xf32> to vector<1x32xf32>
    %538 = arith.addf %537, %29 : vector<1x32xf32>
    %539 = arith.negf %523 : vector<1x32xf32>
    %540 = math.exp %539 : vector<1x32xf32>
    %cst_196 = arith.constant 1.000000e+00 : f32
    %541 = vector.broadcast %cst_196 : f32 to vector<1x32xf32>
    %542 = arith.addf %541, %540 : vector<1x32xf32>
    %543 = arith.divf %541, %542 : vector<1x32xf32>
    %544 = arith.negf %528 : vector<1x32xf32>
    %545 = math.exp %544 : vector<1x32xf32>
    %cst_197 = arith.constant 1.000000e+00 : f32
    %546 = vector.broadcast %cst_197 : f32 to vector<1x32xf32>
    %547 = arith.addf %546, %545 : vector<1x32xf32>
    %548 = arith.divf %546, %547 : vector<1x32xf32>
    %549 = math.tanh %533 : vector<1x32xf32>
    %550 = arith.negf %538 : vector<1x32xf32>
    %551 = math.exp %550 : vector<1x32xf32>
    %cst_198 = arith.constant 1.000000e+00 : f32
    %552 = vector.broadcast %cst_198 : f32 to vector<1x32xf32>
    %553 = arith.addf %552, %551 : vector<1x32xf32>
    %554 = arith.divf %552, %553 : vector<1x32xf32>
    %555 = arith.mulf %548, %446 : vector<1x32xf32>
    %556 = arith.mulf %543, %549 : vector<1x32xf32>
    %557 = arith.addf %555, %556 : vector<1x32xf32>
    %558 = math.tanh %557 : vector<1x32xf32>
    %559 = arith.mulf %554, %558 : vector<1x32xf32>
    %560 = arith.truncf %559 : vector<1x32xf32> to vector<1x32xbf16>
    %cst_199 = arith.constant dense<0.000000e+00> : vector<1x128xf32>
    %561 = tpu.matmul %560, %10, %cst_199 {dimension_numbers = #tpu.dot_dimension_numbers<[1], [0], [0], [1], [0, 0, 1, 1], [], []>} : vector<1x32xbf16>, vector<32x128xbf16>, vector<1x128xf32> -> vector<1x128xf32>
    %cst_200 = arith.constant dense<0.000000e+00> : vector<1x128xf32>
    %562 = tpu.matmul %491, %18, %cst_200 {dimension_numbers = #tpu.dot_dimension_numbers<[1], [0], [0], [1], [0, 0, 1, 1], [], []>} : vector<1x32xbf16>, vector<32x128xbf16>, vector<1x128xf32> -> vector<1x128xf32>
    %563 = arith.addf %561, %562 : vector<1x128xf32>
    %564 = vector.extract_strided_slice %563 {offsets = [0, 0], sizes = [1, 32], strides = [1, 1]} : vector<1x128xf32> to vector<1x32xf32>
    %565 = arith.addf %564, %30 : vector<1x32xf32>
    %cst_201 = arith.constant dense<0.000000e+00> : vector<1x128xf32>
    %566 = tpu.matmul %560, %11, %cst_201 {dimension_numbers = #tpu.dot_dimension_numbers<[1], [0], [0], [1], [0, 0, 1, 1], [], []>} : vector<1x32xbf16>, vector<32x128xbf16>, vector<1x128xf32> -> vector<1x128xf32>
    %cst_202 = arith.constant dense<0.000000e+00> : vector<1x128xf32>
    %567 = tpu.matmul %491, %19, %cst_202 {dimension_numbers = #tpu.dot_dimension_numbers<[1], [0], [0], [1], [0, 0, 1, 1], [], []>} : vector<1x32xbf16>, vector<32x128xbf16>, vector<1x128xf32> -> vector<1x128xf32>
    %568 = arith.addf %566, %567 : vector<1x128xf32>
    %569 = vector.extract_strided_slice %568 {offsets = [0, 0], sizes = [1, 32], strides = [1, 1]} : vector<1x128xf32> to vector<1x32xf32>
    %570 = arith.addf %569, %31 : vector<1x32xf32>
    %cst_203 = arith.constant dense<0.000000e+00> : vector<1x128xf32>
    %571 = tpu.matmul %560, %12, %cst_203 {dimension_numbers = #tpu.dot_dimension_numbers<[1], [0], [0], [1], [0, 0, 1, 1], [], []>} : vector<1x32xbf16>, vector<32x128xbf16>, vector<1x128xf32> -> vector<1x128xf32>
    %cst_204 = arith.constant dense<0.000000e+00> : vector<1x128xf32>
    %572 = tpu.matmul %491, %20, %cst_204 {dimension_numbers = #tpu.dot_dimension_numbers<[1], [0], [0], [1], [0, 0, 1, 1], [], []>} : vector<1x32xbf16>, vector<32x128xbf16>, vector<1x128xf32> -> vector<1x128xf32>
    %573 = arith.addf %571, %572 : vector<1x128xf32>
    %574 = vector.extract_strided_slice %573 {offsets = [0, 0], sizes = [1, 32], strides = [1, 1]} : vector<1x128xf32> to vector<1x32xf32>
    %575 = arith.addf %574, %32 : vector<1x32xf32>
    %cst_205 = arith.constant dense<0.000000e+00> : vector<1x128xf32>
    %576 = tpu.matmul %560, %13, %cst_205 {dimension_numbers = #tpu.dot_dimension_numbers<[1], [0], [0], [1], [0, 0, 1, 1], [], []>} : vector<1x32xbf16>, vector<32x128xbf16>, vector<1x128xf32> -> vector<1x128xf32>
    %cst_206 = arith.constant dense<0.000000e+00> : vector<1x128xf32>
    %577 = tpu.matmul %491, %21, %cst_206 {dimension_numbers = #tpu.dot_dimension_numbers<[1], [0], [0], [1], [0, 0, 1, 1], [], []>} : vector<1x32xbf16>, vector<32x128xbf16>, vector<1x128xf32> -> vector<1x128xf32>
    %578 = arith.addf %576, %577 : vector<1x128xf32>
    %579 = vector.extract_strided_slice %578 {offsets = [0, 0], sizes = [1, 32], strides = [1, 1]} : vector<1x128xf32> to vector<1x32xf32>
    %580 = arith.addf %579, %33 : vector<1x32xf32>
    %581 = arith.negf %565 : vector<1x32xf32>
    %582 = math.exp %581 : vector<1x32xf32>
    %cst_207 = arith.constant 1.000000e+00 : f32
    %583 = vector.broadcast %cst_207 : f32 to vector<1x32xf32>
    %584 = arith.addf %583, %582 : vector<1x32xf32>
    %585 = arith.divf %583, %584 : vector<1x32xf32>
    %586 = arith.negf %570 : vector<1x32xf32>
    %587 = math.exp %586 : vector<1x32xf32>
    %cst_208 = arith.constant 1.000000e+00 : f32
    %588 = vector.broadcast %cst_208 : f32 to vector<1x32xf32>
    %589 = arith.addf %588, %587 : vector<1x32xf32>
    %590 = arith.divf %588, %589 : vector<1x32xf32>
    %591 = math.tanh %575 : vector<1x32xf32>
    %592 = arith.negf %580 : vector<1x32xf32>
    %593 = math.exp %592 : vector<1x32xf32>
    %cst_209 = arith.constant 1.000000e+00 : f32
    %594 = vector.broadcast %cst_209 : f32 to vector<1x32xf32>
    %595 = arith.addf %594, %593 : vector<1x32xf32>
    %596 = arith.divf %594, %595 : vector<1x32xf32>
    %597 = arith.mulf %590, %488 : vector<1x32xf32>
    %598 = arith.mulf %585, %591 : vector<1x32xf32>
    %599 = arith.addf %597, %598 : vector<1x32xf32>
    %600 = math.tanh %599 : vector<1x32xf32>
    %601 = arith.mulf %596, %600 : vector<1x32xf32>
    %602 = arith.truncf %601 : vector<1x32xf32> to vector<1x32xbf16>
    %c4_210 = arith.constant 4 : index
    %c0_211 = arith.constant 0 : index
    %603 = vector.load %arg6[%c4_210, %c0_211] : memref<8x128xf32, #tpu.memory_space<vmem>>, vector<1x32xf32>
    tpu.vector_store %arg6[%c4_210, %c0_211], %601 {strides = array<i32>} : memref<8x128xf32, #tpu.memory_space<vmem>>, vector<1x32xf32>,
    %cst_212 = arith.constant dense<0.000000e+00> : vector<1x128xf32>
    %604 = tpu.matmul %602, %2, %cst_212 {dimension_numbers = #tpu.dot_dimension_numbers<[1], [0], [0], [1], [0, 0, 1, 1], [], []>} : vector<1x32xbf16>, vector<32x128xbf16>, vector<1x128xf32> -> vector<1x128xf32>
    %cst_213 = arith.constant dense<0.000000e+00> : vector<1x128xf32>
    %605 = tpu.matmul %560, %3, %cst_213 {dimension_numbers = #tpu.dot_dimension_numbers<[1], [0], [0], [1], [0, 0, 1, 1], [], []>} : vector<1x32xbf16>, vector<32x128xbf16>, vector<1x128xf32> -> vector<1x128xf32>
    %606 = arith.addf %604, %605 : vector<1x128xf32>
    %607 = vector.extract_strided_slice %606 {offsets = [0, 0], sizes = [1, 8], strides = [1, 1]} : vector<1x128xf32> to vector<1x8xf32>
    %608 = arith.addf %607, %24 : vector<1x8xf32>
    %cst_214 = arith.constant dense<0xFF800000> : vector<1xf32>
    %609 = vector.multi_reduction <maximumf>, %608, %cst_214 [1] : vector<1x8xf32> to vector<1xf32>
    %610 = vector.shape_cast %609 : vector<1xf32> to vector<1x1xf32>
    %611 = vector.broadcast %610 : vector<1x1xf32> to vector<1x8xf32>
    %612 = arith.subf %608, %611 : vector<1x8xf32>
    %613 = math.exp %612 : vector<1x8xf32>
    %cst_215 = arith.constant dense<0.000000e+00> : vector<1xf32>
    %614 = vector.multi_reduction <add>, %613, %cst_215 [1] : vector<1x8xf32> to vector<1xf32>
    %615 = vector.shape_cast %614 : vector<1xf32> to vector<1x1xf32>
    %616 = tpu.reciprocal %615 {approx = true} : vector<1x1xf32> -> vector<1x1xf32>
    %617 = arith.truncf %613 : vector<1x8xf32> to vector<1x8xbf16>
    %cst_216 = arith.constant dense<0.000000e+00> : vector<1x32xf32>
    %618 = tpu.matmul %617, %1, %cst_216 {dimension_numbers = #tpu.dot_dimension_numbers<[1], [0], [0], [1], [0, 0, 1, 1], [], []>} : vector<1x8xbf16>, vector<8x32xbf16>, vector<1x32xf32> -> vector<1x32xf32>
    %619 = vector.broadcast %616 : vector<1x1xf32> to vector<1x32xf32>
    %620 = arith.mulf %618, %619 : vector<1x32xf32>
    %621 = arith.truncf %620 : vector<1x32xf32> to vector<1x32xbf16>
    %cst_217 = arith.constant dense<0.000000e+00> : vector<1x128xf32>
    %622 = tpu.matmul %602, %4, %cst_217 {dimension_numbers = #tpu.dot_dimension_numbers<[1], [0], [0], [1], [0, 0, 1, 1], [], []>} : vector<1x32xbf16>, vector<32x128xbf16>, vector<1x128xf32> -> vector<1x128xf32>
    %cst_218 = arith.constant dense<0.000000e+00> : vector<1x128xf32>
    %623 = tpu.matmul %621, %5, %cst_218 {dimension_numbers = #tpu.dot_dimension_numbers<[1], [0], [0], [1], [0, 0, 1, 1], [], []>} : vector<1x32xbf16>, vector<32x128xbf16>, vector<1x128xf32> -> vector<1x128xf32>
    %624 = arith.addf %622, %623 : vector<1x128xf32>
    %625 = vector.extract_strided_slice %624 {offsets = [0, 0], sizes = [1, 32], strides = [1, 1]} : vector<1x128xf32> to vector<1x32xf32>
    %626 = arith.addf %625, %25 : vector<1x32xf32>
    %cst_219 = arith.constant 0.000000e+00 : f32
    %627 = vector.broadcast %cst_219 : f32 to vector<1x32xf32>
    %628 = arith.maximumf %626, %627 : vector<1x32xf32>
    %629 = arith.truncf %628 : vector<1x32xf32> to vector<1x32xbf16>
    %cst_220 = arith.constant dense<0.000000e+00> : vector<1x128xf32>
    %630 = tpu.matmul %629, %6, %cst_220 {dimension_numbers = #tpu.dot_dimension_numbers<[1], [0], [0], [1], [0, 0, 1, 1], [], []>} : vector<1x32xbf16>, vector<32x128xbf16>, vector<1x128xf32> -> vector<1x128xf32>
    %cst_221 = arith.constant dense<0.000000e+00> : vector<1x128xf32>
    %631 = tpu.matmul %560, %14, %cst_221 {dimension_numbers = #tpu.dot_dimension_numbers<[1], [0], [0], [1], [0, 0, 1, 1], [], []>} : vector<1x32xbf16>, vector<32x128xbf16>, vector<1x128xf32> -> vector<1x128xf32>
    %632 = arith.addf %630, %631 : vector<1x128xf32>
    %633 = vector.extract_strided_slice %632 {offsets = [0, 0], sizes = [1, 32], strides = [1, 1]} : vector<1x128xf32> to vector<1x32xf32>
    %634 = arith.addf %633, %26 : vector<1x32xf32>
    %cst_222 = arith.constant dense<0.000000e+00> : vector<1x128xf32>
    %635 = tpu.matmul %629, %7, %cst_222 {dimension_numbers = #tpu.dot_dimension_numbers<[1], [0], [0], [1], [0, 0, 1, 1], [], []>} : vector<1x32xbf16>, vector<32x128xbf16>, vector<1x128xf32> -> vector<1x128xf32>
    %cst_223 = arith.constant dense<0.000000e+00> : vector<1x128xf32>
    %636 = tpu.matmul %560, %15, %cst_223 {dimension_numbers = #tpu.dot_dimension_numbers<[1], [0], [0], [1], [0, 0, 1, 1], [], []>} : vector<1x32xbf16>, vector<32x128xbf16>, vector<1x128xf32> -> vector<1x128xf32>
    %637 = arith.addf %635, %636 : vector<1x128xf32>
    %638 = vector.extract_strided_slice %637 {offsets = [0, 0], sizes = [1, 32], strides = [1, 1]} : vector<1x128xf32> to vector<1x32xf32>
    %639 = arith.addf %638, %27 : vector<1x32xf32>
    %cst_224 = arith.constant dense<0.000000e+00> : vector<1x128xf32>
    %640 = tpu.matmul %629, %8, %cst_224 {dimension_numbers = #tpu.dot_dimension_numbers<[1], [0], [0], [1], [0, 0, 1, 1], [], []>} : vector<1x32xbf16>, vector<32x128xbf16>, vector<1x128xf32> -> vector<1x128xf32>
    %cst_225 = arith.constant dense<0.000000e+00> : vector<1x128xf32>
    %641 = tpu.matmul %560, %16, %cst_225 {dimension_numbers = #tpu.dot_dimension_numbers<[1], [0], [0], [1], [0, 0, 1, 1], [], []>} : vector<1x32xbf16>, vector<32x128xbf16>, vector<1x128xf32> -> vector<1x128xf32>
    %642 = arith.addf %640, %641 : vector<1x128xf32>
    %643 = vector.extract_strided_slice %642 {offsets = [0, 0], sizes = [1, 32], strides = [1, 1]} : vector<1x128xf32> to vector<1x32xf32>
    %644 = arith.addf %643, %28 : vector<1x32xf32>
    %cst_226 = arith.constant dense<0.000000e+00> : vector<1x128xf32>
    %645 = tpu.matmul %629, %9, %cst_226 {dimension_numbers = #tpu.dot_dimension_numbers<[1], [0], [0], [1], [0, 0, 1, 1], [], []>} : vector<1x32xbf16>, vector<32x128xbf16>, vector<1x128xf32> -> vector<1x128xf32>
    %cst_227 = arith.constant dense<0.000000e+00> : vector<1x128xf32>
    %646 = tpu.matmul %560, %17, %cst_227 {dimension_numbers = #tpu.dot_dimension_numbers<[1], [0], [0], [1], [0, 0, 1, 1], [], []>} : vector<1x32xbf16>, vector<32x128xbf16>, vector<1x128xf32> -> vector<1x128xf32>
    %647 = arith.addf %645, %646 : vector<1x128xf32>
    %648 = vector.extract_strided_slice %647 {offsets = [0, 0], sizes = [1, 32], strides = [1, 1]} : vector<1x128xf32> to vector<1x32xf32>
    %649 = arith.addf %648, %29 : vector<1x32xf32>
    %650 = arith.negf %634 : vector<1x32xf32>
    %651 = math.exp %650 : vector<1x32xf32>
    %cst_228 = arith.constant 1.000000e+00 : f32
    %652 = vector.broadcast %cst_228 : f32 to vector<1x32xf32>
    %653 = arith.addf %652, %651 : vector<1x32xf32>
    %654 = arith.divf %652, %653 : vector<1x32xf32>
    %655 = arith.negf %639 : vector<1x32xf32>
    %656 = math.exp %655 : vector<1x32xf32>
    %cst_229 = arith.constant 1.000000e+00 : f32
    %657 = vector.broadcast %cst_229 : f32 to vector<1x32xf32>
    %658 = arith.addf %657, %656 : vector<1x32xf32>
    %659 = arith.divf %657, %658 : vector<1x32xf32>
    %660 = math.tanh %644 : vector<1x32xf32>
    %661 = arith.negf %649 : vector<1x32xf32>
    %662 = math.exp %661 : vector<1x32xf32>
    %cst_230 = arith.constant 1.000000e+00 : f32
    %663 = vector.broadcast %cst_230 : f32 to vector<1x32xf32>
    %664 = arith.addf %663, %662 : vector<1x32xf32>
    %665 = arith.divf %663, %664 : vector<1x32xf32>
    %666 = arith.mulf %659, %557 : vector<1x32xf32>
    %667 = arith.mulf %654, %660 : vector<1x32xf32>
    %668 = arith.addf %666, %667 : vector<1x32xf32>
    %669 = math.tanh %668 : vector<1x32xf32>
    %670 = arith.mulf %665, %669 : vector<1x32xf32>
    %671 = arith.truncf %670 : vector<1x32xf32> to vector<1x32xbf16>
    %cst_231 = arith.constant dense<0.000000e+00> : vector<1x128xf32>
    %672 = tpu.matmul %671, %10, %cst_231 {dimension_numbers = #tpu.dot_dimension_numbers<[1], [0], [0], [1], [0, 0, 1, 1], [], []>} : vector<1x32xbf16>, vector<32x128xbf16>, vector<1x128xf32> -> vector<1x128xf32>
    %cst_232 = arith.constant dense<0.000000e+00> : vector<1x128xf32>
    %673 = tpu.matmul %602, %18, %cst_232 {dimension_numbers = #tpu.dot_dimension_numbers<[1], [0], [0], [1], [0, 0, 1, 1], [], []>} : vector<1x32xbf16>, vector<32x128xbf16>, vector<1x128xf32> -> vector<1x128xf32>
    %674 = arith.addf %672, %673 : vector<1x128xf32>
    %675 = vector.extract_strided_slice %674 {offsets = [0, 0], sizes = [1, 32], strides = [1, 1]} : vector<1x128xf32> to vector<1x32xf32>
    %676 = arith.addf %675, %30 : vector<1x32xf32>
    %cst_233 = arith.constant dense<0.000000e+00> : vector<1x128xf32>
    %677 = tpu.matmul %671, %11, %cst_233 {dimension_numbers = #tpu.dot_dimension_numbers<[1], [0], [0], [1], [0, 0, 1, 1], [], []>} : vector<1x32xbf16>, vector<32x128xbf16>, vector<1x128xf32> -> vector<1x128xf32>
    %cst_234 = arith.constant dense<0.000000e+00> : vector<1x128xf32>
    %678 = tpu.matmul %602, %19, %cst_234 {dimension_numbers = #tpu.dot_dimension_numbers<[1], [0], [0], [1], [0, 0, 1, 1], [], []>} : vector<1x32xbf16>, vector<32x128xbf16>, vector<1x128xf32> -> vector<1x128xf32>
    %679 = arith.addf %677, %678 : vector<1x128xf32>
    %680 = vector.extract_strided_slice %679 {offsets = [0, 0], sizes = [1, 32], strides = [1, 1]} : vector<1x128xf32> to vector<1x32xf32>
    %681 = arith.addf %680, %31 : vector<1x32xf32>
    %cst_235 = arith.constant dense<0.000000e+00> : vector<1x128xf32>
    %682 = tpu.matmul %671, %12, %cst_235 {dimension_numbers = #tpu.dot_dimension_numbers<[1], [0], [0], [1], [0, 0, 1, 1], [], []>} : vector<1x32xbf16>, vector<32x128xbf16>, vector<1x128xf32> -> vector<1x128xf32>
    %cst_236 = arith.constant dense<0.000000e+00> : vector<1x128xf32>
    %683 = tpu.matmul %602, %20, %cst_236 {dimension_numbers = #tpu.dot_dimension_numbers<[1], [0], [0], [1], [0, 0, 1, 1], [], []>} : vector<1x32xbf16>, vector<32x128xbf16>, vector<1x128xf32> -> vector<1x128xf32>
    %684 = arith.addf %682, %683 : vector<1x128xf32>
    %685 = vector.extract_strided_slice %684 {offsets = [0, 0], sizes = [1, 32], strides = [1, 1]} : vector<1x128xf32> to vector<1x32xf32>
    %686 = arith.addf %685, %32 : vector<1x32xf32>
    %cst_237 = arith.constant dense<0.000000e+00> : vector<1x128xf32>
    %687 = tpu.matmul %671, %13, %cst_237 {dimension_numbers = #tpu.dot_dimension_numbers<[1], [0], [0], [1], [0, 0, 1, 1], [], []>} : vector<1x32xbf16>, vector<32x128xbf16>, vector<1x128xf32> -> vector<1x128xf32>
    %cst_238 = arith.constant dense<0.000000e+00> : vector<1x128xf32>
    %688 = tpu.matmul %602, %21, %cst_238 {dimension_numbers = #tpu.dot_dimension_numbers<[1], [0], [0], [1], [0, 0, 1, 1], [], []>} : vector<1x32xbf16>, vector<32x128xbf16>, vector<1x128xf32> -> vector<1x128xf32>
    %689 = arith.addf %687, %688 : vector<1x128xf32>
    %690 = vector.extract_strided_slice %689 {offsets = [0, 0], sizes = [1, 32], strides = [1, 1]} : vector<1x128xf32> to vector<1x32xf32>
    %691 = arith.addf %690, %33 : vector<1x32xf32>
    %692 = arith.negf %676 : vector<1x32xf32>
    %693 = math.exp %692 : vector<1x32xf32>
    %cst_239 = arith.constant 1.000000e+00 : f32
    %694 = vector.broadcast %cst_239 : f32 to vector<1x32xf32>
    %695 = arith.addf %694, %693 : vector<1x32xf32>
    %696 = arith.divf %694, %695 : vector<1x32xf32>
    %697 = arith.negf %681 : vector<1x32xf32>
    %698 = math.exp %697 : vector<1x32xf32>
    %cst_240 = arith.constant 1.000000e+00 : f32
    %699 = vector.broadcast %cst_240 : f32 to vector<1x32xf32>
    %700 = arith.addf %699, %698 : vector<1x32xf32>
    %701 = arith.divf %699, %700 : vector<1x32xf32>
    %702 = math.tanh %686 : vector<1x32xf32>
    %703 = arith.negf %691 : vector<1x32xf32>
    %704 = math.exp %703 : vector<1x32xf32>
    %cst_241 = arith.constant 1.000000e+00 : f32
    %705 = vector.broadcast %cst_241 : f32 to vector<1x32xf32>
    %706 = arith.addf %705, %704 : vector<1x32xf32>
    %707 = arith.divf %705, %706 : vector<1x32xf32>
    %708 = arith.mulf %701, %599 : vector<1x32xf32>
    %709 = arith.mulf %696, %702 : vector<1x32xf32>
    %710 = arith.addf %708, %709 : vector<1x32xf32>
    %711 = math.tanh %710 : vector<1x32xf32>
    %712 = arith.mulf %707, %711 : vector<1x32xf32>
    %713 = arith.truncf %712 : vector<1x32xf32> to vector<1x32xbf16>
    %c5_242 = arith.constant 5 : index
    %c0_243 = arith.constant 0 : index
    %714 = vector.load %arg6[%c5_242, %c0_243] : memref<8x128xf32, #tpu.memory_space<vmem>>, vector<1x32xf32>
    tpu.vector_store %arg6[%c5_242, %c0_243], %712 {strides = array<i32>} : memref<8x128xf32, #tpu.memory_space<vmem>>, vector<1x32xf32>,
    %cst_244 = arith.constant dense<0.000000e+00> : vector<1x128xf32>
    %715 = tpu.matmul %713, %2, %cst_244 {dimension_numbers = #tpu.dot_dimension_numbers<[1], [0], [0], [1], [0, 0, 1, 1], [], []>} : vector<1x32xbf16>, vector<32x128xbf16>, vector<1x128xf32> -> vector<1x128xf32>
    %cst_245 = arith.constant dense<0.000000e+00> : vector<1x128xf32>
    %716 = tpu.matmul %671, %3, %cst_245 {dimension_numbers = #tpu.dot_dimension_numbers<[1], [0], [0], [1], [0, 0, 1, 1], [], []>} : vector<1x32xbf16>, vector<32x128xbf16>, vector<1x128xf32> -> vector<1x128xf32>
    %717 = arith.addf %715, %716 : vector<1x128xf32>
    %718 = vector.extract_strided_slice %717 {offsets = [0, 0], sizes = [1, 8], strides = [1, 1]} : vector<1x128xf32> to vector<1x8xf32>
    %719 = arith.addf %718, %24 : vector<1x8xf32>
    %cst_246 = arith.constant dense<0xFF800000> : vector<1xf32>
    %720 = vector.multi_reduction <maximumf>, %719, %cst_246 [1] : vector<1x8xf32> to vector<1xf32>
    %721 = vector.shape_cast %720 : vector<1xf32> to vector<1x1xf32>
    %722 = vector.broadcast %721 : vector<1x1xf32> to vector<1x8xf32>
    %723 = arith.subf %719, %722 : vector<1x8xf32>
    %724 = math.exp %723 : vector<1x8xf32>
    %cst_247 = arith.constant dense<0.000000e+00> : vector<1xf32>
    %725 = vector.multi_reduction <add>, %724, %cst_247 [1] : vector<1x8xf32> to vector<1xf32>
    %726 = vector.shape_cast %725 : vector<1xf32> to vector<1x1xf32>
    %727 = tpu.reciprocal %726 {approx = true} : vector<1x1xf32> -> vector<1x1xf32>
    %728 = arith.truncf %724 : vector<1x8xf32> to vector<1x8xbf16>
    %cst_248 = arith.constant dense<0.000000e+00> : vector<1x32xf32>
    %729 = tpu.matmul %728, %1, %cst_248 {dimension_numbers = #tpu.dot_dimension_numbers<[1], [0], [0], [1], [0, 0, 1, 1], [], []>} : vector<1x8xbf16>, vector<8x32xbf16>, vector<1x32xf32> -> vector<1x32xf32>
    %730 = vector.broadcast %727 : vector<1x1xf32> to vector<1x32xf32>
    %731 = arith.mulf %729, %730 : vector<1x32xf32>
    %732 = arith.truncf %731 : vector<1x32xf32> to vector<1x32xbf16>
    %cst_249 = arith.constant dense<0.000000e+00> : vector<1x128xf32>
    %733 = tpu.matmul %713, %4, %cst_249 {dimension_numbers = #tpu.dot_dimension_numbers<[1], [0], [0], [1], [0, 0, 1, 1], [], []>} : vector<1x32xbf16>, vector<32x128xbf16>, vector<1x128xf32> -> vector<1x128xf32>
    %cst_250 = arith.constant dense<0.000000e+00> : vector<1x128xf32>
    %734 = tpu.matmul %732, %5, %cst_250 {dimension_numbers = #tpu.dot_dimension_numbers<[1], [0], [0], [1], [0, 0, 1, 1], [], []>} : vector<1x32xbf16>, vector<32x128xbf16>, vector<1x128xf32> -> vector<1x128xf32>
    %735 = arith.addf %733, %734 : vector<1x128xf32>
    %736 = vector.extract_strided_slice %735 {offsets = [0, 0], sizes = [1, 32], strides = [1, 1]} : vector<1x128xf32> to vector<1x32xf32>
    %737 = arith.addf %736, %25 : vector<1x32xf32>
    %cst_251 = arith.constant 0.000000e+00 : f32
    %738 = vector.broadcast %cst_251 : f32 to vector<1x32xf32>
    %739 = arith.maximumf %737, %738 : vector<1x32xf32>
    %740 = arith.truncf %739 : vector<1x32xf32> to vector<1x32xbf16>
    %cst_252 = arith.constant dense<0.000000e+00> : vector<1x128xf32>
    %741 = tpu.matmul %740, %6, %cst_252 {dimension_numbers = #tpu.dot_dimension_numbers<[1], [0], [0], [1], [0, 0, 1, 1], [], []>} : vector<1x32xbf16>, vector<32x128xbf16>, vector<1x128xf32> -> vector<1x128xf32>
    %cst_253 = arith.constant dense<0.000000e+00> : vector<1x128xf32>
    %742 = tpu.matmul %671, %14, %cst_253 {dimension_numbers = #tpu.dot_dimension_numbers<[1], [0], [0], [1], [0, 0, 1, 1], [], []>} : vector<1x32xbf16>, vector<32x128xbf16>, vector<1x128xf32> -> vector<1x128xf32>
    %743 = arith.addf %741, %742 : vector<1x128xf32>
    %744 = vector.extract_strided_slice %743 {offsets = [0, 0], sizes = [1, 32], strides = [1, 1]} : vector<1x128xf32> to vector<1x32xf32>
    %745 = arith.addf %744, %26 : vector<1x32xf32>
    %cst_254 = arith.constant dense<0.000000e+00> : vector<1x128xf32>
    %746 = tpu.matmul %740, %7, %cst_254 {dimension_numbers = #tpu.dot_dimension_numbers<[1], [0], [0], [1], [0, 0, 1, 1], [], []>} : vector<1x32xbf16>, vector<32x128xbf16>, vector<1x128xf32> -> vector<1x128xf32>
    %cst_255 = arith.constant dense<0.000000e+00> : vector<1x128xf32>
    %747 = tpu.matmul %671, %15, %cst_255 {dimension_numbers = #tpu.dot_dimension_numbers<[1], [0], [0], [1], [0, 0, 1, 1], [], []>} : vector<1x32xbf16>, vector<32x128xbf16>, vector<1x128xf32> -> vector<1x128xf32>
    %748 = arith.addf %746, %747 : vector<1x128xf32>
    %749 = vector.extract_strided_slice %748 {offsets = [0, 0], sizes = [1, 32], strides = [1, 1]} : vector<1x128xf32> to vector<1x32xf32>
    %750 = arith.addf %749, %27 : vector<1x32xf32>
    %cst_256 = arith.constant dense<0.000000e+00> : vector<1x128xf32>
    %751 = tpu.matmul %740, %8, %cst_256 {dimension_numbers = #tpu.dot_dimension_numbers<[1], [0], [0], [1], [0, 0, 1, 1], [], []>} : vector<1x32xbf16>, vector<32x128xbf16>, vector<1x128xf32> -> vector<1x128xf32>
    %cst_257 = arith.constant dense<0.000000e+00> : vector<1x128xf32>
    %752 = tpu.matmul %671, %16, %cst_257 {dimension_numbers = #tpu.dot_dimension_numbers<[1], [0], [0], [1], [0, 0, 1, 1], [], []>} : vector<1x32xbf16>, vector<32x128xbf16>, vector<1x128xf32> -> vector<1x128xf32>
    %753 = arith.addf %751, %752 : vector<1x128xf32>
    %754 = vector.extract_strided_slice %753 {offsets = [0, 0], sizes = [1, 32], strides = [1, 1]} : vector<1x128xf32> to vector<1x32xf32>
    %755 = arith.addf %754, %28 : vector<1x32xf32>
    %cst_258 = arith.constant dense<0.000000e+00> : vector<1x128xf32>
    %756 = tpu.matmul %740, %9, %cst_258 {dimension_numbers = #tpu.dot_dimension_numbers<[1], [0], [0], [1], [0, 0, 1, 1], [], []>} : vector<1x32xbf16>, vector<32x128xbf16>, vector<1x128xf32> -> vector<1x128xf32>
    %cst_259 = arith.constant dense<0.000000e+00> : vector<1x128xf32>
    %757 = tpu.matmul %671, %17, %cst_259 {dimension_numbers = #tpu.dot_dimension_numbers<[1], [0], [0], [1], [0, 0, 1, 1], [], []>} : vector<1x32xbf16>, vector<32x128xbf16>, vector<1x128xf32> -> vector<1x128xf32>
    %758 = arith.addf %756, %757 : vector<1x128xf32>
    %759 = vector.extract_strided_slice %758 {offsets = [0, 0], sizes = [1, 32], strides = [1, 1]} : vector<1x128xf32> to vector<1x32xf32>
    %760 = arith.addf %759, %29 : vector<1x32xf32>
    %761 = arith.negf %745 : vector<1x32xf32>
    %762 = math.exp %761 : vector<1x32xf32>
    %cst_260 = arith.constant 1.000000e+00 : f32
    %763 = vector.broadcast %cst_260 : f32 to vector<1x32xf32>
    %764 = arith.addf %763, %762 : vector<1x32xf32>
    %765 = arith.divf %763, %764 : vector<1x32xf32>
    %766 = arith.negf %750 : vector<1x32xf32>
    %767 = math.exp %766 : vector<1x32xf32>
    %cst_261 = arith.constant 1.000000e+00 : f32
    %768 = vector.broadcast %cst_261 : f32 to vector<1x32xf32>
    %769 = arith.addf %768, %767 : vector<1x32xf32>
    %770 = arith.divf %768, %769 : vector<1x32xf32>
    %771 = math.tanh %755 : vector<1x32xf32>
    %772 = arith.negf %760 : vector<1x32xf32>
    %773 = math.exp %772 : vector<1x32xf32>
    %cst_262 = arith.constant 1.000000e+00 : f32
    %774 = vector.broadcast %cst_262 : f32 to vector<1x32xf32>
    %775 = arith.addf %774, %773 : vector<1x32xf32>
    %776 = arith.divf %774, %775 : vector<1x32xf32>
    %777 = arith.mulf %770, %668 : vector<1x32xf32>
    %778 = arith.mulf %765, %771 : vector<1x32xf32>
    %779 = arith.addf %777, %778 : vector<1x32xf32>
    %780 = math.tanh %779 : vector<1x32xf32>
    %781 = arith.mulf %776, %780 : vector<1x32xf32>
    %782 = arith.truncf %781 : vector<1x32xf32> to vector<1x32xbf16>
    %cst_263 = arith.constant dense<0.000000e+00> : vector<1x128xf32>
    %783 = tpu.matmul %782, %10, %cst_263 {dimension_numbers = #tpu.dot_dimension_numbers<[1], [0], [0], [1], [0, 0, 1, 1], [], []>} : vector<1x32xbf16>, vector<32x128xbf16>, vector<1x128xf32> -> vector<1x128xf32>
    %cst_264 = arith.constant dense<0.000000e+00> : vector<1x128xf32>
    %784 = tpu.matmul %713, %18, %cst_264 {dimension_numbers = #tpu.dot_dimension_numbers<[1], [0], [0], [1], [0, 0, 1, 1], [], []>} : vector<1x32xbf16>, vector<32x128xbf16>, vector<1x128xf32> -> vector<1x128xf32>
    %785 = arith.addf %783, %784 : vector<1x128xf32>
    %786 = vector.extract_strided_slice %785 {offsets = [0, 0], sizes = [1, 32], strides = [1, 1]} : vector<1x128xf32> to vector<1x32xf32>
    %787 = arith.addf %786, %30 : vector<1x32xf32>
    %cst_265 = arith.constant dense<0.000000e+00> : vector<1x128xf32>
    %788 = tpu.matmul %782, %11, %cst_265 {dimension_numbers = #tpu.dot_dimension_numbers<[1], [0], [0], [1], [0, 0, 1, 1], [], []>} : vector<1x32xbf16>, vector<32x128xbf16>, vector<1x128xf32> -> vector<1x128xf32>
    %cst_266 = arith.constant dense<0.000000e+00> : vector<1x128xf32>
    %789 = tpu.matmul %713, %19, %cst_266 {dimension_numbers = #tpu.dot_dimension_numbers<[1], [0], [0], [1], [0, 0, 1, 1], [], []>} : vector<1x32xbf16>, vector<32x128xbf16>, vector<1x128xf32> -> vector<1x128xf32>
    %790 = arith.addf %788, %789 : vector<1x128xf32>
    %791 = vector.extract_strided_slice %790 {offsets = [0, 0], sizes = [1, 32], strides = [1, 1]} : vector<1x128xf32> to vector<1x32xf32>
    %792 = arith.addf %791, %31 : vector<1x32xf32>
    %cst_267 = arith.constant dense<0.000000e+00> : vector<1x128xf32>
    %793 = tpu.matmul %782, %12, %cst_267 {dimension_numbers = #tpu.dot_dimension_numbers<[1], [0], [0], [1], [0, 0, 1, 1], [], []>} : vector<1x32xbf16>, vector<32x128xbf16>, vector<1x128xf32> -> vector<1x128xf32>
    %cst_268 = arith.constant dense<0.000000e+00> : vector<1x128xf32>
    %794 = tpu.matmul %713, %20, %cst_268 {dimension_numbers = #tpu.dot_dimension_numbers<[1], [0], [0], [1], [0, 0, 1, 1], [], []>} : vector<1x32xbf16>, vector<32x128xbf16>, vector<1x128xf32> -> vector<1x128xf32>
    %795 = arith.addf %793, %794 : vector<1x128xf32>
    %796 = vector.extract_strided_slice %795 {offsets = [0, 0], sizes = [1, 32], strides = [1, 1]} : vector<1x128xf32> to vector<1x32xf32>
    %797 = arith.addf %796, %32 : vector<1x32xf32>
    %cst_269 = arith.constant dense<0.000000e+00> : vector<1x128xf32>
    %798 = tpu.matmul %782, %13, %cst_269 {dimension_numbers = #tpu.dot_dimension_numbers<[1], [0], [0], [1], [0, 0, 1, 1], [], []>} : vector<1x32xbf16>, vector<32x128xbf16>, vector<1x128xf32> -> vector<1x128xf32>
    %cst_270 = arith.constant dense<0.000000e+00> : vector<1x128xf32>
    %799 = tpu.matmul %713, %21, %cst_270 {dimension_numbers = #tpu.dot_dimension_numbers<[1], [0], [0], [1], [0, 0, 1, 1], [], []>} : vector<1x32xbf16>, vector<32x128xbf16>, vector<1x128xf32> -> vector<1x128xf32>
    %800 = arith.addf %798, %799 : vector<1x128xf32>
    %801 = vector.extract_strided_slice %800 {offsets = [0, 0], sizes = [1, 32], strides = [1, 1]} : vector<1x128xf32> to vector<1x32xf32>
    %802 = arith.addf %801, %33 : vector<1x32xf32>
    %803 = arith.negf %787 : vector<1x32xf32>
    %804 = math.exp %803 : vector<1x32xf32>
    %cst_271 = arith.constant 1.000000e+00 : f32
    %805 = vector.broadcast %cst_271 : f32 to vector<1x32xf32>
    %806 = arith.addf %805, %804 : vector<1x32xf32>
    %807 = arith.divf %805, %806 : vector<1x32xf32>
    %808 = arith.negf %792 : vector<1x32xf32>
    %809 = math.exp %808 : vector<1x32xf32>
    %cst_272 = arith.constant 1.000000e+00 : f32
    %810 = vector.broadcast %cst_272 : f32 to vector<1x32xf32>
    %811 = arith.addf %810, %809 : vector<1x32xf32>
    %812 = arith.divf %810, %811 : vector<1x32xf32>
    %813 = math.tanh %797 : vector<1x32xf32>
    %814 = arith.negf %802 : vector<1x32xf32>
    %815 = math.exp %814 : vector<1x32xf32>
    %cst_273 = arith.constant 1.000000e+00 : f32
    %816 = vector.broadcast %cst_273 : f32 to vector<1x32xf32>
    %817 = arith.addf %816, %815 : vector<1x32xf32>
    %818 = arith.divf %816, %817 : vector<1x32xf32>
    %819 = arith.mulf %812, %710 : vector<1x32xf32>
    %820 = arith.mulf %807, %813 : vector<1x32xf32>
    %821 = arith.addf %819, %820 : vector<1x32xf32>
    %822 = math.tanh %821 : vector<1x32xf32>
    %823 = arith.mulf %818, %822 : vector<1x32xf32>
    %824 = arith.truncf %823 : vector<1x32xf32> to vector<1x32xbf16>
    %c6_274 = arith.constant 6 : index
    %c0_275 = arith.constant 0 : index
    %825 = vector.load %arg6[%c6_274, %c0_275] : memref<8x128xf32, #tpu.memory_space<vmem>>, vector<1x32xf32>
    tpu.vector_store %arg6[%c6_274, %c0_275], %823 {strides = array<i32>} : memref<8x128xf32, #tpu.memory_space<vmem>>, vector<1x32xf32>,
    %cst_276 = arith.constant dense<0.000000e+00> : vector<1x128xf32>
    %826 = tpu.matmul %824, %2, %cst_276 {dimension_numbers = #tpu.dot_dimension_numbers<[1], [0], [0], [1], [0, 0, 1, 1], [], []>} : vector<1x32xbf16>, vector<32x128xbf16>, vector<1x128xf32> -> vector<1x128xf32>
    %cst_277 = arith.constant dense<0.000000e+00> : vector<1x128xf32>
    %827 = tpu.matmul %782, %3, %cst_277 {dimension_numbers = #tpu.dot_dimension_numbers<[1], [0], [0], [1], [0, 0, 1, 1], [], []>} : vector<1x32xbf16>, vector<32x128xbf16>, vector<1x128xf32> -> vector<1x128xf32>
    %828 = arith.addf %826, %827 : vector<1x128xf32>
    %829 = vector.extract_strided_slice %828 {offsets = [0, 0], sizes = [1, 8], strides = [1, 1]} : vector<1x128xf32> to vector<1x8xf32>
    %830 = arith.addf %829, %24 : vector<1x8xf32>
    %cst_278 = arith.constant dense<0xFF800000> : vector<1xf32>
    %831 = vector.multi_reduction <maximumf>, %830, %cst_278 [1] : vector<1x8xf32> to vector<1xf32>
    %832 = vector.shape_cast %831 : vector<1xf32> to vector<1x1xf32>
    %833 = vector.broadcast %832 : vector<1x1xf32> to vector<1x8xf32>
    %834 = arith.subf %830, %833 : vector<1x8xf32>
    %835 = math.exp %834 : vector<1x8xf32>
    %cst_279 = arith.constant dense<0.000000e+00> : vector<1xf32>
    %836 = vector.multi_reduction <add>, %835, %cst_279 [1] : vector<1x8xf32> to vector<1xf32>
    %837 = vector.shape_cast %836 : vector<1xf32> to vector<1x1xf32>
    %838 = tpu.reciprocal %837 {approx = true} : vector<1x1xf32> -> vector<1x1xf32>
    %839 = arith.truncf %835 : vector<1x8xf32> to vector<1x8xbf16>
    %cst_280 = arith.constant dense<0.000000e+00> : vector<1x32xf32>
    %840 = tpu.matmul %839, %1, %cst_280 {dimension_numbers = #tpu.dot_dimension_numbers<[1], [0], [0], [1], [0, 0, 1, 1], [], []>} : vector<1x8xbf16>, vector<8x32xbf16>, vector<1x32xf32> -> vector<1x32xf32>
    %841 = vector.broadcast %838 : vector<1x1xf32> to vector<1x32xf32>
    %842 = arith.mulf %840, %841 : vector<1x32xf32>
    %843 = arith.truncf %842 : vector<1x32xf32> to vector<1x32xbf16>
    %cst_281 = arith.constant dense<0.000000e+00> : vector<1x128xf32>
    %844 = tpu.matmul %824, %4, %cst_281 {dimension_numbers = #tpu.dot_dimension_numbers<[1], [0], [0], [1], [0, 0, 1, 1], [], []>} : vector<1x32xbf16>, vector<32x128xbf16>, vector<1x128xf32> -> vector<1x128xf32>
    %cst_282 = arith.constant dense<0.000000e+00> : vector<1x128xf32>
    %845 = tpu.matmul %843, %5, %cst_282 {dimension_numbers = #tpu.dot_dimension_numbers<[1], [0], [0], [1], [0, 0, 1, 1], [], []>} : vector<1x32xbf16>, vector<32x128xbf16>, vector<1x128xf32> -> vector<1x128xf32>
    %846 = arith.addf %844, %845 : vector<1x128xf32>
    %847 = vector.extract_strided_slice %846 {offsets = [0, 0], sizes = [1, 32], strides = [1, 1]} : vector<1x128xf32> to vector<1x32xf32>
    %848 = arith.addf %847, %25 : vector<1x32xf32>
    %cst_283 = arith.constant 0.000000e+00 : f32
    %849 = vector.broadcast %cst_283 : f32 to vector<1x32xf32>
    %850 = arith.maximumf %848, %849 : vector<1x32xf32>
    %851 = arith.truncf %850 : vector<1x32xf32> to vector<1x32xbf16>
    %cst_284 = arith.constant dense<0.000000e+00> : vector<1x128xf32>
    %852 = tpu.matmul %851, %6, %cst_284 {dimension_numbers = #tpu.dot_dimension_numbers<[1], [0], [0], [1], [0, 0, 1, 1], [], []>} : vector<1x32xbf16>, vector<32x128xbf16>, vector<1x128xf32> -> vector<1x128xf32>
    %cst_285 = arith.constant dense<0.000000e+00> : vector<1x128xf32>
    %853 = tpu.matmul %782, %14, %cst_285 {dimension_numbers = #tpu.dot_dimension_numbers<[1], [0], [0], [1], [0, 0, 1, 1], [], []>} : vector<1x32xbf16>, vector<32x128xbf16>, vector<1x128xf32> -> vector<1x128xf32>
    %854 = arith.addf %852, %853 : vector<1x128xf32>
    %855 = vector.extract_strided_slice %854 {offsets = [0, 0], sizes = [1, 32], strides = [1, 1]} : vector<1x128xf32> to vector<1x32xf32>
    %856 = arith.addf %855, %26 : vector<1x32xf32>
    %cst_286 = arith.constant dense<0.000000e+00> : vector<1x128xf32>
    %857 = tpu.matmul %851, %7, %cst_286 {dimension_numbers = #tpu.dot_dimension_numbers<[1], [0], [0], [1], [0, 0, 1, 1], [], []>} : vector<1x32xbf16>, vector<32x128xbf16>, vector<1x128xf32> -> vector<1x128xf32>
    %cst_287 = arith.constant dense<0.000000e+00> : vector<1x128xf32>
    %858 = tpu.matmul %782, %15, %cst_287 {dimension_numbers = #tpu.dot_dimension_numbers<[1], [0], [0], [1], [0, 0, 1, 1], [], []>} : vector<1x32xbf16>, vector<32x128xbf16>, vector<1x128xf32> -> vector<1x128xf32>
    %859 = arith.addf %857, %858 : vector<1x128xf32>
    %860 = vector.extract_strided_slice %859 {offsets = [0, 0], sizes = [1, 32], strides = [1, 1]} : vector<1x128xf32> to vector<1x32xf32>
    %861 = arith.addf %860, %27 : vector<1x32xf32>
    %cst_288 = arith.constant dense<0.000000e+00> : vector<1x128xf32>
    %862 = tpu.matmul %851, %8, %cst_288 {dimension_numbers = #tpu.dot_dimension_numbers<[1], [0], [0], [1], [0, 0, 1, 1], [], []>} : vector<1x32xbf16>, vector<32x128xbf16>, vector<1x128xf32> -> vector<1x128xf32>
    %cst_289 = arith.constant dense<0.000000e+00> : vector<1x128xf32>
    %863 = tpu.matmul %782, %16, %cst_289 {dimension_numbers = #tpu.dot_dimension_numbers<[1], [0], [0], [1], [0, 0, 1, 1], [], []>} : vector<1x32xbf16>, vector<32x128xbf16>, vector<1x128xf32> -> vector<1x128xf32>
    %864 = arith.addf %862, %863 : vector<1x128xf32>
    %865 = vector.extract_strided_slice %864 {offsets = [0, 0], sizes = [1, 32], strides = [1, 1]} : vector<1x128xf32> to vector<1x32xf32>
    %866 = arith.addf %865, %28 : vector<1x32xf32>
    %cst_290 = arith.constant dense<0.000000e+00> : vector<1x128xf32>
    %867 = tpu.matmul %851, %9, %cst_290 {dimension_numbers = #tpu.dot_dimension_numbers<[1], [0], [0], [1], [0, 0, 1, 1], [], []>} : vector<1x32xbf16>, vector<32x128xbf16>, vector<1x128xf32> -> vector<1x128xf32>
    %cst_291 = arith.constant dense<0.000000e+00> : vector<1x128xf32>
    %868 = tpu.matmul %782, %17, %cst_291 {dimension_numbers = #tpu.dot_dimension_numbers<[1], [0], [0], [1], [0, 0, 1, 1], [], []>} : vector<1x32xbf16>, vector<32x128xbf16>, vector<1x128xf32> -> vector<1x128xf32>
    %869 = arith.addf %867, %868 : vector<1x128xf32>
    %870 = vector.extract_strided_slice %869 {offsets = [0, 0], sizes = [1, 32], strides = [1, 1]} : vector<1x128xf32> to vector<1x32xf32>
    %871 = arith.addf %870, %29 : vector<1x32xf32>
    %872 = arith.negf %856 : vector<1x32xf32>
    %873 = math.exp %872 : vector<1x32xf32>
    %cst_292 = arith.constant 1.000000e+00 : f32
    %874 = vector.broadcast %cst_292 : f32 to vector<1x32xf32>
    %875 = arith.addf %874, %873 : vector<1x32xf32>
    %876 = arith.divf %874, %875 : vector<1x32xf32>
    %877 = arith.negf %861 : vector<1x32xf32>
    %878 = math.exp %877 : vector<1x32xf32>
    %cst_293 = arith.constant 1.000000e+00 : f32
    %879 = vector.broadcast %cst_293 : f32 to vector<1x32xf32>
    %880 = arith.addf %879, %878 : vector<1x32xf32>
    %881 = arith.divf %879, %880 : vector<1x32xf32>
    %882 = math.tanh %866 : vector<1x32xf32>
    %883 = arith.negf %871 : vector<1x32xf32>
    %884 = math.exp %883 : vector<1x32xf32>
    %cst_294 = arith.constant 1.000000e+00 : f32
    %885 = vector.broadcast %cst_294 : f32 to vector<1x32xf32>
    %886 = arith.addf %885, %884 : vector<1x32xf32>
    %887 = arith.divf %885, %886 : vector<1x32xf32>
    %888 = arith.mulf %881, %779 : vector<1x32xf32>
    %889 = arith.mulf %876, %882 : vector<1x32xf32>
    %890 = arith.addf %888, %889 : vector<1x32xf32>
    %891 = math.tanh %890 : vector<1x32xf32>
    %892 = arith.mulf %887, %891 : vector<1x32xf32>
    %893 = arith.truncf %892 : vector<1x32xf32> to vector<1x32xbf16>
    %cst_295 = arith.constant dense<0.000000e+00> : vector<1x128xf32>
    %894 = tpu.matmul %893, %10, %cst_295 {dimension_numbers = #tpu.dot_dimension_numbers<[1], [0], [0], [1], [0, 0, 1, 1], [], []>} : vector<1x32xbf16>, vector<32x128xbf16>, vector<1x128xf32> -> vector<1x128xf32>
    %cst_296 = arith.constant dense<0.000000e+00> : vector<1x128xf32>
    %895 = tpu.matmul %824, %18, %cst_296 {dimension_numbers = #tpu.dot_dimension_numbers<[1], [0], [0], [1], [0, 0, 1, 1], [], []>} : vector<1x32xbf16>, vector<32x128xbf16>, vector<1x128xf32> -> vector<1x128xf32>
    %896 = arith.addf %894, %895 : vector<1x128xf32>
    %897 = vector.extract_strided_slice %896 {offsets = [0, 0], sizes = [1, 32], strides = [1, 1]} : vector<1x128xf32> to vector<1x32xf32>
    %898 = arith.addf %897, %30 : vector<1x32xf32>
    %cst_297 = arith.constant dense<0.000000e+00> : vector<1x128xf32>
    %899 = tpu.matmul %893, %11, %cst_297 {dimension_numbers = #tpu.dot_dimension_numbers<[1], [0], [0], [1], [0, 0, 1, 1], [], []>} : vector<1x32xbf16>, vector<32x128xbf16>, vector<1x128xf32> -> vector<1x128xf32>
    %cst_298 = arith.constant dense<0.000000e+00> : vector<1x128xf32>
    %900 = tpu.matmul %824, %19, %cst_298 {dimension_numbers = #tpu.dot_dimension_numbers<[1], [0], [0], [1], [0, 0, 1, 1], [], []>} : vector<1x32xbf16>, vector<32x128xbf16>, vector<1x128xf32> -> vector<1x128xf32>
    %901 = arith.addf %899, %900 : vector<1x128xf32>
    %902 = vector.extract_strided_slice %901 {offsets = [0, 0], sizes = [1, 32], strides = [1, 1]} : vector<1x128xf32> to vector<1x32xf32>
    %903 = arith.addf %902, %31 : vector<1x32xf32>
    %cst_299 = arith.constant dense<0.000000e+00> : vector<1x128xf32>
    %904 = tpu.matmul %893, %12, %cst_299 {dimension_numbers = #tpu.dot_dimension_numbers<[1], [0], [0], [1], [0, 0, 1, 1], [], []>} : vector<1x32xbf16>, vector<32x128xbf16>, vector<1x128xf32> -> vector<1x128xf32>
    %cst_300 = arith.constant dense<0.000000e+00> : vector<1x128xf32>
    %905 = tpu.matmul %824, %20, %cst_300 {dimension_numbers = #tpu.dot_dimension_numbers<[1], [0], [0], [1], [0, 0, 1, 1], [], []>} : vector<1x32xbf16>, vector<32x128xbf16>, vector<1x128xf32> -> vector<1x128xf32>
    %906 = arith.addf %904, %905 : vector<1x128xf32>
    %907 = vector.extract_strided_slice %906 {offsets = [0, 0], sizes = [1, 32], strides = [1, 1]} : vector<1x128xf32> to vector<1x32xf32>
    %908 = arith.addf %907, %32 : vector<1x32xf32>
    %cst_301 = arith.constant dense<0.000000e+00> : vector<1x128xf32>
    %909 = tpu.matmul %893, %13, %cst_301 {dimension_numbers = #tpu.dot_dimension_numbers<[1], [0], [0], [1], [0, 0, 1, 1], [], []>} : vector<1x32xbf16>, vector<32x128xbf16>, vector<1x128xf32> -> vector<1x128xf32>
    %cst_302 = arith.constant dense<0.000000e+00> : vector<1x128xf32>
    %910 = tpu.matmul %824, %21, %cst_302 {dimension_numbers = #tpu.dot_dimension_numbers<[1], [0], [0], [1], [0, 0, 1, 1], [], []>} : vector<1x32xbf16>, vector<32x128xbf16>, vector<1x128xf32> -> vector<1x128xf32>
    %911 = arith.addf %909, %910 : vector<1x128xf32>
    %912 = vector.extract_strided_slice %911 {offsets = [0, 0], sizes = [1, 32], strides = [1, 1]} : vector<1x128xf32> to vector<1x32xf32>
    %913 = arith.addf %912, %33 : vector<1x32xf32>
    %914 = arith.negf %898 : vector<1x32xf32>
    %915 = math.exp %914 : vector<1x32xf32>
    %cst_303 = arith.constant 1.000000e+00 : f32
    %916 = vector.broadcast %cst_303 : f32 to vector<1x32xf32>
    %917 = arith.addf %916, %915 : vector<1x32xf32>
    %918 = arith.divf %916, %917 : vector<1x32xf32>
    %919 = arith.negf %903 : vector<1x32xf32>
    %920 = math.exp %919 : vector<1x32xf32>
    %cst_304 = arith.constant 1.000000e+00 : f32
    %921 = vector.broadcast %cst_304 : f32 to vector<1x32xf32>
    %922 = arith.addf %921, %920 : vector<1x32xf32>
    %923 = arith.divf %921, %922 : vector<1x32xf32>
    %924 = math.tanh %908 : vector<1x32xf32>
    %925 = arith.negf %913 : vector<1x32xf32>
    %926 = math.exp %925 : vector<1x32xf32>
    %cst_305 = arith.constant 1.000000e+00 : f32
    %927 = vector.broadcast %cst_305 : f32 to vector<1x32xf32>
    %928 = arith.addf %927, %926 : vector<1x32xf32>
    %929 = arith.divf %927, %928 : vector<1x32xf32>
    %930 = arith.mulf %923, %821 : vector<1x32xf32>
    %931 = arith.mulf %918, %924 : vector<1x32xf32>
    %932 = arith.addf %930, %931 : vector<1x32xf32>
    %933 = math.tanh %932 : vector<1x32xf32>
    %934 = arith.mulf %929, %933 : vector<1x32xf32>
    %c7_306 = arith.constant 7 : index
    %c0_307 = arith.constant 0 : index
    %935 = vector.load %arg6[%c7_306, %c0_307] : memref<8x128xf32, #tpu.memory_space<vmem>>, vector<1x32xf32>
    tpu.vector_store %arg6[%c7_306, %c0_307], %934 {strides = array<i32>} : memref<8x128xf32, #tpu.memory_space<vmem>>, vector<1x32xf32>,
    %c0_308 = arith.constant 0 : index
    %c0_309 = arith.constant 0 : index
    %936 = vector.load %arg6[%c0_308, %c0_309] : memref<8x128xf32, #tpu.memory_space<vmem>>, vector<8x32xf32>
    %937 = arith.truncf %936 : vector<8x32xf32> to vector<8x32xbf16>
    %cst_310 = arith.constant dense<0.000000e+00> : vector<8x128xf32>
    %938 = tpu.matmul %937, %22, %cst_310 {dimension_numbers = #tpu.dot_dimension_numbers<[1], [0], [0], [1], [0, 0, 1, 1], [], []>} : vector<8x32xbf16>, vector<32x128xbf16>, vector<8x128xf32> -> vector<8x128xf32>
    %939 = vector.broadcast %34 : vector<1x128xf32> to vector<8x128xf32>
    %940 = arith.addf %938, %939 : vector<8x128xf32>
    %cst_311 = arith.constant 0.000000e+00 : f32
    %941 = vector.broadcast %cst_311 : f32 to vector<8x128xf32>
    %942 = arith.maximumf %940, %941 : vector<8x128xf32>
    %943 = vector.extract_strided_slice %942 {offsets = [0, 0], sizes = [8, 64], strides = [1, 1]} : vector<8x128xf32> to vector<8x64xf32>
    %944 = arith.truncf %943 : vector<8x64xf32> to vector<8x64xbf16>
    %cst_312 = arith.constant dense<0.000000e+00> : vector<8x128xf32>
    %945 = tpu.matmul %944, %23, %cst_312 {dimension_numbers = #tpu.dot_dimension_numbers<[1], [0], [0], [1], [0, 0, 1, 1], [], []>} : vector<8x64xbf16>, vector<64x128xbf16>, vector<8x128xf32> -> vector<8x128xf32>
    %946 = vector.broadcast %35 : vector<1x128xf32> to vector<8x128xf32>
    %947 = arith.addf %945, %946 : vector<8x128xf32>
    %cst_313 = arith.constant dense<0xFF800000> : vector<8xf32>
    %948 = vector.multi_reduction <maximumf>, %947, %cst_313 [1] : vector<8x128xf32> to vector<8xf32>
    %949 = vector.shape_cast %948 : vector<8xf32> to vector<8x1xf32>
    %950 = vector.broadcast %949 : vector<8x1xf32> to vector<8x128xf32>
    %951 = arith.subf %947, %950 : vector<8x128xf32>
    %952 = math.exp %951 : vector<8x128xf32>
    %cst_314 = arith.constant dense<0.000000e+00> : vector<8xf32>
    %953 = vector.multi_reduction <add>, %952, %cst_314 [1] : vector<8x128xf32> to vector<8xf32>
    %954 = vector.shape_cast %953 : vector<8xf32> to vector<8x1xf32>
    %955 = tpu.reciprocal %954 {approx = true} : vector<8x1xf32> -> vector<8x1xf32>
    %956 = vector.broadcast %955 : vector<8x1xf32> to vector<8x128xf32>
    %957 = arith.mulf %952, %956 : vector<8x128xf32>
    %c0_315 = arith.constant 0 : index
    %c0_316 = arith.constant 0 : index
    %958 = vector.load %arg5[%c0_315, %c0_316] : memref<16x128xf32, #tpu.memory_space<vmem>>, vector<8x128xf32>
    tpu.vector_store %arg5[%c0_315, %c0_316], %957 {strides = array<i32>} : memref<16x128xf32, #tpu.memory_space<vmem>>, vector<8x128xf32>,
    %c8_317 = arith.constant 8 : index
    %c0_318 = arith.constant 0 : index
    %959 = vector.load %arg5[%c8_317, %c0_318] : memref<16x128xf32, #tpu.memory_space<vmem>>, vector<1x32xf32>
    tpu.vector_store %arg5[%c8_317, %c0_318], %892 {strides = array<i32>} : memref<16x128xf32, #tpu.memory_space<vmem>>, vector<1x32xf32>,
    %c10_319 = arith.constant 10 : index
    %c0_320 = arith.constant 0 : index
    %960 = vector.load %arg5[%c10_319, %c0_320] : memref<16x128xf32, #tpu.memory_space<vmem>>, vector<1x32xf32>
    tpu.vector_store %arg5[%c10_319, %c0_320], %890 {strides = array<i32>} : memref<16x128xf32, #tpu.memory_space<vmem>>, vector<1x32xf32>,
    %c9_321 = arith.constant 9 : index
    %c0_322 = arith.constant 0 : index
    %961 = vector.load %arg5[%c9_321, %c0_322] : memref<16x128xf32, #tpu.memory_space<vmem>>, vector<1x32xf32>
    tpu.vector_store %arg5[%c9_321, %c0_322], %934 {strides = array<i32>} : memref<16x128xf32, #tpu.memory_space<vmem>>, vector<1x32xf32>,
    %c11_323 = arith.constant 11 : index
    %c0_324 = arith.constant 0 : index
    %962 = vector.load %arg5[%c11_323, %c0_324] : memref<16x128xf32, #tpu.memory_space<vmem>>, vector<1x32xf32>
    tpu.vector_store %arg5[%c11_323, %c0_324], %932 {strides = array<i32>} : memref<16x128xf32, #tpu.memory_space<vmem>>, vector<1x32xf32>,
    return
  }
}

</mosaic_0001>

<llo_original>
// kernel: decoder_forward.1
$region0: #{decoder_forward.1}
  #allocation0 [shape = 'u32[]', space=smem, size = 0x4, offset = 0x4, fixed_abs, tag = 'smem constant byte address 0x4 - core index']
  #allocation1 [shape = 'u32[72,128]{1,0:T(1,128)}', space=vmem, size = 0x9000, scoped, tag = 'internal scratch']
  #allocation2 [shape = 'f32[8,128]{1,0:T(8,128)}', space=vmem, size = 0x1000, scoped, tag = 'scratch operand']
  %s0 = inlined_call_operand.hbm [shape: f32[8,32], index: 0, kind: input, shape index: {}]
  %s1 = inlined_call_operand.vmem [shape: f32[2,1,32], index: 1, kind: input, shape index: {}]
  %s2 = inlined_call_operand.hbm [shape: f32[2,1,32], index: 2, kind: input, shape index: {}]
  %s3 = inlined_call_operand.hbm [shape: bf16[736,128], index: 3, kind: input, shape index: {}]
  %s4 = inlined_call_operand.hbm [shape: f32[16,128], index: 4, kind: input, shape index: {}]
  %s5 = inlined_call_operand.vmem [shape: f32[16,128], index: 5, kind: output, shape index: {}]
  %s6 = sld [smem:[#allocation0]]
  $region46: #{decoder_forward.1} parent=0
    _
  %s8 = ssub.s32 1, %s6
  %s9 = scalar_select 0, %s8, %s6
  $region1: #{decoder_forward.1} parent=0
    #allocation3 [shape = 'u8[4096]{0}', space=vmem, size = 0x1000, scoped, tag = 'input window, operand 0, single buffered']
    #allocation4 [shape = 's32[1]{0}', space=sflag, size = 0x4, scoped, tag = 'scoped memory for decoder_forward.1']
    #allocation5 [shape = 'u8[1024]{0}', space=vmem, size = 0x400, scoped, tag = 'input window, operand 2, single buffered']
    #allocation6 [shape = 's32[1]{0}', space=sflag, size = 0x4, scoped, tag = 'scoped memory for decoder_forward.1']
    #allocation7 [shape = 'u8[188416]{0}', space=vmem, size = 0x2e000, scoped, tag = 'input window, operand 3, single buffered']
    #allocation8 [shape = 'u8[8192]{0}', space=vmem, size = 0x2000, scoped, tag = 'input window, operand 4, single buffered']
    #allocation9 [shape = 's32[1]{0}', space=sflag, size = 0x4, scoped, tag = 'scoped memory for decoder_forward.1']
    %10 = vsyncpa [#allocation4], 0
    %11 = vsyncpa [#allocation6], 0
    %12 = vsyncpa [#allocation9], 0
    // Predicated region
    $region2: #{decoder_forward.1} parent=1 // pred_check
      _
    $region3: #{decoder_forward.1} parent=1 // pred_check_branch
      %14 = sbr.rel (0) target = $region5
    $region4: #{decoder_forward.1} parent=1 // pred_region
      %16 = vsyncadd [#allocation4], 0
      %s18 = sshll.u32 %s0, 4
      %s19 = int_to_ptr.hbm [resolvable:$true] %s18
      %s20 = sshll.u32 [#allocation3], 4
      %s21 = int_to_ptr.vmem [resolvable:$true] %s20
      %23 = dma.hbm_to_vmem [thread:$0]  %s19, 128, %s21, [#allocation4]
    $region5: #{decoder_forward.1} parent=1 // pred_fallthru
      _
    // Predicated region
    $region6: #{decoder_forward.1} parent=1 // pred_check
      _
    $region7: #{decoder_forward.1} parent=1 // pred_check_branch
      %25 = sbr.rel (0) target = $region9
    $region8: #{decoder_forward.1} parent=1 // pred_region
      _
    $region9: #{decoder_forward.1} parent=1 // pred_fallthru
      _
    // Predicated region
    $region10: #{decoder_forward.1} parent=1 // pred_check
      _
    $region11: #{decoder_forward.1} parent=1 // pred_check_branch
      %27 = sbr.rel (0) target = $region13
    $region12: #{decoder_forward.1} parent=1 // pred_region
      %29 = vsyncadd [#allocation6], 0
      %s30 = sshll.u32 %s2, 4
      %s31 = int_to_ptr.hbm [resolvable:$true] %s30
      %s32 = sshll.u32 [#allocation5], 4
      %s33 = int_to_ptr.vmem [resolvable:$true] %s32
      %38 = dma.hbm_to_vmem [thread:$0]  %s31, 32, %s33, [#allocation6], 16, 16, 1
    $region13: #{decoder_forward.1} parent=1 // pred_fallthru
      _
    // Predicated region
    $region14: #{decoder_forward.1} parent=1 // pred_check
      _
    $region15: #{decoder_forward.1} parent=1 // pred_check_branch
      %40 = sbr.rel (0) target = $region17
    $region16: #{decoder_forward.1} parent=1 // pred_region
      %42 = vsyncadd [#allocation6], 0
      %s43 = sshll.u32 %s3, 4
      %s44 = int_to_ptr.hbm [resolvable:$true] %s43
      %s45 = sshll.u32 [#allocation7], 4
      %s46 = int_to_ptr.vmem [resolvable:$true] %s45
      %51 = dma.hbm_to_vmem [thread:$0]  %s44, 5888, %s46, [#allocation6], 64, 64, 4
    $region17: #{decoder_forward.1} parent=1 // pred_fallthru
      _
    // Predicated region
    $region18: #{decoder_forward.1} parent=1 // pred_check
      _
    $region19: #{decoder_forward.1} parent=1 // pred_check_branch
      %53 = sbr.rel (0) target = $region21
    $region20: #{decoder_forward.1} parent=1 // pred_region
      %55 = vsyncadd [#allocation9], 0
      %s56 = sshll.u32 %s4, 4
      %s57 = int_to_ptr.hbm [resolvable:$true] %s56
      %s58 = sshll.u32 [#allocation8], 4
      %s59 = int_to_ptr.vmem [resolvable:$true] %s58
      %64 = dma.hbm_to_vmem [thread:$0]  %s57, 256, %s59, [#allocation9], 128, 128, 8
    $region21: #{decoder_forward.1} parent=1 // pred_fallthru
      _
    // Predicated region
    $region22: #{decoder_forward.1} parent=1 // pred_check
      _
    $region23: #{decoder_forward.1} parent=1 // pred_check_branch
      %66 = sbr.rel (0) target = $region25
    $region24: #{decoder_forward.1} parent=1 // pred_region
      %68 = dma.done [#allocation4], 128
    $region25: #{decoder_forward.1} parent=1 // pred_fallthru
      _
    // Predicated region
    $region26: #{decoder_forward.1} parent=1 // pred_check
      _
    $region27: #{decoder_forward.1} parent=1 // pred_check_branch
      %70 = sbr.rel (0) target = $region29
    $region28: #{decoder_forward.1} parent=1 // pred_region
      %72 = dma.done [#allocation6], 32
    $region29: #{decoder_forward.1} parent=1 // pred_fallthru
      _
    // Predicated region
    $region30: #{decoder_forward.1} parent=1 // pred_check
      _
    $region31: #{decoder_forward.1} parent=1 // pred_check_branch
      %74 = sbr.rel (0) target = $region33
    $region32: #{decoder_forward.1} parent=1 // pred_region
      %76 = dma.done [#allocation6], 5888
    $region33: #{decoder_forward.1} parent=1 // pred_fallthru
      _
    // Predicated region
    $region34: #{decoder_forward.1} parent=1 // pred_check
      _
    $region35: #{decoder_forward.1} parent=1 // pred_check_branch
      %78 = sbr.rel (0) target = $region37
    $region36: #{decoder_forward.1} parent=1 // pred_region
      %80 = dma.done [#allocation9], 256
    $region37: #{decoder_forward.1} parent=1 // pred_fallthru
      _
    %v82 = vld [vmem:[#allocation3] sm:$0xff]
    %v83 = vpack.c.bf16 %v82, %v82
    %v84 = vld [vmem:[#allocation7] sm:$0xf]
    %v85 = vld [vmem:[#allocation7 + $0x4] sm:$0xf]
    %v86 = vld [vmem:[#allocation7 + $0x8] sm:$0xf]
    %v87 = vld [vmem:[#allocation7 + $0xc] sm:$0xf]
    %v88 = vld [vmem:[#allocation7 + $0x10] sm:$0xf]
    %v89 = vld [vmem:[#allocation7 + $0x14] sm:$0xf]
    %v90 = vld [vmem:[#allocation7 + $0x18] sm:$0xf]
    %v91 = vld [vmem:[#allocation7 + $0x1c] sm:$0xf]
    %v92 = vld [vmem:[#allocation7 + $0x20] sm:$0xf]
    %v93 = vld [vmem:[#allocation7 + $0x24] sm:$0xf]
    %v94 = vld [vmem:[#allocation7 + $0x28] sm:$0xf]
    %v95 = vld [vmem:[#allocation7 + $0x2c] sm:$0xf]
    %v96 = vld [vmem:[#allocation7 + $0x30] sm:$0xf]
    %v97 = vld [vmem:[#allocation7 + $0x34] sm:$0xf]
    %v98 = vld [vmem:[#allocation7 + $0x38] sm:$0xf]
    %v99 = vld [vmem:[#allocation7 + $0x3c] sm:$0xf]
    %v100 = vld [vmem:[#allocation7 + $0x40] sm:$0xf]
    %v101 = vld [vmem:[#allocation7 + $0x44] sm:$0xf]
    %v102 = vld [vmem:[#allocation7 + $0x48] sm:$0xf]
    %v103 = vld [vmem:[#allocation7 + $0x4c] sm:$0xf]
    %v104 = vld [vmem:[#allocation7 + $0x50] sm:$0xf]
    %v105 = vld [vmem:[#allocation7 + $0x54] sm:$0xf]
    %v106 = vld [vmem:[#allocation7 + $0x58] sm:$0xf]
    %v107 = vld [vmem:[#allocation7 + $0x5c] sm:$0xf]
    %v108 = vld [vmem:[#allocation7 + $0x60] sm:$0xf]
    %v109 = vld [vmem:[#allocation7 + $0x64] sm:$0xf]
    %v110 = vld [vmem:[#allocation7 + $0x68] sm:$0xf]
    %v111 = vld [vmem:[#allocation7 + $0x6c] sm:$0xf]
    %v112 = vld [vmem:[#allocation7 + $0x70] sm:$0xf]
    %v113 = vld [vmem:[#allocation7 + $0x74] sm:$0xf]
    %v114 = vld [vmem:[#allocation7 + $0x78] sm:$0xf]
    %v115 = vld [vmem:[#allocation7 + $0x7c] sm:$0xf]
    %v116 = vld [vmem:[#allocation7 + $0xc0] sm:$0xf]
    %v117 = vld [vmem:[#allocation7 + $0xc4] sm:$0xf]
    %v118 = vld [vmem:[#allocation7 + $0xc8] sm:$0xf]
    %v119 = vld [vmem:[#allocation7 + $0xcc] sm:$0xf]
    %v120 = vld [vmem:[#allocation7 + $0xd0] sm:$0xf]
    %v121 = vld [vmem:[#allocation7 + $0xd4] sm:$0xf]
    %v122 = vld [vmem:[#allocation7 + $0xd8] sm:$0xf]
    %v123 = vld [vmem:[#allocation7 + $0xdc] sm:$0xf]
    %v124 = vld [vmem:[#allocation7 + $0xe0] sm:$0xf]
    %v125 = vld [vmem:[#allocation7 + $0xe4] sm:$0xf]
    %v126 = vld [vmem:[#allocation7 + $0xe8] sm:$0xf]
    %v127 = vld [vmem:[#allocation7 + $0xec] sm:$0xf]
    %v128 = vld [vmem:[#allocation7 + $0xf0] sm:$0xf]
    %v129 = vld [vmem:[#allocation7 + $0xf4] sm:$0xf]
    %v130 = vld [vmem:[#allocation7 + $0xf8] sm:$0xf]
    %v131 = vld [vmem:[#allocation7 + $0xfc] sm:$0xf]
    %v132 = vld [vmem:[#allocation7 + $0x80] sm:$0xf]
    %v133 = vld [vmem:[#allocation7 + $0x84] sm:$0xf]
    %v134 = vld [vmem:[#allocation7 + $0x88] sm:$0xf]
    %v135 = vld [vmem:[#allocation7 + $0x8c] sm:$0xf]
    %v136 = vld [vmem:[#allocation7 + $0x90] sm:$0xf]
    %v137 = vld [vmem:[#allocation7 + $0x94] sm:$0xf]
    %v138 = vld [vmem:[#allocation7 + $0x98] sm:$0xf]
    %v139 = vld [vmem:[#allocation7 + $0x9c] sm:$0xf]
    %v140 = vld [vmem:[#allocation7 + $0xa0] sm:$0xf]
    %v141 = vld [vmem:[#allocation7 + $0xa4] sm:$0xf]
    %v142 = vld [vmem:[#allocation7 + $0xa8] sm:$0xf]
    %v143 = vld [vmem:[#allocation7 + $0xac] sm:$0xf]
    %v144 = vld [vmem:[#allocation7 + $0xb0] sm:$0xf]
    %v145 = vld [vmem:[#allocation7 + $0xb4] sm:$0xf]
    %v146 = vld [vmem:[#allocation7 + $0xb8] sm:$0xf]
    %v147 = vld [vmem:[#allocation7 + $0xbc] sm:$0xf]
    %v148 = vld [vmem:[#allocation7 + $0x100] sm:$0xf]
    %v149 = vld [vmem:[#allocation7 + $0x104] sm:$0xf]
    %v150 = vld [vmem:[#allocation7 + $0x108] sm:$0xf]
    %v151 = vld [vmem:[#allocation7 + $0x10c] sm:$0xf]
    %v152 = vld [vmem:[#allocation7 + $0x110] sm:$0xf]
    %v153 = vld [vmem:[#allocation7 + $0x114] sm:$0xf]
    %v154 = vld [vmem:[#allocation7 + $0x118] sm:$0xf]
    %v155 = vld [vmem:[#allocation7 + $0x11c] sm:$0xf]
    %v156 = vld [vmem:[#allocation7 + $0x120] sm:$0xf]
    %v157 = vld [vmem:[#allocation7 + $0x124] sm:$0xf]
    %v158 = vld [vmem:[#allocation7 + $0x128] sm:$0xf]
    %v159 = vld [vmem:[#allocation7 + $0x12c] sm:$0xf]
    %v160 = vld [vmem:[#allocation7 + $0x130] sm:$0xf]
    %v161 = vld [vmem:[#allocation7 + $0x134] sm:$0xf]
    %v162 = vld [vmem:[#allocation7 + $0x138] sm:$0xf]
    %v163 = vld [vmem:[#allocation7 + $0x13c] sm:$0xf]
    %v164 = vld [vmem:[#allocation7 + $0x140] sm:$0xf]
    %v165 = vld [vmem:[#allocation7 + $0x144] sm:$0xf]
    %v166 = vld [vmem:[#allocation7 + $0x148] sm:$0xf]
    %v167 = vld [vmem:[#allocation7 + $0x14c] sm:$0xf]
    %v168 = vld [vmem:[#allocation7 + $0x150] sm:$0xf]
    %v169 = vld [vmem:[#allocation7 + $0x154] sm:$0xf]
    %v170 = vld [vmem:[#allocation7 + $0x158] sm:$0xf]
    %v171 = vld [vmem:[#allocation7 + $0x15c] sm:$0xf]
    %v172 = vld [vmem:[#allocation7 + $0x160] sm:$0xf]
    %v173 = vld [vmem:[#allocation7 + $0x164] sm:$0xf]
    %v174 = vld [vmem:[#allocation7 + $0x168] sm:$0xf]
    %v175 = vld [vmem:[#allocation7 + $0x16c] sm:$0xf]
    %v176 = vld [vmem:[#allocation8] sm:$0x1]
    %v177 = vld [vmem:[#allocation8 + $0x1] sm:$0x1]
    %v178 = vld [vmem:[#allocation8 + $0x2] sm:$0x1]
    %v179 = vld [vmem:[#allocation8 + $0x3] sm:$0x1]
    %v180 = vld [vmem:[#allocation8 + $0x4] sm:$0x1]
    %v181 = vld [vmem:[#allocation8 + $0x5] sm:$0x1]
    %v182 = vld [vmem:[#allocation8 + $0x6] sm:$0x1]
    %v183 = vld [vmem:[#allocation8 + $0x7] sm:$0x1]
    %v184 = vld [vmem:[#allocation8 + $0x8] sm:$0x1]
    %v185 = vld [vmem:[#allocation8 + $0x9] sm:$0x1]
    %v186 = vld [vmem:[#allocation8 + $0xa] sm:$0x1]
    %v187 = vld [vmem:[#allocation8 + $0xb] sm:$0x1]
    %188 = vst [vmem:[%s5 + $0x8] sm:$0xff] 0.0
    %v189 = vld [vmem:[%s1] sm:$0x1]
    %s190 = scalar_lea.vmem %s1, 1
    %v191 = vld [vmem:[%s190] sm:$0x1]
    %v192 = vld [vmem:[#allocation5] sm:$0x1]
    %s193 = scalar_lea.vmem [#allocation5], 1
    %v194 = vld [vmem:[%s193] sm:$0x1]
    %v195 = vpack.c.bf16 %v189, %v189
    %v196 = vpack.c.bf16 %v191, %v191
    %v201 = vunpack.c.l.b16 %v88
    %v202 = vunpack.c.l.b16 %v89
    %v203 = vunpack.c.l.b16 %v90
    %v204 = vunpack.c.l.b16 %v91
    %v205 = vpack.c.b16 %v202, %v201
    %v206 = vpack.c.b16 %v204, %v203
    %vm209 = vcmask 261120
    %v211 = vsel %vm209, %v195, 0
    %213 = vmatpush.bf16.msra.mxu0 0
    %214 = vmatpush.bf16.msra.mxu0 0
    %215 = vmatpush.bf16.msra.mxu0 0
    %216 = vmatpush.bf16.msra.mxu0 0
    %217 = vmatpush.bf16.msra.mxu0 0
    %218 = vmatpush.bf16.msra.mxu0 0
    %219 = vmatpush.bf16.msra.mxu0 %v206
    %220 = vmatpush.bf16.msra.mxu0 %v205
    %221 = vmatmul.bf16.gmra.mxu0 %v211
    %v222 = vpop.f32.mrf.mxu0
    %v223 = vadd.f32 0.0, %v222
    %v224 = vpop.f32.mrf.mxu0
    %225 = vdwg.mxu0
    %v230 = vunpack.c.l.b16 %v84
    %v231 = vunpack.c.l.b16 %v85
    %v232 = vunpack.c.l.b16 %v86
    %v233 = vunpack.c.l.b16 %v87
    %v234 = vpack.c.b16 %v231, %v230
    %v235 = vpack.c.b16 %v233, %v232
    %v239 = vsel %vm209, 0, 0
    %241 = vmatpush.bf16.msra.mxu0 0
    %242 = vmatpush.bf16.msra.mxu0 0
    %243 = vmatpush.bf16.msra.mxu0 0
    %244 = vmatpush.bf16.msra.mxu0 0
    %245 = vmatpush.bf16.msra.mxu0 0
    %246 = vmatpush.bf16.msra.mxu0 0
    %247 = vmatpush.bf16.msra.mxu0 %v235
    %248 = vmatpush.bf16.msra.mxu0 %v234
    %249 = vmatmul.bf16.gmra.mxu0 %v239
    %v250 = vpop.f32.mrf.mxu0
    %v251 = vadd.f32 %v223, %v250
    %v252 = vpop.f32.mrf.mxu0
    %253 = vdwg.mxu0
    %v254 = vadd.f32 %v251, %v176
    %vm255 = vcmask 57344
    %v256 = vsel %vm255, %v254, -inf
    %257 = vmax.xlane.f32.xlu0 %v256
    %v258 = vpop.xlane.xlu0 %257
    %v259 = vsub.f32 %v254, %v258
    %v260 = vmul.f32 %v259, 1.442695
    %v261 = vpow.pop %v260
    %v262 = vsel %vm255, %v261, 0.0
    %263 = vadd.xlane.f32.xlu0 %v262
    %v264 = vpop.xlane.xlu0 %263
    %v265 = vrcp.pop %v264
    %v266 = vpack.c.bf16 %v261, %v261
    %vm267 = vcmask 64512
    %v269 = vsel %vm267, %v266, 0
    %vm271 = vcmask 1043456
    %v273 = vsel %vm271, %v83, 0
    %275 = vmatpush.bf16.msra.mxu0 0
    %276 = vmatpush.bf16.msra.mxu0 0
    %277 = vmatpush.bf16.msra.mxu0 0
    %278 = vmatpush.bf16.msra.mxu0 0
    %279 = vmatpush.bf16.msra.mxu0 0
    %280 = vmatpush.bf16.msra.mxu0 0
    %281 = vmatpush.bf16.msra.mxu0 0
    %282 = vmatpush.bf16.msra.mxu0 %v273
    %283 = vmatmul.bf16.gmra.mxu0 %v269
    %v284 = vpop.f32.mrf.mxu0
    %v285 = vadd.f32 0.0, %v284
    %v286 = vpop.f32.mrf.mxu0
    %287 = vdwg.mxu0
    %v288 = vmul.f32 %v285, %v265
    %v289 = vpack.c.bf16 %v288, %v288
    %v294 = vunpack.c.l.b16 %v96
    %v295 = vunpack.c.l.b16 %v97
    %v296 = vunpack.c.l.b16 %v98
    %v297 = vunpack.c.l.b16 %v99
    %v298 = vpack.c.b16 %v295, %v294
    %v299 = vpack.c.b16 %v297, %v296
    %v303 = vsel %vm209, %v289, 0
    %305 = vmatpush.bf16.msra.mxu0 0
    %306 = vmatpush.bf16.msra.mxu0 0
    %307 = vmatpush.bf16.msra.mxu0 0
    %308 = vmatpush.bf16.msra.mxu0 0
    %309 = vmatpush.bf16.msra.mxu0 0
    %310 = vmatpush.bf16.msra.mxu0 0
    %311 = vmatpush.bf16.msra.mxu0 %v299
    %312 = vmatpush.bf16.msra.mxu0 %v298
    %313 = vmatmul.bf16.gmra.mxu0 %v303
    %v314 = vpop.f32.mrf.mxu0
    %v315 = vadd.f32 0.0, %v314
    %v316 = vpop.f32.mrf.mxu0
    %317 = vdwg.mxu0
    %v322 = vunpack.c.l.b16 %v92
    %v323 = vunpack.c.l.b16 %v93
    %v324 = vunpack.c.l.b16 %v94
    %v325 = vunpack.c.l.b16 %v95
    %v326 = vpack.c.b16 %v323, %v322
    %v327 = vpack.c.b16 %v325, %v324
    %330 = vmatpush.bf16.msra.mxu0 0
    %331 = vmatpush.bf16.msra.mxu0 0
    %332 = vmatpush.bf16.msra.mxu0 0
    %333 = vmatpush.bf16.msra.mxu0 0
    %334 = vmatpush.bf16.msra.mxu0 0
    %335 = vmatpush.bf16.msra.mxu0 0
    %336 = vmatpush.bf16.msra.mxu0 %v327
    %337 = vmatpush.bf16.msra.mxu0 %v326
    %338 = vmatmul.bf16.gmra.mxu0 %v239
    %v339 = vpop.f32.mrf.mxu0
    %v340 = vadd.f32 %v315, %v339
    %v341 = vpop.f32.mrf.mxu0
    %342 = vdwg.mxu0
    %v343 = vadd.f32 %v340, %v177
    %v344 = vmax.f32 %v343, 0.0
    %v345 = vpack.c.bf16 %v344, %v344
    %v350 = vunpack.c.l.b16 %v132
    %v351 = vunpack.c.l.b16 %v133
    %v352 = vunpack.c.l.b16 %v134
    %v353 = vunpack.c.l.b16 %v135
    %v354 = vpack.c.b16 %v351, %v350
    %v355 = vpack.c.b16 %v353, %v352
    %358 = vmatpush.bf16.msra.mxu0 0
    %359 = vmatpush.bf16.msra.mxu0 0
    %360 = vmatpush.bf16.msra.mxu0 0
    %361 = vmatpush.bf16.msra.mxu0 0
    %362 = vmatpush.bf16.msra.mxu0 0
    %363 = vmatpush.bf16.msra.mxu0 0
    %364 = vmatpush.bf16.msra.mxu0 %v355
    %365 = vmatpush.bf16.msra.mxu0 %v354
    %366 = vmatmul.bf16.gmra.mxu0 %v211
    %v367 = vpop.f32.mrf.mxu0
    %v368 = vadd.f32 0.0, %v367
    %v369 = vpop.f32.mrf.mxu0
    %370 = vdwg.mxu0
    %v375 = vunpack.c.l.b16 %v100
    %v376 = vunpack.c.l.b16 %v101
    %v377 = vunpack.c.l.b16 %v102
    %v378 = vunpack.c.l.b16 %v103
    %v379 = vpack.c.b16 %v376, %v375
    %v380 = vpack.c.b16 %v378, %v377
    %v384 = vsel %vm209, %v345, 0
    %386 = vmatpush.bf16.msra.mxu0 0
    %387 = vmatpush.bf16.msra.mxu0 0
    %388 = vmatpush.bf16.msra.mxu0 0
    %389 = vmatpush.bf16.msra.mxu0 0
    %390 = vmatpush.bf16.msra.mxu0 0
    %391 = vmatpush.bf16.msra.mxu0 0
    %392 = vmatpush.bf16.msra.mxu0 %v380
    %393 = vmatpush.bf16.msra.mxu0 %v379
    %394 = vmatmul.bf16.gmra.mxu0 %v384
    %v395 = vpop.f32.mrf.mxu0
    %v396 = vadd.f32 %v368, %v395
    %v397 = vpop.f32.mrf.mxu0
    %398 = vdwg.mxu0
    %v399 = vadd.f32 %v396, %v178
    %v404 = vunpack.c.l.b16 %v136
    %v405 = vunpack.c.l.b16 %v137
    %v406 = vunpack.c.l.b16 %v138
    %v407 = vunpack.c.l.b16 %v139
    %v408 = vpack.c.b16 %v405, %v404
    %v409 = vpack.c.b16 %v407, %v406
    %412 = vmatpush.bf16.msra.mxu0 0
    %413 = vmatpush.bf16.msra.mxu0 0
    %414 = vmatpush.bf16.msra.mxu0 0
    %415 = vmatpush.bf16.msra.mxu0 0
    %416 = vmatpush.bf16.msra.mxu0 0
    %417 = vmatpush.bf16.msra.mxu0 0
    %418 = vmatpush.bf16.msra.mxu0 %v409
    %419 = vmatpush.bf16.msra.mxu0 %v408
    %420 = vmatmul.bf16.gmra.mxu0 %v211
    %v421 = vpop.f32.mrf.mxu0
    %v422 = vadd.f32 0.0, %v421
    %v423 = vpop.f32.mrf.mxu0
    %424 = vdwg.mxu0
    %v429 = vunpack.c.l.b16 %v104
    %v430 = vunpack.c.l.b16 %v105
    %v431 = vunpack.c.l.b16 %v106
    %v432 = vunpack.c.l.b16 %v107
    %v433 = vpack.c.b16 %v430, %v429
    %v434 = vpack.c.b16 %v432, %v431
    %437 = vmatpush.bf16.msra.mxu0 0
    %438 = vmatpush.bf16.msra.mxu0 0
    %439 = vmatpush.bf16.msra.mxu0 0
    %440 = vmatpush.bf16.msra.mxu0 0
    %441 = vmatpush.bf16.msra.mxu0 0
    %442 = vmatpush.bf16.msra.mxu0 0
    %443 = vmatpush.bf16.msra.mxu0 %v434
    %444 = vmatpush.bf16.msra.mxu0 %v433
    %445 = vmatmul.bf16.gmra.mxu0 %v384
    %v446 = vpop.f32.mrf.mxu0
    %v447 = vadd.f32 %v422, %v446
    %v448 = vpop.f32.mrf.mxu0
    %449 = vdwg.mxu0
    %v450 = vadd.f32 %v447, %v179
    %v455 = vunpack.c.l.b16 %v140
    %v456 = vunpack.c.l.b16 %v141
    %v457 = vunpack.c.l.b16 %v142
    %v458 = vunpack.c.l.b16 %v143
    %v459 = vpack.c.b16 %v456, %v455
    %v460 = vpack.c.b16 %v458, %v457
    %463 = vmatpush.bf16.msra.mxu0 0
    %464 = vmatpush.bf16.msra.mxu0 0
    %465 = vmatpush.bf16.msra.mxu0 0
    %466 = vmatpush.bf16.msra.mxu0 0
    %467 = vmatpush.bf16.msra.mxu0 0
    %468 = vmatpush.bf16.msra.mxu0 0
    %469 = vmatpush.bf16.msra.mxu0 %v460
    %470 = vmatpush.bf16.msra.mxu0 %v459
    %471 = vmatmul.bf16.gmra.mxu0 %v211
    %v472 = vpop.f32.mrf.mxu0
    %v473 = vadd.f32 0.0, %v472
    %v474 = vpop.f32.mrf.mxu0
    %475 = vdwg.mxu0
    %v480 = vunpack.c.l.b16 %v108
    %v481 = vunpack.c.l.b16 %v109
    %v482 = vunpack.c.l.b16 %v110
    %v483 = vunpack.c.l.b16 %v111
    %v484 = vpack.c.b16 %v481, %v480
    %v485 = vpack.c.b16 %v483, %v482
    %488 = vmatpush.bf16.msra.mxu0 0
    %489 = vmatpush.bf16.msra.mxu0 0
    %490 = vmatpush.bf16.msra.mxu0 0
    %491 = vmatpush.bf16.msra.mxu0 0
    %492 = vmatpush.bf16.msra.mxu0 0
    %493 = vmatpush.bf16.msra.mxu0 0
    %494 = vmatpush.bf16.msra.mxu0 %v485
    %495 = vmatpush.bf16.msra.mxu0 %v484
    %496 = vmatmul.bf16.gmra.mxu0 %v384
    %v497 = vpop.f32.mrf.mxu0
    %v498 = vadd.f32 %v473, %v497
    %v499 = vpop.f32.mrf.mxu0
    %500 = vdwg.mxu0
    %v501 = vadd.f32 %v498, %v180
    %v506 = vunpack.c.l.b16 %v144
    %v507 = vunpack.c.l.b16 %v145
    %v508 = vunpack.c.l.b16 %v146
    %v509 = vunpack.c.l.b16 %v147
    %v510 = vpack.c.b16 %v507, %v506
    %v511 = vpack.c.b16 %v509, %v508
    %514 = vmatpush.bf16.msra.mxu0 0
    %515 = vmatpush.bf16.msra.mxu0 0
    %516 = vmatpush.bf16.msra.mxu0 0
    %517 = vmatpush.bf16.msra.mxu0 0
    %518 = vmatpush.bf16.msra.mxu0 0
    %519 = vmatpush.bf16.msra.mxu0 0
    %520 = vmatpush.bf16.msra.mxu0 %v511
    %521 = vmatpush.bf16.msra.mxu0 %v510
    %522 = vmatmul.bf16.gmra.mxu0 %v211
    %v523 = vpop.f32.mrf.mxu0
    %v524 = vadd.f32 0.0, %v523
    %v525 = vpop.f32.mrf.mxu0
    %526 = vdwg.mxu0
    %v531 = vunpack.c.l.b16 %v112
    %v532 = vunpack.c.l.b16 %v113
    %v533 = vunpack.c.l.b16 %v114
    %v534 = vunpack.c.l.b16 %v115
    %v535 = vpack.c.b16 %v532, %v531
    %v536 = vpack.c.b16 %v534, %v533
    %539 = vmatpush.bf16.msra.mxu0 0
    %540 = vmatpush.bf16.msra.mxu0 0
    %541 = vmatpush.bf16.msra.mxu0 0
    %542 = vmatpush.bf16.msra.mxu0 0
    %543 = vmatpush.bf16.msra.mxu0 0
    %544 = vmatpush.bf16.msra.mxu0 0
    %545 = vmatpush.bf16.msra.mxu0 %v536
    %546 = vmatpush.bf16.msra.mxu0 %v535
    %547 = vmatmul.bf16.gmra.mxu0 %v384
    %v548 = vpop.f32.mrf.mxu0
    %v549 = vadd.f32 %v524, %v548
    %v550 = vpop.f32.mrf.mxu0
    %551 = vdwg.mxu0
    %v552 = vadd.f32 %v549, %v181
    %v553 = vxor.u32 %v399, 2147483648
    %v554 = vmul.f32 %v553, 1.442695
    %v555 = vpow.pop %v554
    %v556 = vadd.f32 %v555, 1.0
    %v557 = vrcp.pop %v556
    %v558 = vmul.f32 %v556, %v557
    %v559 = vsub.f32 1.0, %v558
    %v560 = vmul.f32 %v557, %v559
    %v561 = vadd.f32 %v557, %v560
    %vm562 = vweird.f32 %v556
    %vm563 = vweird.f32 %v557
    %vm564 = vmor %vm562, %vm563
    %v565 = vsel %vm564, %v557, %v561
    %v566 = vand.u32 2147483647, %v556
    %vm567 = vcmp.eq.f32.partialorder %v566, 8.507059e+37
    %v568 = vand.u32 %v556, 2147483648
    %v569 = vor.u32 1.1754944e-38, %v568
    %v570 = vsel %vm567, %v569, %v565
    %v571 = vmul.f32 1.0, %v570
    %v572 = vxor.u32 %v450, 2147483648
    %v573 = vmul.f32 %v572, 1.442695
    %v574 = vpow.pop %v573
    %v575 = vadd.f32 %v574, 1.0
    %v576 = vrcp.pop %v575
    %v577 = vmul.f32 %v575, %v576
    %v578 = vsub.f32 1.0, %v577
    %v579 = vmul.f32 %v576, %v578
    %v580 = vadd.f32 %v576, %v579
    %vm581 = vweird.f32 %v575
    %vm582 = vweird.f32 %v576
    %vm583 = vmor %vm581, %vm582
    %v584 = vsel %vm583, %v576, %v580
    %v585 = vand.u32 2147483647, %v575
    %vm586 = vcmp.eq.f32.partialorder %v585, 8.507059e+37
    %v587 = vand.u32 %v575, 2147483648
    %v588 = vor.u32 1.1754944e-38, %v587
    %v589 = vsel %vm586, %v588, %v584
    %v590 = vmul.f32 1.0, %v589
    %v591 = vtanh.pop %v501
    %v592 = vxor.u32 %v552, 2147483648
    %v593 = vmul.f32 %v592, 1.442695
    %v594 = vpow.pop %v593
    %v595 = vadd.f32 %v594, 1.0
    %v596 = vrcp.pop %v595
    %v597 = vmul.f32 %v595, %v596
    %v598 = vsub.f32 1.0, %v597
    %v599 = vmul.f32 %v596, %v598
    %v600 = vadd.f32 %v596, %v599
    %vm601 = vweird.f32 %v595
    %vm602 = vweird.f32 %v596
    %vm603 = vmor %vm601, %vm602
    %v604 = vsel %vm603, %v596, %v600
    %v605 = vand.u32 2147483647, %v595
    %vm606 = vcmp.eq.f32.partialorder %v605, 8.507059e+37
    %v607 = vand.u32 %v595, 2147483648
    %v608 = vor.u32 1.1754944e-38, %v607
    %v609 = vsel %vm606, %v608, %v604
    %v610 = vmul.f32 1.0, %v609
    %v611 = vmul.f32 %v590, %v192
    %v612 = vmul.f32 %v571, %v591
    %v613 = vadd.f32 %v611, %v612
    %v614 = vtanh.pop %v613
    %v615 = vmul.f32 %v610, %v614
    %v616 = vpack.c.bf16 %v615, %v615
    %v621 = vunpack.c.l.b16 %v148
    %v622 = vunpack.c.l.b16 %v149
    %v623 = vunpack.c.l.b16 %v150
    %v624 = vunpack.c.l.b16 %v151
    %v625 = vpack.c.b16 %v622, %v621
    %v626 = vpack.c.b16 %v624, %v623
    %v630 = vsel %vm209, %v196, 0
    %632 = vmatpush.bf16.msra.mxu0 0
    %633 = vmatpush.bf16.msra.mxu0 0
    %634 = vmatpush.bf16.msra.mxu0 0
    %635 = vmatpush.bf16.msra.mxu0 0
    %636 = vmatpush.bf16.msra.mxu0 0
    %637 = vmatpush.bf16.msra.mxu0 0
    %638 = vmatpush.bf16.msra.mxu0 %v626
    %639 = vmatpush.bf16.msra.mxu0 %v625
    %640 = vmatmul.bf16.gmra.mxu0 %v630
    %v641 = vpop.f32.mrf.mxu0
    %v642 = vadd.f32 0.0, %v641
    %v643 = vpop.f32.mrf.mxu0
    %644 = vdwg.mxu0
    %v649 = vunpack.c.l.b16 %v116
    %v650 = vunpack.c.l.b16 %v117
    %v651 = vunpack.c.l.b16 %v118
    %v652 = vunpack.c.l.b16 %v119
    %v653 = vpack.c.b16 %v650, %v649
    %v654 = vpack.c.b16 %v652, %v651
    %v658 = vsel %vm209, %v616, 0
    %660 = vmatpush.bf16.msra.mxu0 0
    %661 = vmatpush.bf16.msra.mxu0 0
    %662 = vmatpush.bf16.msra.mxu0 0
    %663 = vmatpush.bf16.msra.mxu0 0
    %664 = vmatpush.bf16.msra.mxu0 0
    %665 = vmatpush.bf16.msra.mxu0 0
    %666 = vmatpush.bf16.msra.mxu0 %v654
    %667 = vmatpush.bf16.msra.mxu0 %v653
    %668 = vmatmul.bf16.gmra.mxu0 %v658
    %v669 = vpop.f32.mrf.mxu0
    %v670 = vadd.f32 %v642, %v669
    %v671 = vpop.f32.mrf.mxu0
    %672 = vdwg.mxu0
    %v673 = vadd.f32 %v670, %v182
    %v678 = vunpack.c.l.b16 %v152
    %v679 = vunpack.c.l.b16 %v153
    %v680 = vunpack.c.l.b16 %v154
    %v681 = vunpack.c.l.b16 %v155
    %v682 = vpack.c.b16 %v679, %v678
    %v683 = vpack.c.b16 %v681, %v680
    %686 = vmatpush.bf16.msra.mxu0 0
    %687 = vmatpush.bf16.msra.mxu0 0
    %688 = vmatpush.bf16.msra.mxu0 0
    %689 = vmatpush.bf16.msra.mxu0 0
    %690 = vmatpush.bf16.msra.mxu0 0
    %691 = vmatpush.bf16.msra.mxu0 0
    %692 = vmatpush.bf16.msra.mxu0 %v683
    %693 = vmatpush.bf16.msra.mxu0 %v682
    %694 = vmatmul.bf16.gmra.mxu0 %v630
    %v695 = vpop.f32.mrf.mxu0
    %v696 = vadd.f32 0.0, %v695
    %v697 = vpop.f32.mrf.mxu0
    %698 = vdwg.mxu0
    %v703 = vunpack.c.l.b16 %v120
    %v704 = vunpack.c.l.b16 %v121
    %v705 = vunpack.c.l.b16 %v122
    %v706 = vunpack.c.l.b16 %v123
    %v707 = vpack.c.b16 %v704, %v703
    %v708 = vpack.c.b16 %v706, %v705
    %711 = vmatpush.bf16.msra.mxu0 0
    %712 = vmatpush.bf16.msra.mxu0 0
    %713 = vmatpush.bf16.msra.mxu0 0
    %714 = vmatpush.bf16.msra.mxu0 0
    %715 = vmatpush.bf16.msra.mxu0 0
    %716 = vmatpush.bf16.msra.mxu0 0
    %717 = vmatpush.bf16.msra.mxu0 %v708
    %718 = vmatpush.bf16.msra.mxu0 %v707
    %719 = vmatmul.bf16.gmra.mxu0 %v658
    %v720 = vpop.f32.mrf.mxu0
    %v721 = vadd.f32 %v696, %v720
    %v722 = vpop.f32.mrf.mxu0
    %723 = vdwg.mxu0
    %v724 = vadd.f32 %v721, %v183
    %v729 = vunpack.c.l.b16 %v156
    %v730 = vunpack.c.l.b16 %v157
    %v731 = vunpack.c.l.b16 %v158
    %v732 = vunpack.c.l.b16 %v159
    %v733 = vpack.c.b16 %v730, %v729
    %v734 = vpack.c.b16 %v732, %v731
    %737 = vmatpush.bf16.msra.mxu0 0
    %738 = vmatpush.bf16.msra.mxu0 0
    %739 = vmatpush.bf16.msra.mxu0 0
    %740 = vmatpush.bf16.msra.mxu0 0
    %741 = vmatpush.bf16.msra.mxu0 0
    %742 = vmatpush.bf16.msra.mxu0 0
    %743 = vmatpush.bf16.msra.mxu0 %v734
    %744 = vmatpush.bf16.msra.mxu0 %v733
    %745 = vmatmul.bf16.gmra.mxu0 %v630
    %v746 = vpop.f32.mrf.mxu0
    %v747 = vadd.f32 0.0, %v746
    %v748 = vpop.f32.mrf.mxu0
    %749 = vdwg.mxu0
    %v754 = vunpack.c.l.b16 %v124
    %v755 = vunpack.c.l.b16 %v125
    %v756 = vunpack.c.l.b16 %v126
    %v757 = vunpack.c.l.b16 %v127
    %v758 = vpack.c.b16 %v755, %v754
    %v759 = vpack.c.b16 %v757, %v756
    %762 = vmatpush.bf16.msra.mxu0 0
    %763 = vmatpush.bf16.msra.mxu0 0
    %764 = vmatpush.bf16.msra.mxu0 0
    %765 = vmatpush.bf16.msra.mxu0 0
    %766 = vmatpush.bf16.msra.mxu0 0
    %767 = vmatpush.bf16.msra.mxu0 0
    %768 = vmatpush.bf16.msra.mxu0 %v759
    %769 = vmatpush.bf16.msra.mxu0 %v758
    %770 = vmatmul.bf16.gmra.mxu0 %v658
    %v771 = vpop.f32.mrf.mxu0
    %v772 = vadd.f32 %v747, %v771
    %v773 = vpop.f32.mrf.mxu0
    %774 = vdwg.mxu0
    %v775 = vadd.f32 %v772, %v184
    %v780 = vunpack.c.l.b16 %v160
    %v781 = vunpack.c.l.b16 %v161
    %v782 = vunpack.c.l.b16 %v162
    %v783 = vunpack.c.l.b16 %v163
    %v784 = vpack.c.b16 %v781, %v780
    %v785 = vpack.c.b16 %v783, %v782
    %788 = vmatpush.bf16.msra.mxu0 0
    %789 = vmatpush.bf16.msra.mxu0 0
    %790 = vmatpush.bf16.msra.mxu0 0
    %791 = vmatpush.bf16.msra.mxu0 0
    %792 = vmatpush.bf16.msra.mxu0 0
    %793 = vmatpush.bf16.msra.mxu0 0
    %794 = vmatpush.bf16.msra.mxu0 %v785
    %795 = vmatpush.bf16.msra.mxu0 %v784
    %796 = vmatmul.bf16.gmra.mxu0 %v630
    %v797 = vpop.f32.mrf.mxu0
    %v798 = vadd.f32 0.0, %v797
    %v799 = vpop.f32.mrf.mxu0
    %800 = vdwg.mxu0
    %v805 = vunpack.c.l.b16 %v128
    %v806 = vunpack.c.l.b16 %v129
    %v807 = vunpack.c.l.b16 %v130
    %v808 = vunpack.c.l.b16 %v131
    %v809 = vpack.c.b16 %v806, %v805
    %v810 = vpack.c.b16 %v808, %v807
    %813 = vmatpush.bf16.msra.mxu0 0
    %814 = vmatpush.bf16.msra.mxu0 0
    %815 = vmatpush.bf16.msra.mxu0 0
    %816 = vmatpush.bf16.msra.mxu0 0
    %817 = vmatpush.bf16.msra.mxu0 0
    %818 = vmatpush.bf16.msra.mxu0 0
    %819 = vmatpush.bf16.msra.mxu0 %v810
    %820 = vmatpush.bf16.msra.mxu0 %v809
    %821 = vmatmul.bf16.gmra.mxu0 %v658
    %v822 = vpop.f32.mrf.mxu0
    %v823 = vadd.f32 %v798, %v822
    %v824 = vpop.f32.mrf.mxu0
    %825 = vdwg.mxu0
    %v826 = vadd.f32 %v823, %v185
    %v827 = vxor.u32 %v673, 2147483648
    %v828 = vmul.f32 %v827, 1.442695
    %v829 = vpow.pop %v828
    %v830 = vadd.f32 %v829, 1.0
    %v831 = vrcp.pop %v830
    %v832 = vmul.f32 %v830, %v831
    %v833 = vsub.f32 1.0, %v832
    %v834 = vmul.f32 %v831, %v833
    %v835 = vadd.f32 %v831, %v834
    %vm836 = vweird.f32 %v830
    %vm837 = vweird.f32 %v831
    %vm838 = vmor %vm836, %vm837
    %v839 = vsel %vm838, %v831, %v835
    %v840 = vand.u32 2147483647, %v830
    %vm841 = vcmp.eq.f32.partialorder %v840, 8.507059e+37
    %v842 = vand.u32 %v830, 2147483648
    %v843 = vor.u32 1.1754944e-38, %v842
    %v844 = vsel %vm841, %v843, %v839
    %v845 = vmul.f32 1.0, %v844
    %v846 = vxor.u32 %v724, 2147483648
    %v847 = vmul.f32 %v846, 1.442695
    %v848 = vpow.pop %v847
    %v849 = vadd.f32 %v848, 1.0
    %v850 = vrcp.pop %v849
    %v851 = vmul.f32 %v849, %v850
    %v852 = vsub.f32 1.0, %v851
    %v853 = vmul.f32 %v850, %v852
    %v854 = vadd.f32 %v850, %v853
    %vm855 = vweird.f32 %v849
    %vm856 = vweird.f32 %v850
    %vm857 = vmor %vm855, %vm856
    %v858 = vsel %vm857, %v850, %v854
    %v859 = vand.u32 2147483647, %v849
    %vm860 = vcmp.eq.f32.partialorder %v859, 8.507059e+37
    %v861 = vand.u32 %v849, 2147483648
    %v862 = vor.u32 1.1754944e-38, %v861
    %v863 = vsel %vm860, %v862, %v858
    %v864 = vmul.f32 1.0, %v863
    %v865 = vtanh.pop %v775
    %v866 = vxor.u32 %v826, 2147483648
    %v867 = vmul.f32 %v866, 1.442695
    %v868 = vpow.pop %v867
    %v869 = vadd.f32 %v868, 1.0
    %v870 = vrcp.pop %v869
    %v871 = vmul.f32 %v869, %v870
    %v872 = vsub.f32 1.0, %v871
    %v873 = vmul.f32 %v870, %v872
    %v874 = vadd.f32 %v870, %v873
    %vm875 = vweird.f32 %v869
    %vm876 = vweird.f32 %v870
    %vm877 = vmor %vm875, %vm876
    %v878 = vsel %vm877, %v870, %v874
    %v879 = vand.u32 2147483647, %v869
    %vm880 = vcmp.eq.f32.partialorder %v879, 8.507059e+37
    %v881 = vand.u32 %v869, 2147483648
    %v882 = vor.u32 1.1754944e-38, %v881
    %v883 = vsel %vm880, %v882, %v878
    %v884 = vmul.f32 1.0, %v883
    %v885 = vmul.f32 %v864, %v194
    %v886 = vmul.f32 %v845, %v865
    %v887 = vadd.f32 %v885, %v886
    %v888 = vtanh.pop %v887
    %v889 = vmul.f32 %v884, %v888
    %v890 = vpack.c.bf16 %v889, %v889
    %vm891 = vcmask 253952
    %892 = vst.msk [vmem:[#allocation2] sm:$0x1] %vm891, %v889
    %893 = vmatpush.bf16.msra.mxu0 0
    %894 = vmatpush.bf16.msra.mxu0 0
    %895 = vmatpush.bf16.msra.mxu0 0
    %896 = vmatpush.bf16.msra.mxu0 0
    %897 = vmatpush.bf16.msra.mxu0 0
    %898 = vmatpush.bf16.msra.mxu0 0
    %899 = vmatpush.bf16.msra.mxu0 %v206
    %900 = vmatpush.bf16.msra.mxu0 %v205
    %901 = vmatmul.bf16.gmra.mxu0 %v658
    %v902 = vpop.f32.mrf.mxu0
    %v903 = vadd.f32 0.0, %v902
    %v904 = vpop.f32.mrf.mxu0
    %905 = vdwg.mxu0
    %v907 = vsel %vm209, %v890, 0
    %909 = vmatpush.bf16.msra.mxu0 0
    %910 = vmatpush.bf16.msra.mxu0 0
    %911 = vmatpush.bf16.msra.mxu0 0
    %912 = vmatpush.bf16.msra.mxu0 0
    %913 = vmatpush.bf16.msra.mxu0 0
    %914 = vmatpush.bf16.msra.mxu0 0
    %915 = vmatpush.bf16.msra.mxu0 %v235
    %916 = vmatpush.bf16.msra.mxu0 %v234
    %917 = vmatmul.bf16.gmra.mxu0 %v907
    %v918 = vpop.f32.mrf.mxu0
    %v919 = vadd.f32 %v903, %v918
    %v920 = vpop.f32.mrf.mxu0
    %921 = vdwg.mxu0
    %v922 = vadd.f32 %v919, %v176
    %v923 = vsel %vm255, %v922, -inf
    %924 = vmax.xlane.f32.xlu0 %v923
    %v925 = vpop.xlane.xlu0 %924
    %v926 = vsub.f32 %v922, %v925
    %v927 = vmul.f32 %v926, 1.442695
    %v928 = vpow.pop %v927
    %v929 = vsel %vm255, %v928, 0.0
    %930 = vadd.xlane.f32.xlu0 %v929
    %v931 = vpop.xlane.xlu0 %930
    %v932 = vrcp.pop %v931
    %v933 = vpack.c.bf16 %v928, %v928
    %v935 = vsel %vm267, %v933, 0
    %937 = vmatpush.bf16.msra.mxu0 0
    %938 = vmatpush.bf16.msra.mxu0 0
    %939 = vmatpush.bf16.msra.mxu0 0
    %940 = vmatpush.bf16.msra.mxu0 0
    %941 = vmatpush.bf16.msra.mxu0 0
    %942 = vmatpush.bf16.msra.mxu0 0
    %943 = vmatpush.bf16.msra.mxu0 0
    %944 = vmatpush.bf16.msra.mxu0 %v273
    %945 = vmatmul.bf16.gmra.mxu0 %v935
    %v946 = vpop.f32.mrf.mxu0
    %v947 = vadd.f32 0.0, %v946
    %v948 = vpop.f32.mrf.mxu0
    %949 = vdwg.mxu0
    %v950 = vmul.f32 %v947, %v932
    %v951 = vpack.c.bf16 %v950, %v950
    %v953 = vsel %vm209, %v951, 0
    %955 = vmatpush.bf16.msra.mxu0 0
    %956 = vmatpush.bf16.msra.mxu0 0
    %957 = vmatpush.bf16.msra.mxu0 0
    %958 = vmatpush.bf16.msra.mxu0 0
    %959 = vmatpush.bf16.msra.mxu0 0
    %960 = vmatpush.bf16.msra.mxu0 0
    %961 = vmatpush.bf16.msra.mxu0 %v299
    %962 = vmatpush.bf16.msra.mxu0 %v298
    %963 = vmatmul.bf16.gmra.mxu0 %v953
    %v964 = vpop.f32.mrf.mxu0
    %v965 = vadd.f32 0.0, %v964
    %v966 = vpop.f32.mrf.mxu0
    %967 = vdwg.mxu0
    %968 = vmatpush.bf16.msra.mxu0 0
    %969 = vmatpush.bf16.msra.mxu0 0
    %970 = vmatpush.bf16.msra.mxu0 0
    %971 = vmatpush.bf16.msra.mxu0 0
    %972 = vmatpush.bf16.msra.mxu0 0
    %973 = vmatpush.bf16.msra.mxu0 0
    %974 = vmatpush.bf16.msra.mxu0 %v327
    %975 = vmatpush.bf16.msra.mxu0 %v326
    %976 = vmatmul.bf16.gmra.mxu0 %v907
    %v977 = vpop.f32.mrf.mxu0
    %v978 = vadd.f32 %v965, %v977
    %v979 = vpop.f32.mrf.mxu0
    %980 = vdwg.mxu0
    %v981 = vadd.f32 %v978, %v177
    %v982 = vmax.f32 %v981, 0.0
    %v983 = vpack.c.bf16 %v982, %v982
    %984 = vmatpush.bf16.msra.mxu0 0
    %985 = vmatpush.bf16.msra.mxu0 0
    %986 = vmatpush.bf16.msra.mxu0 0
    %987 = vmatpush.bf16.msra.mxu0 0
    %988 = vmatpush.bf16.msra.mxu0 0
    %989 = vmatpush.bf16.msra.mxu0 0
    %990 = vmatpush.bf16.msra.mxu0 %v355
    %991 = vmatpush.bf16.msra.mxu0 %v354
    %992 = vmatmul.bf16.gmra.mxu0 %v658
    %v993 = vpop.f32.mrf.mxu0
    %v994 = vadd.f32 0.0, %v993
    %v995 = vpop.f32.mrf.mxu0
    %996 = vdwg.mxu0
    %v998 = vsel %vm209, %v983, 0
    %1000 = vmatpush.bf16.msra.mxu0 0
    %1001 = vmatpush.bf16.msra.mxu0 0
    %1002 = vmatpush.bf16.msra.mxu0 0
    %1003 = vmatpush.bf16.msra.mxu0 0
    %1004 = vmatpush.bf16.msra.mxu0 0
    %1005 = vmatpush.bf16.msra.mxu0 0
    %1006 = vmatpush.bf16.msra.mxu0 %v380
    %1007 = vmatpush.bf16.msra.mxu0 %v379
    %1008 = vmatmul.bf16.gmra.mxu0 %v998
    %v1009 = vpop.f32.mrf.mxu0
    %v1010 = vadd.f32 %v994, %v1009
    %v1011 = vpop.f32.mrf.mxu0
    %1012 = vdwg.mxu0
    %v1013 = vadd.f32 %v1010, %v178
    %1014 = vmatpush.bf16.msra.mxu0 0
    %1015 = vmatpush.bf16.msra.mxu0 0
    %1016 = vmatpush.bf16.msra.mxu0 0
    %1017 = vmatpush.bf16.msra.mxu0 0
    %1018 = vmatpush.bf16.msra.mxu0 0
    %1019 = vmatpush.bf16.msra.mxu0 0
    %1020 = vmatpush.bf16.msra.mxu0 %v409
    %1021 = vmatpush.bf16.msra.mxu0 %v408
    %1022 = vmatmul.bf16.gmra.mxu0 %v658
    %v1023 = vpop.f32.mrf.mxu0
    %v1024 = vadd.f32 0.0, %v1023
    %v1025 = vpop.f32.mrf.mxu0
    %1026 = vdwg.mxu0
    %1027 = vmatpush.bf16.msra.mxu0 0
    %1028 = vmatpush.bf16.msra.mxu0 0
    %1029 = vmatpush.bf16.msra.mxu0 0
    %1030 = vmatpush.bf16.msra.mxu0 0
    %1031 = vmatpush.bf16.msra.mxu0 0
    %1032 = vmatpush.bf16.msra.mxu0 0
    %1033 = vmatpush.bf16.msra.mxu0 %v434
    %1034 = vmatpush.bf16.msra.mxu0 %v433
    %1035 = vmatmul.bf16.gmra.mxu0 %v998
    %v1036 = vpop.f32.mrf.mxu0
    %v1037 = vadd.f32 %v1024, %v1036
    %v1038 = vpop.f32.mrf.mxu0
    %1039 = vdwg.mxu0
    %v1040 = vadd.f32 %v1037, %v179
    %1041 = vmatpush.bf16.msra.mxu0 0
    %1042 = vmatpush.bf16.msra.mxu0 0
    %1043 = vmatpush.bf16.msra.mxu0 0
    %1044 = vmatpush.bf16.msra.mxu0 0
    %1045 = vmatpush.bf16.msra.mxu0 0
    %1046 = vmatpush.bf16.msra.mxu0 0
    %1047 = vmatpush.bf16.msra.mxu0 %v460
    %1048 = vmatpush.bf16.msra.mxu0 %v459
    %1049 = vmatmul.bf16.gmra.mxu0 %v658
    %v1050 = vpop.f32.mrf.mxu0
    %v1051 = vadd.f32 0.0, %v1050
    %v1052 = vpop.f32.mrf.mxu0
    %1053 = vdwg.mxu0
    %1054 = vmatpush.bf16.msra.mxu0 0
    %1055 = vmatpush.bf16.msra.mxu0 0
    %1056 = vmatpush.bf16.msra.mxu0 0
    %1057 = vmatpush.bf16.msra.mxu0 0
    %1058 = vmatpush.bf16.msra.mxu0 0
    %1059 = vmatpush.bf16.msra.mxu0 0
    %1060 = vmatpush.bf16.msra.mxu0 %v485
    %1061 = vmatpush.bf16.msra.mxu0 %v484
    %1062 = vmatmul.bf16.gmra.mxu0 %v998
    %v1063 = vpop.f32.mrf.mxu0
    %v1064 = vadd.f32 %v1051, %v1063
    %v1065 = vpop.f32.mrf.mxu0
    %1066 = vdwg.mxu0
    %v1067 = vadd.f32 %v1064, %v180
    %1068 = vmatpush.bf16.msra.mxu0 0
    %1069 = vmatpush.bf16.msra.mxu0 0
    %1070 = vmatpush.bf16.msra.mxu0 0
    %1071 = vmatpush.bf16.msra.mxu0 0
    %1072 = vmatpush.bf16.msra.mxu0 0
    %1073 = vmatpush.bf16.msra.mxu0 0
    %1074 = vmatpush.bf16.msra.mxu0 %v511
    %1075 = vmatpush.bf16.msra.mxu0 %v510
    %1076 = vmatmul.bf16.gmra.mxu0 %v658
    %v1077 = vpop.f32.mrf.mxu0
    %v1078 = vadd.f32 0.0, %v1077
    %v1079 = vpop.f32.mrf.mxu0
    %1080 = vdwg.mxu0
    %1081 = vmatpush.bf16.msra.mxu0 0
    %1082 = vmatpush.bf16.msra.mxu0 0
    %1083 = vmatpush.bf16.msra.mxu0 0
    %1084 = vmatpush.bf16.msra.mxu0 0
    %1085 = vmatpush.bf16.msra.mxu0 0
    %1086 = vmatpush.bf16.msra.mxu0 0
    %1087 = vmatpush.bf16.msra.mxu0 %v536
    %1088 = vmatpush.bf16.msra.mxu0 %v535
    %1089 = vmatmul.bf16.gmra.mxu0 %v998
    %v1090 = vpop.f32.mrf.mxu0
    %v1091 = vadd.f32 %v1078, %v1090
    %v1092 = vpop.f32.mrf.mxu0
    %1093 = vdwg.mxu0
    %v1094 = vadd.f32 %v1091, %v181
    %v1095 = vxor.u32 %v1013, 2147483648
    %v1096 = vmul.f32 %v1095, 1.442695
    %v1097 = vpow.pop %v1096
    %v1098 = vadd.f32 %v1097, 1.0
    %v1099 = vrcp.pop %v1098
    %v1100 = vmul.f32 %v1098, %v1099
    %v1101 = vsub.f32 1.0, %v1100
    %v1102 = vmul.f32 %v1099, %v1101
    %v1103 = vadd.f32 %v1099, %v1102
    %vm1104 = vweird.f32 %v1098
    %vm1105 = vweird.f32 %v1099
    %vm1106 = vmor %vm1104, %vm1105
    %v1107 = vsel %vm1106, %v1099, %v1103
    %v1108 = vand.u32 2147483647, %v1098
    %vm1109 = vcmp.eq.f32.partialorder %v1108, 8.507059e+37
    %v1110 = vand.u32 %v1098, 2147483648
    %v1111 = vor.u32 1.1754944e-38, %v1110
    %v1112 = vsel %vm1109, %v1111, %v1107
    %v1113 = vmul.f32 1.0, %v1112
    %v1114 = vxor.u32 %v1040, 2147483648
    %v1115 = vmul.f32 %v1114, 1.442695
    %v1116 = vpow.pop %v1115
    %v1117 = vadd.f32 %v1116, 1.0
    %v1118 = vrcp.pop %v1117
    %v1119 = vmul.f32 %v1117, %v1118
    %v1120 = vsub.f32 1.0, %v1119
    %v1121 = vmul.f32 %v1118, %v1120
    %v1122 = vadd.f32 %v1118, %v1121
    %vm1123 = vweird.f32 %v1117
    %vm1124 = vweird.f32 %v1118
    %vm1125 = vmor %vm1123, %vm1124
    %v1126 = vsel %vm1125, %v1118, %v1122
    %v1127 = vand.u32 2147483647, %v1117
    %vm1128 = vcmp.eq.f32.partialorder %v1127, 8.507059e+37
    %v1129 = vand.u32 %v1117, 2147483648
    %v1130 = vor.u32 1.1754944e-38, %v1129
    %v1131 = vsel %vm1128, %v1130, %v1126
    %v1132 = vmul.f32 1.0, %v1131
    %v1133 = vtanh.pop %v1067
    %v1134 = vxor.u32 %v1094, 2147483648
    %v1135 = vmul.f32 %v1134, 1.442695
    %v1136 = vpow.pop %v1135
    %v1137 = vadd.f32 %v1136, 1.0
    %v1138 = vrcp.pop %v1137
    %v1139 = vmul.f32 %v1137, %v1138
    %v1140 = vsub.f32 1.0, %v1139
    %v1141 = vmul.f32 %v1138, %v1140
    %v1142 = vadd.f32 %v1138, %v1141
    %vm1143 = vweird.f32 %v1137
    %vm1144 = vweird.f32 %v1138
    %vm1145 = vmor %vm1143, %vm1144
    %v1146 = vsel %vm1145, %v1138, %v1142
    %v1147 = vand.u32 2147483647, %v1137
    %vm1148 = vcmp.eq.f32.partialorder %v1147, 8.507059e+37
    %v1149 = vand.u32 %v1137, 2147483648
    %v1150 = vor.u32 1.1754944e-38, %v1149
    %v1151 = vsel %vm1148, %v1150, %v1146
    %v1152 = vmul.f32 1.0, %v1151
    %v1153 = vmul.f32 %v1132, %v613
    %v1154 = vmul.f32 %v1113, %v1133
    %v1155 = vadd.f32 %v1153, %v1154
    %v1156 = vtanh.pop %v1155
    %v1157 = vmul.f32 %v1152, %v1156
    %v1158 = vpack.c.bf16 %v1157, %v1157
    %1159 = vmatpush.bf16.msra.mxu0 0
    %1160 = vmatpush.bf16.msra.mxu0 0
    %1161 = vmatpush.bf16.msra.mxu0 0
    %1162 = vmatpush.bf16.msra.mxu0 0
    %1163 = vmatpush.bf16.msra.mxu0 0
    %1164 = vmatpush.bf16.msra.mxu0 0
    %1165 = vmatpush.bf16.msra.mxu0 %v626
    %1166 = vmatpush.bf16.msra.mxu0 %v625
    %1167 = vmatmul.bf16.gmra.mxu0 %v907
    %v1168 = vpop.f32.mrf.mxu0
    %v1169 = vadd.f32 0.0, %v1168
    %v1170 = vpop.f32.mrf.mxu0
    %1171 = vdwg.mxu0
    %v1173 = vsel %vm209, %v1158, 0
    %1175 = vmatpush.bf16.msra.mxu0 0
    %1176 = vmatpush.bf16.msra.mxu0 0
    %1177 = vmatpush.bf16.msra.mxu0 0
    %1178 = vmatpush.bf16.msra.mxu0 0
    %1179 = vmatpush.bf16.msra.mxu0 0
    %1180 = vmatpush.bf16.msra.mxu0 0
    %1181 = vmatpush.bf16.msra.mxu0 %v654
    %1182 = vmatpush.bf16.msra.mxu0 %v653
    %1183 = vmatmul.bf16.gmra.mxu0 %v1173
    %v1184 = vpop.f32.mrf.mxu0
    %v1185 = vadd.f32 %v1169, %v1184
    %v1186 = vpop.f32.mrf.mxu0
    %1187 = vdwg.mxu0
    %v1188 = vadd.f32 %v1185, %v182
    %1189 = vmatpush.bf16.msra.mxu0 0
    %1190 = vmatpush.bf16.msra.mxu0 0
    %1191 = vmatpush.bf16.msra.mxu0 0
    %1192 = vmatpush.bf16.msra.mxu0 0
    %1193 = vmatpush.bf16.msra.mxu0 0
    %1194 = vmatpush.bf16.msra.mxu0 0
    %1195 = vmatpush.bf16.msra.mxu0 %v683
    %1196 = vmatpush.bf16.msra.mxu0 %v682
    %1197 = vmatmul.bf16.gmra.mxu0 %v907
    %v1198 = vpop.f32.mrf.mxu0
    %v1199 = vadd.f32 0.0, %v1198
    %v1200 = vpop.f32.mrf.mxu0
    %1201 = vdwg.mxu0
    %1202 = vmatpush.bf16.msra.mxu0 0
    %1203 = vmatpush.bf16.msra.mxu0 0
    %1204 = vmatpush.bf16.msra.mxu0 0
    %1205 = vmatpush.bf16.msra.mxu0 0
    %1206 = vmatpush.bf16.msra.mxu0 0
    %1207 = vmatpush.bf16.msra.mxu0 0
    %1208 = vmatpush.bf16.msra.mxu0 %v708
    %1209 = vmatpush.bf16.msra.mxu0 %v707
    %1210 = vmatmul.bf16.gmra.mxu0 %v1173
    %v1211 = vpop.f32.mrf.mxu0
    %v1212 = vadd.f32 %v1199, %v1211
    %v1213 = vpop.f32.mrf.mxu0
    %1214 = vdwg.mxu0
    %v1215 = vadd.f32 %v1212, %v183
    %1216 = vmatpush.bf16.msra.mxu0 0
    %1217 = vmatpush.bf16.msra.mxu0 0
    %1218 = vmatpush.bf16.msra.mxu0 0
    %1219 = vmatpush.bf16.msra.mxu0 0
    %1220 = vmatpush.bf16.msra.mxu0 0
    %1221 = vmatpush.bf16.msra.mxu0 0
    %1222 = vmatpush.bf16.msra.mxu0 %v734
    %1223 = vmatpush.bf16.msra.mxu0 %v733
    %1224 = vmatmul.bf16.gmra.mxu0 %v907
    %v1225 = vpop.f32.mrf.mxu0
    %v1226 = vadd.f32 0.0, %v1225
    %v1227 = vpop.f32.mrf.mxu0
    %1228 = vdwg.mxu0
    %1229 = vmatpush.bf16.msra.mxu0 0
    %1230 = vmatpush.bf16.msra.mxu0 0
    %1231 = vmatpush.bf16.msra.mxu0 0
    %1232 = vmatpush.bf16.msra.mxu0 0
    %1233 = vmatpush.bf16.msra.mxu0 0
    %1234 = vmatpush.bf16.msra.mxu0 0
    %1235 = vmatpush.bf16.msra.mxu0 %v759
    %1236 = vmatpush.bf16.msra.mxu0 %v758
    %1237 = vmatmul.bf16.gmra.mxu0 %v1173
    %v1238 = vpop.f32.mrf.mxu0
    %v1239 = vadd.f32 %v1226, %v1238
    %v1240 = vpop.f32.mrf.mxu0
    %1241 = vdwg.mxu0
    %v1242 = vadd.f32 %v1239, %v184
    %1243 = vmatpush.bf16.msra.mxu0 0
    %1244 = vmatpush.bf16.msra.mxu0 0
    %1245 = vmatpush.bf16.msra.mxu0 0
    %1246 = vmatpush.bf16.msra.mxu0 0
    %1247 = vmatpush.bf16.msra.mxu0 0
    %1248 = vmatpush.bf16.msra.mxu0 0
    %1249 = vmatpush.bf16.msra.mxu0 %v785
    %1250 = vmatpush.bf16.msra.mxu0 %v784
    %1251 = vmatmul.bf16.gmra.mxu0 %v907
    %v1252 = vpop.f32.mrf.mxu0
    %v1253 = vadd.f32 0.0, %v1252
    %v1254 = vpop.f32.mrf.mxu0
    %1255 = vdwg.mxu0
    %1256 = vmatpush.bf16.msra.mxu0 0
    %1257 = vmatpush.bf16.msra.mxu0 0
    %1258 = vmatpush.bf16.msra.mxu0 0
    %1259 = vmatpush.bf16.msra.mxu0 0
    %1260 = vmatpush.bf16.msra.mxu0 0
    %1261 = vmatpush.bf16.msra.mxu0 0
    %1262 = vmatpush.bf16.msra.mxu0 %v810
    %1263 = vmatpush.bf16.msra.mxu0 %v809
    %1264 = vmatmul.bf16.gmra.mxu0 %v1173
    %v1265 = vpop.f32.mrf.mxu0
    %v1266 = vadd.f32 %v1253, %v1265
    %v1267 = vpop.f32.mrf.mxu0
    %1268 = vdwg.mxu0
    %v1269 = vadd.f32 %v1266, %v185
    %v1270 = vxor.u32 %v1188, 2147483648
    %v1271 = vmul.f32 %v1270, 1.442695
    %v1272 = vpow.pop %v1271
    %v1273 = vadd.f32 %v1272, 1.0
    %v1274 = vrcp.pop %v1273
    %v1275 = vmul.f32 %v1273, %v1274
    %v1276 = vsub.f32 1.0, %v1275
    %v1277 = vmul.f32 %v1274, %v1276
    %v1278 = vadd.f32 %v1274, %v1277
    %vm1279 = vweird.f32 %v1273
    %vm1280 = vweird.f32 %v1274
    %vm1281 = vmor %vm1279, %vm1280
    %v1282 = vsel %vm1281, %v1274, %v1278
    %v1283 = vand.u32 2147483647, %v1273
    %vm1284 = vcmp.eq.f32.partialorder %v1283, 8.507059e+37
    %v1285 = vand.u32 %v1273, 2147483648
    %v1286 = vor.u32 1.1754944e-38, %v1285
    %v1287 = vsel %vm1284, %v1286, %v1282
    %v1288 = vmul.f32 1.0, %v1287
    %v1289 = vxor.u32 %v1215, 2147483648
    %v1290 = vmul.f32 %v1289, 1.442695
    %v1291 = vpow.pop %v1290
    %v1292 = vadd.f32 %v1291, 1.0
    %v1293 = vrcp.pop %v1292
    %v1294 = vmul.f32 %v1292, %v1293
    %v1295 = vsub.f32 1.0, %v1294
    %v1296 = vmul.f32 %v1293, %v1295
    %v1297 = vadd.f32 %v1293, %v1296
    %vm1298 = vweird.f32 %v1292
    %vm1299 = vweird.f32 %v1293
    %vm1300 = vmor %vm1298, %vm1299
    %v1301 = vsel %vm1300, %v1293, %v1297
    %v1302 = vand.u32 2147483647, %v1292
    %vm1303 = vcmp.eq.f32.partialorder %v1302, 8.507059e+37
    %v1304 = vand.u32 %v1292, 2147483648
    %v1305 = vor.u32 1.1754944e-38, %v1304
    %v1306 = vsel %vm1303, %v1305, %v1301
    %v1307 = vmul.f32 1.0, %v1306
    %v1308 = vtanh.pop %v1242
    %v1309 = vxor.u32 %v1269, 2147483648
    %v1310 = vmul.f32 %v1309, 1.442695
    %v1311 = vpow.pop %v1310
    %v1312 = vadd.f32 %v1311, 1.0
    %v1313 = vrcp.pop %v1312
    %v1314 = vmul.f32 %v1312, %v1313
    %v1315 = vsub.f32 1.0, %v1314
    %v1316 = vmul.f32 %v1313, %v1315
    %v1317 = vadd.f32 %v1313, %v1316
    %vm1318 = vweird.f32 %v1312
    %vm1319 = vweird.f32 %v1313
    %vm1320 = vmor %vm1318, %vm1319
    %v1321 = vsel %vm1320, %v1313, %v1317
    %v1322 = vand.u32 2147483647, %v1312
    %vm1323 = vcmp.eq.f32.partialorder %v1322, 8.507059e+37
    %v1324 = vand.u32 %v1312, 2147483648
    %v1325 = vor.u32 1.1754944e-38, %v1324
    %v1326 = vsel %vm1323, %v1325, %v1321
    %v1327 = vmul.f32 1.0, %v1326
    %v1328 = vmul.f32 %v1307, %v887
    %v1329 = vmul.f32 %v1288, %v1308
    %v1330 = vadd.f32 %v1328, %v1329
    %v1331 = vtanh.pop %v1330
    %v1332 = vmul.f32 %v1327, %v1331
    %v1333 = vpack.c.bf16 %v1332, %v1332
    %1334 = vst.msk [vmem:[#allocation2 + $0x1] sm:$0x1] %vm891, %v1332
    %1335 = vmatpush.bf16.msra.mxu0 0
    %1336 = vmatpush.bf16.msra.mxu0 0
    %1337 = vmatpush.bf16.msra.mxu0 0
    %1338 = vmatpush.bf16.msra.mxu0 0
    %1339 = vmatpush.bf16.msra.mxu0 0
    %1340 = vmatpush.bf16.msra.mxu0 0
    %1341 = vmatpush.bf16.msra.mxu0 %v206
    %1342 = vmatpush.bf16.msra.mxu0 %v205
    %1343 = vmatmul.bf16.gmra.mxu0 %v1173
    %v1344 = vpop.f32.mrf.mxu0
    %v1345 = vadd.f32 0.0, %v1344
    %v1346 = vpop.f32.mrf.mxu0
    %1347 = vdwg.mxu0
    %v1349 = vsel %vm209, %v1333, 0
    %1351 = vmatpush.bf16.msra.mxu0 0
    %1352 = vmatpush.bf16.msra.mxu0 0
    %1353 = vmatpush.bf16.msra.mxu0 0
    %1354 = vmatpush.bf16.msra.mxu0 0
    %1355 = vmatpush.bf16.msra.mxu0 0
    %1356 = vmatpush.bf16.msra.mxu0 0
    %1357 = vmatpush.bf16.msra.mxu0 %v235
    %1358 = vmatpush.bf16.msra.mxu0 %v234
    %1359 = vmatmul.bf16.gmra.mxu0 %v1349
    %v1360 = vpop.f32.mrf.mxu0
    %v1361 = vadd.f32 %v1345, %v1360
    %v1362 = vpop.f32.mrf.mxu0
    %1363 = vdwg.mxu0
    %v1364 = vadd.f32 %v1361, %v176
    %v1365 = vsel %vm255, %v1364, -inf
    %1366 = vmax.xlane.f32.xlu0 %v1365
    %v1367 = vpop.xlane.xlu0 %1366
    %v1368 = vsub.f32 %v1364, %v1367
    %v1369 = vmul.f32 %v1368, 1.442695
    %v1370 = vpow.pop %v1369
    %v1371 = vsel %vm255, %v1370, 0.0
    %1372 = vadd.xlane.f32.xlu0 %v1371
    %v1373 = vpop.xlane.xlu0 %1372
    %v1374 = vrcp.pop %v1373
    %v1375 = vpack.c.bf16 %v1370, %v1370
    %v1377 = vsel %vm267, %v1375, 0
    %1379 = vmatpush.bf16.msra.mxu0 0
    %1380 = vmatpush.bf16.msra.mxu0 0
    %1381 = vmatpush.bf16.msra.mxu0 0
    %1382 = vmatpush.bf16.msra.mxu0 0
    %1383 = vmatpush.bf16.msra.mxu0 0
    %1384 = vmatpush.bf16.msra.mxu0 0
    %1385 = vmatpush.bf16.msra.mxu0 0
    %1386 = vmatpush.bf16.msra.mxu0 %v273
    %1387 = vmatmul.bf16.gmra.mxu0 %v1377
    %v1388 = vpop.f32.mrf.mxu0
    %v1389 = vadd.f32 0.0, %v1388
    %v1390 = vpop.f32.mrf.mxu0
    %1391 = vdwg.mxu0
    %v1392 = vmul.f32 %v1389, %v1374
    %v1393 = vpack.c.bf16 %v1392, %v1392
    %v1395 = vsel %vm209, %v1393, 0
    %1397 = vmatpush.bf16.msra.mxu0 0
    %1398 = vmatpush.bf16.msra.mxu0 0
    %1399 = vmatpush.bf16.msra.mxu0 0
    %1400 = vmatpush.bf16.msra.mxu0 0
    %1401 = vmatpush.bf16.msra.mxu0 0
    %1402 = vmatpush.bf16.msra.mxu0 0
    %1403 = vmatpush.bf16.msra.mxu0 %v299
    %1404 = vmatpush.bf16.msra.mxu0 %v298
    %1405 = vmatmul.bf16.gmra.mxu0 %v1395
    %v1406 = vpop.f32.mrf.mxu0
    %v1407 = vadd.f32 0.0, %v1406
    %v1408 = vpop.f32.mrf.mxu0
    %1409 = vdwg.mxu0
    %1410 = vmatpush.bf16.msra.mxu0 0
    %1411 = vmatpush.bf16.msra.mxu0 0
    %1412 = vmatpush.bf16.msra.mxu0 0
    %1413 = vmatpush.bf16.msra.mxu0 0
    %1414 = vmatpush.bf16.msra.mxu0 0
    %1415 = vmatpush.bf16.msra.mxu0 0
    %1416 = vmatpush.bf16.msra.mxu0 %v327
    %1417 = vmatpush.bf16.msra.mxu0 %v326
    %1418 = vmatmul.bf16.gmra.mxu0 %v1349
    %v1419 = vpop.f32.mrf.mxu0
    %v1420 = vadd.f32 %v1407, %v1419
    %v1421 = vpop.f32.mrf.mxu0
    %1422 = vdwg.mxu0
    %v1423 = vadd.f32 %v1420, %v177
    %v1424 = vmax.f32 %v1423, 0.0
    %v1425 = vpack.c.bf16 %v1424, %v1424
    %1426 = vmatpush.bf16.msra.mxu0 0
    %1427 = vmatpush.bf16.msra.mxu0 0
    %1428 = vmatpush.bf16.msra.mxu0 0
    %1429 = vmatpush.bf16.msra.mxu0 0
    %1430 = vmatpush.bf16.msra.mxu0 0
    %1431 = vmatpush.bf16.msra.mxu0 0
    %1432 = vmatpush.bf16.msra.mxu0 %v355
    %1433 = vmatpush.bf16.msra.mxu0 %v354
    %1434 = vmatmul.bf16.gmra.mxu0 %v1173
    %v1435 = vpop.f32.mrf.mxu0
    %v1436 = vadd.f32 0.0, %v1435
    %v1437 = vpop.f32.mrf.mxu0
    %1438 = vdwg.mxu0
    %v1440 = vsel %vm209, %v1425, 0
    %1442 = vmatpush.bf16.msra.mxu0 0
    %1443 = vmatpush.bf16.msra.mxu0 0
    %1444 = vmatpush.bf16.msra.mxu0 0
    %1445 = vmatpush.bf16.msra.mxu0 0
    %1446 = vmatpush.bf16.msra.mxu0 0
    %1447 = vmatpush.bf16.msra.mxu0 0
    %1448 = vmatpush.bf16.msra.mxu0 %v380
    %1449 = vmatpush.bf16.msra.mxu0 %v379
    %1450 = vmatmul.bf16.gmra.mxu0 %v1440
    %v1451 = vpop.f32.mrf.mxu0
    %v1452 = vadd.f32 %v1436, %v1451
    %v1453 = vpop.f32.mrf.mxu0
    %1454 = vdwg.mxu0
    %v1455 = vadd.f32 %v1452, %v178
    %1456 = vmatpush.bf16.msra.mxu0 0
    %1457 = vmatpush.bf16.msra.mxu0 0
    %1458 = vmatpush.bf16.msra.mxu0 0
    %1459 = vmatpush.bf16.msra.mxu0 0
    %1460 = vmatpush.bf16.msra.mxu0 0
    %1461 = vmatpush.bf16.msra.mxu0 0
    %1462 = vmatpush.bf16.msra.mxu0 %v409
    %1463 = vmatpush.bf16.msra.mxu0 %v408
    %1464 = vmatmul.bf16.gmra.mxu0 %v1173
    %v1465 = vpop.f32.mrf.mxu0
    %v1466 = vadd.f32 0.0, %v1465
    %v1467 = vpop.f32.mrf.mxu0
    %1468 = vdwg.mxu0
    %1469 = vmatpush.bf16.msra.mxu0 0
    %1470 = vmatpush.bf16.msra.mxu0 0
    %1471 = vmatpush.bf16.msra.mxu0 0
    %1472 = vmatpush.bf16.msra.mxu0 0
    %1473 = vmatpush.bf16.msra.mxu0 0
    %1474 = vmatpush.bf16.msra.mxu0 0
    %1475 = vmatpush.bf16.msra.mxu0 %v434
    %1476 = vmatpush.bf16.msra.mxu0 %v433
    %1477 = vmatmul.bf16.gmra.mxu0 %v1440
    %v1478 = vpop.f32.mrf.mxu0
    %v1479 = vadd.f32 %v1466, %v1478
    %v1480 = vpop.f32.mrf.mxu0
    %1481 = vdwg.mxu0
    %v1482 = vadd.f32 %v1479, %v179
    %1483 = vmatpush.bf16.msra.mxu0 0
    %1484 = vmatpush.bf16.msra.mxu0 0
    %1485 = vmatpush.bf16.msra.mxu0 0
    %1486 = vmatpush.bf16.msra.mxu0 0
    %1487 = vmatpush.bf16.msra.mxu0 0
    %1488 = vmatpush.bf16.msra.mxu0 0
    %1489 = vmatpush.bf16.msra.mxu0 %v460
    %1490 = vmatpush.bf16.msra.mxu0 %v459
    %1491 = vmatmul.bf16.gmra.mxu0 %v1173
    %v1492 = vpop.f32.mrf.mxu0
    %v1493 = vadd.f32 0.0, %v1492
    %v1494 = vpop.f32.mrf.mxu0
    %1495 = vdwg.mxu0
    %1496 = vmatpush.bf16.msra.mxu0 0
    %1497 = vmatpush.bf16.msra.mxu0 0
    %1498 = vmatpush.bf16.msra.mxu0 0
    %1499 = vmatpush.bf16.msra.mxu0 0
    %1500 = vmatpush.bf16.msra.mxu0 0
    %1501 = vmatpush.bf16.msra.mxu0 0
    %1502 = vmatpush.bf16.msra.mxu0 %v485
    %1503 = vmatpush.bf16.msra.mxu0 %v484
    %1504 = vmatmul.bf16.gmra.mxu0 %v1440
    %v1505 = vpop.f32.mrf.mxu0
    %v1506 = vadd.f32 %v1493, %v1505
    %v1507 = vpop.f32.mrf.mxu0
    %1508 = vdwg.mxu0
    %v1509 = vadd.f32 %v1506, %v180
    %1510 = vmatpush.bf16.msra.mxu0 0
    %1511 = vmatpush.bf16.msra.mxu0 0
    %1512 = vmatpush.bf16.msra.mxu0 0
    %1513 = vmatpush.bf16.msra.mxu0 0
    %1514 = vmatpush.bf16.msra.mxu0 0
    %1515 = vmatpush.bf16.msra.mxu0 0
    %1516 = vmatpush.bf16.msra.mxu0 %v511
    %1517 = vmatpush.bf16.msra.mxu0 %v510
    %1518 = vmatmul.bf16.gmra.mxu0 %v1173
    %v1519 = vpop.f32.mrf.mxu0
    %v1520 = vadd.f32 0.0, %v1519
    %v1521 = vpop.f32.mrf.mxu0
    %1522 = vdwg.mxu0
    %1523 = vmatpush.bf16.msra.mxu0 0
    %1524 = vmatpush.bf16.msra.mxu0 0
    %1525 = vmatpush.bf16.msra.mxu0 0
    %1526 = vmatpush.bf16.msra.mxu0 0
    %1527 = vmatpush.bf16.msra.mxu0 0
    %1528 = vmatpush.bf16.msra.mxu0 0
    %1529 = vmatpush.bf16.msra.mxu0 %v536
    %1530 = vmatpush.bf16.msra.mxu0 %v535
    %1531 = vmatmul.bf16.gmra.mxu0 %v1440
    %v1532 = vpop.f32.mrf.mxu0
    %v1533 = vadd.f32 %v1520, %v1532
    %v1534 = vpop.f32.mrf.mxu0
    %1535 = vdwg.mxu0
    %v1536 = vadd.f32 %v1533, %v181
    %v1537 = vxor.u32 %v1455, 2147483648
    %v1538 = vmul.f32 %v1537, 1.442695
    %v1539 = vpow.pop %v1538
    %v1540 = vadd.f32 %v1539, 1.0
    %v1541 = vrcp.pop %v1540
    %v1542 = vmul.f32 %v1540, %v1541
    %v1543 = vsub.f32 1.0, %v1542
    %v1544 = vmul.f32 %v1541, %v1543
    %v1545 = vadd.f32 %v1541, %v1544
    %vm1546 = vweird.f32 %v1540
    %vm1547 = vweird.f32 %v1541
    %vm1548 = vmor %vm1546, %vm1547
    %v1549 = vsel %vm1548, %v1541, %v1545
    %v1550 = vand.u32 2147483647, %v1540
    %vm1551 = vcmp.eq.f32.partialorder %v1550, 8.507059e+37
    %v1552 = vand.u32 %v1540, 2147483648
    %v1553 = vor.u32 1.1754944e-38, %v1552
    %v1554 = vsel %vm1551, %v1553, %v1549
    %v1555 = vmul.f32 1.0, %v1554
    %v1556 = vxor.u32 %v1482, 2147483648
    %v1557 = vmul.f32 %v1556, 1.442695
    %v1558 = vpow.pop %v1557
    %v1559 = vadd.f32 %v1558, 1.0
    %v1560 = vrcp.pop %v1559
    %v1561 = vmul.f32 %v1559, %v1560
    %v1562 = vsub.f32 1.0, %v1561
    %v1563 = vmul.f32 %v1560, %v1562
    %v1564 = vadd.f32 %v1560, %v1563
    %vm1565 = vweird.f32 %v1559
    %vm1566 = vweird.f32 %v1560
    %vm1567 = vmor %vm1565, %vm1566
    %v1568 = vsel %vm1567, %v1560, %v1564
    %v1569 = vand.u32 2147483647, %v1559
    %vm1570 = vcmp.eq.f32.partialorder %v1569, 8.507059e+37
    %v1571 = vand.u32 %v1559, 2147483648
    %v1572 = vor.u32 1.1754944e-38, %v1571
    %v1573 = vsel %vm1570, %v1572, %v1568
    %v1574 = vmul.f32 1.0, %v1573
    %v1575 = vtanh.pop %v1509
    %v1576 = vxor.u32 %v1536, 2147483648
    %v1577 = vmul.f32 %v1576, 1.442695
    %v1578 = vpow.pop %v1577
    %v1579 = vadd.f32 %v1578, 1.0
    %v1580 = vrcp.pop %v1579
    %v1581 = vmul.f32 %v1579, %v1580
    %v1582 = vsub.f32 1.0, %v1581
    %v1583 = vmul.f32 %v1580, %v1582
    %v1584 = vadd.f32 %v1580, %v1583
    %vm1585 = vweird.f32 %v1579
    %vm1586 = vweird.f32 %v1580
    %vm1587 = vmor %vm1585, %vm1586
    %v1588 = vsel %vm1587, %v1580, %v1584
    %v1589 = vand.u32 2147483647, %v1579
    %vm1590 = vcmp.eq.f32.partialorder %v1589, 8.507059e+37
    %v1591 = vand.u32 %v1579, 2147483648
    %v1592 = vor.u32 1.1754944e-38, %v1591
    %v1593 = vsel %vm1590, %v1592, %v1588
    %v1594 = vmul.f32 1.0, %v1593
    %v1595 = vmul.f32 %v1574, %v1155
    %v1596 = vmul.f32 %v1555, %v1575
    %v1597 = vadd.f32 %v1595, %v1596
    %v1598 = vtanh.pop %v1597
    %v1599 = vmul.f32 %v1594, %v1598
    %v1600 = vpack.c.bf16 %v1599, %v1599
    %1601 = vmatpush.bf16.msra.mxu0 0
    %1602 = vmatpush.bf16.msra.mxu0 0
    %1603 = vmatpush.bf16.msra.mxu0 0
    %1604 = vmatpush.bf16.msra.mxu0 0
    %1605 = vmatpush.bf16.msra.mxu0 0
    %1606 = vmatpush.bf16.msra.mxu0 0
    %1607 = vmatpush.bf16.msra.mxu0 %v626
    %1608 = vmatpush.bf16.msra.mxu0 %v625
    %1609 = vmatmul.bf16.gmra.mxu0 %v1349
    %v1610 = vpop.f32.mrf.mxu0
    %v1611 = vadd.f32 0.0, %v1610
    %v1612 = vpop.f32.mrf.mxu0
    %1613 = vdwg.mxu0
    %v1615 = vsel %vm209, %v1600, 0
    %1617 = vmatpush.bf16.msra.mxu0 0
    %1618 = vmatpush.bf16.msra.mxu0 0
    %1619 = vmatpush.bf16.msra.mxu0 0
    %1620 = vmatpush.bf16.msra.mxu0 0
    %1621 = vmatpush.bf16.msra.mxu0 0
    %1622 = vmatpush.bf16.msra.mxu0 0
    %1623 = vmatpush.bf16.msra.mxu0 %v654
    %1624 = vmatpush.bf16.msra.mxu0 %v653
    %1625 = vmatmul.bf16.gmra.mxu0 %v1615
    %v1626 = vpop.f32.mrf.mxu0
    %v1627 = vadd.f32 %v1611, %v1626
    %v1628 = vpop.f32.mrf.mxu0
    %1629 = vdwg.mxu0
    %v1630 = vadd.f32 %v1627, %v182
    %1631 = vmatpush.bf16.msra.mxu0 0
    %1632 = vmatpush.bf16.msra.mxu0 0
    %1633 = vmatpush.bf16.msra.mxu0 0
    %1634 = vmatpush.bf16.msra.mxu0 0
    %1635 = vmatpush.bf16.msra.mxu0 0
    %1636 = vmatpush.bf16.msra.mxu0 0
    %1637 = vmatpush.bf16.msra.mxu0 %v683
    %1638 = vmatpush.bf16.msra.mxu0 %v682
    %1639 = vmatmul.bf16.gmra.mxu0 %v1349
    %v1640 = vpop.f32.mrf.mxu0
    %v1641 = vadd.f32 0.0, %v1640
    %v1642 = vpop.f32.mrf.mxu0
    %1643 = vdwg.mxu0
    %1644 = vmatpush.bf16.msra.mxu0 0
    %1645 = vmatpush.bf16.msra.mxu0 0
    %1646 = vmatpush.bf16.msra.mxu0 0
    %1647 = vmatpush.bf16.msra.mxu0 0
    %1648 = vmatpush.bf16.msra.mxu0 0
    %1649 = vmatpush.bf16.msra.mxu0 0
    %1650 = vmatpush.bf16.msra.mxu0 %v708
    %1651 = vmatpush.bf16.msra.mxu0 %v707
    %1652 = vmatmul.bf16.gmra.mxu0 %v1615
    %v1653 = vpop.f32.mrf.mxu0
    %v1654 = vadd.f32 %v1641, %v1653
    %v1655 = vpop.f32.mrf.mxu0
    %1656 = vdwg.mxu0
    %v1657 = vadd.f32 %v1654, %v183
    %1658 = vmatpush.bf16.msra.mxu0 0
    %1659 = vmatpush.bf16.msra.mxu0 0
    %1660 = vmatpush.bf16.msra.mxu0 0
    %1661 = vmatpush.bf16.msra.mxu0 0
    %1662 = vmatpush.bf16.msra.mxu0 0
    %1663 = vmatpush.bf16.msra.mxu0 0
    %1664 = vmatpush.bf16.msra.mxu0 %v734
    %1665 = vmatpush.bf16.msra.mxu0 %v733
    %1666 = vmatmul.bf16.gmra.mxu0 %v1349
    %v1667 = vpop.f32.mrf.mxu0
    %v1668 = vadd.f32 0.0, %v1667
    %v1669 = vpop.f32.mrf.mxu0
    %1670 = vdwg.mxu0
    %1671 = vmatpush.bf16.msra.mxu0 0
    %1672 = vmatpush.bf16.msra.mxu0 0
    %1673 = vmatpush.bf16.msra.mxu0 0
    %1674 = vmatpush.bf16.msra.mxu0 0
    %1675 = vmatpush.bf16.msra.mxu0 0
    %1676 = vmatpush.bf16.msra.mxu0 0
    %1677 = vmatpush.bf16.msra.mxu0 %v759
    %1678 = vmatpush.bf16.msra.mxu0 %v758
    %1679 = vmatmul.bf16.gmra.mxu0 %v1615
    %v1680 = vpop.f32.mrf.mxu0
    %v1681 = vadd.f32 %v1668, %v1680
    %v1682 = vpop.f32.mrf.mxu0
    %1683 = vdwg.mxu0
    %v1684 = vadd.f32 %v1681, %v184
    %1685 = vmatpush.bf16.msra.mxu0 0
    %1686 = vmatpush.bf16.msra.mxu0 0
    %1687 = vmatpush.bf16.msra.mxu0 0
    %1688 = vmatpush.bf16.msra.mxu0 0
    %1689 = vmatpush.bf16.msra.mxu0 0
    %1690 = vmatpush.bf16.msra.mxu0 0
    %1691 = vmatpush.bf16.msra.mxu0 %v785
    %1692 = vmatpush.bf16.msra.mxu0 %v784
    %1693 = vmatmul.bf16.gmra.mxu0 %v1349
    %v1694 = vpop.f32.mrf.mxu0
    %v1695 = vadd.f32 0.0, %v1694
    %v1696 = vpop.f32.mrf.mxu0
    %1697 = vdwg.mxu0
    %1698 = vmatpush.bf16.msra.mxu0 0
    %1699 = vmatpush.bf16.msra.mxu0 0
    %1700 = vmatpush.bf16.msra.mxu0 0
    %1701 = vmatpush.bf16.msra.mxu0 0
    %1702 = vmatpush.bf16.msra.mxu0 0
    %1703 = vmatpush.bf16.msra.mxu0 0
    %1704 = vmatpush.bf16.msra.mxu0 %v810
    %1705 = vmatpush.bf16.msra.mxu0 %v809
    %1706 = vmatmul.bf16.gmra.mxu0 %v1615
    %v1707 = vpop.f32.mrf.mxu0
    %v1708 = vadd.f32 %v1695, %v1707
    %v1709 = vpop.f32.mrf.mxu0
    %1710 = vdwg.mxu0
    %v1711 = vadd.f32 %v1708, %v185
    %v1712 = vxor.u32 %v1630, 2147483648
    %v1713 = vmul.f32 %v1712, 1.442695
    %v1714 = vpow.pop %v1713
    %v1715 = vadd.f32 %v1714, 1.0
    %v1716 = vrcp.pop %v1715
    %v1717 = vmul.f32 %v1715, %v1716
    %v1718 = vsub.f32 1.0, %v1717
    %v1719 = vmul.f32 %v1716, %v1718
    %v1720 = vadd.f32 %v1716, %v1719
    %vm1721 = vweird.f32 %v1715
    %vm1722 = vweird.f32 %v1716
    %vm1723 = vmor %vm1721, %vm1722
    %v1724 = vsel %vm1723, %v1716, %v1720
    %v1725 = vand.u32 2147483647, %v1715
    %vm1726 = vcmp.eq.f32.partialorder %v1725, 8.507059e+37
    %v1727 = vand.u32 %v1715, 2147483648
    %v1728 = vor.u32 1.1754944e-38, %v1727
    %v1729 = vsel %vm1726, %v1728, %v1724
    %v1730 = vmul.f32 1.0, %v1729
    %v1731 = vxor.u32 %v1657, 2147483648
    %v1732 = vmul.f32 %v1731, 1.442695
    %v1733 = vpow.pop %v1732
    %v1734 = vadd.f32 %v1733, 1.0
    %v1735 = vrcp.pop %v1734
    %v1736 = vmul.f32 %v1734, %v1735
    %v1737 = vsub.f32 1.0, %v1736
    %v1738 = vmul.f32 %v1735, %v1737
    %v1739 = vadd.f32 %v1735, %v1738
    %vm1740 = vweird.f32 %v1734
    %vm1741 = vweird.f32 %v1735
    %vm1742 = vmor %vm1740, %vm1741
    %v1743 = vsel %vm1742, %v1735, %v1739
    %v1744 = vand.u32 2147483647, %v1734
    %vm1745 = vcmp.eq.f32.partialorder %v1744, 8.507059e+37
    %v1746 = vand.u32 %v1734, 2147483648
    %v1747 = vor.u32 1.1754944e-38, %v1746
    %v1748 = vsel %vm1745, %v1747, %v1743
    %v1749 = vmul.f32 1.0, %v1748
    %v1750 = vtanh.pop %v1684
    %v1751 = vxor.u32 %v1711, 2147483648
    %v1752 = vmul.f32 %v1751, 1.442695
    %v1753 = vpow.pop %v1752
    %v1754 = vadd.f32 %v1753, 1.0
    %v1755 = vrcp.pop %v1754
    %v1756 = vmul.f32 %v1754, %v1755
    %v1757 = vsub.f32 1.0, %v1756
    %v1758 = vmul.f32 %v1755, %v1757
    %v1759 = vadd.f32 %v1755, %v1758
    %vm1760 = vweird.f32 %v1754
    %vm1761 = vweird.f32 %v1755
    %vm1762 = vmor %vm1760, %vm1761
    %v1763 = vsel %vm1762, %v1755, %v1759
    %v1764 = vand.u32 2147483647, %v1754
    %vm1765 = vcmp.eq.f32.partialorder %v1764, 8.507059e+37
    %v1766 = vand.u32 %v1754, 2147483648
    %v1767 = vor.u32 1.1754944e-38, %v1766
    %v1768 = vsel %vm1765, %v1767, %v1763
    %v1769 = vmul.f32 1.0, %v1768
    %v1770 = vmul.f32 %v1749, %v1330
    %v1771 = vmul.f32 %v1730, %v1750
    %v1772 = vadd.f32 %v1770, %v1771
    %v1773 = vtanh.pop %v1772
    %v1774 = vmul.f32 %v1769, %v1773
    %v1775 = vpack.c.bf16 %v1774, %v1774
    %1776 = vst.msk [vmem:[#allocation2 + $0x2] sm:$0x1] %vm891, %v1774
    %1777 = vmatpush.bf16.msra.mxu0 0
    %1778 = vmatpush.bf16.msra.mxu0 0
    %1779 = vmatpush.bf16.msra.mxu0 0
    %1780 = vmatpush.bf16.msra.mxu0 0
    %1781 = vmatpush.bf16.msra.mxu0 0
    %1782 = vmatpush.bf16.msra.mxu0 0
    %1783 = vmatpush.bf16.msra.mxu0 %v206
    %1784 = vmatpush.bf16.msra.mxu0 %v205
    %1785 = vmatmul.bf16.gmra.mxu0 %v1615
    %v1786 = vpop.f32.mrf.mxu0
    %v1787 = vadd.f32 0.0, %v1786
    %v1788 = vpop.f32.mrf.mxu0
    %1789 = vdwg.mxu0
    %v1791 = vsel %vm209, %v1775, 0
    %1793 = vmatpush.bf16.msra.mxu0 0
    %1794 = vmatpush.bf16.msra.mxu0 0
    %1795 = vmatpush.bf16.msra.mxu0 0
    %1796 = vmatpush.bf16.msra.mxu0 0
    %1797 = vmatpush.bf16.msra.mxu0 0
    %1798 = vmatpush.bf16.msra.mxu0 0
    %1799 = vmatpush.bf16.msra.mxu0 %v235
    %1800 = vmatpush.bf16.msra.mxu0 %v234
    %1801 = vmatmul.bf16.gmra.mxu0 %v1791
    %v1802 = vpop.f32.mrf.mxu0
    %v1803 = vadd.f32 %v1787, %v1802
    %v1804 = vpop.f32.mrf.mxu0
    %1805 = vdwg.mxu0
    %v1806 = vadd.f32 %v1803, %v176
    %v1807 = vsel %vm255, %v1806, -inf
    %1808 = vmax.xlane.f32.xlu0 %v1807
    %v1809 = vpop.xlane.xlu0 %1808
    %v1810 = vsub.f32 %v1806, %v1809
    %v1811 = vmul.f32 %v1810, 1.442695
    %v1812 = vpow.pop %v1811
    %v1813 = vsel %vm255, %v1812, 0.0
    %1814 = vadd.xlane.f32.xlu0 %v1813
    %v1815 = vpop.xlane.xlu0 %1814
    %v1816 = vrcp.pop %v1815
    %v1817 = vpack.c.bf16 %v1812, %v1812
    %v1819 = vsel %vm267, %v1817, 0
    %1821 = vmatpush.bf16.msra.mxu0 0
    %1822 = vmatpush.bf16.msra.mxu0 0
    %1823 = vmatpush.bf16.msra.mxu0 0
    %1824 = vmatpush.bf16.msra.mxu0 0
    %1825 = vmatpush.bf16.msra.mxu0 0
    %1826 = vmatpush.bf16.msra.mxu0 0
    %1827 = vmatpush.bf16.msra.mxu0 0
    %1828 = vmatpush.bf16.msra.mxu0 %v273
    %1829 = vmatmul.bf16.gmra.mxu0 %v1819
    %v1830 = vpop.f32.mrf.mxu0
    %v1831 = vadd.f32 0.0, %v1830
    %v1832 = vpop.f32.mrf.mxu0
    %1833 = vdwg.mxu0
    %v1834 = vmul.f32 %v1831, %v1816
    %v1835 = vpack.c.bf16 %v1834, %v1834
    %v1837 = vsel %vm209, %v1835, 0
    %1839 = vmatpush.bf16.msra.mxu0 0
    %1840 = vmatpush.bf16.msra.mxu0 0
    %1841 = vmatpush.bf16.msra.mxu0 0
    %1842 = vmatpush.bf16.msra.mxu0 0
    %1843 = vmatpush.bf16.msra.mxu0 0
    %1844 = vmatpush.bf16.msra.mxu0 0
    %1845 = vmatpush.bf16.msra.mxu0 %v299
    %1846 = vmatpush.bf16.msra.mxu0 %v298
    %1847 = vmatmul.bf16.gmra.mxu0 %v1837
    %v1848 = vpop.f32.mrf.mxu0
    %v1849 = vadd.f32 0.0, %v1848
    %v1850 = vpop.f32.mrf.mxu0
    %1851 = vdwg.mxu0
    %1852 = vmatpush.bf16.msra.mxu0 0
    %1853 = vmatpush.bf16.msra.mxu0 0
    %1854 = vmatpush.bf16.msra.mxu0 0
    %1855 = vmatpush.bf16.msra.mxu0 0
    %1856 = vmatpush.bf16.msra.mxu0 0
    %1857 = vmatpush.bf16.msra.mxu0 0
    %1858 = vmatpush.bf16.msra.mxu0 %v327
    %1859 = vmatpush.bf16.msra.mxu0 %v326
    %1860 = vmatmul.bf16.gmra.mxu0 %v1791
    %v1861 = vpop.f32.mrf.mxu0
    %v1862 = vadd.f32 %v1849, %v1861
    %v1863 = vpop.f32.mrf.mxu0
    %1864 = vdwg.mxu0
    %v1865 = vadd.f32 %v1862, %v177
    %v1866 = vmax.f32 %v1865, 0.0
    %v1867 = vpack.c.bf16 %v1866, %v1866
    %1868 = vmatpush.bf16.msra.mxu0 0
    %1869 = vmatpush.bf16.msra.mxu0 0
    %1870 = vmatpush.bf16.msra.mxu0 0
    %1871 = vmatpush.bf16.msra.mxu0 0
    %1872 = vmatpush.bf16.msra.mxu0 0
    %1873 = vmatpush.bf16.msra.mxu0 0
    %1874 = vmatpush.bf16.msra.mxu0 %v355
    %1875 = vmatpush.bf16.msra.mxu0 %v354
    %1876 = vmatmul.bf16.gmra.mxu0 %v1615
    %v1877 = vpop.f32.mrf.mxu0
    %v1878 = vadd.f32 0.0, %v1877
    %v1879 = vpop.f32.mrf.mxu0
    %1880 = vdwg.mxu0
    %v1882 = vsel %vm209, %v1867, 0
    %1884 = vmatpush.bf16.msra.mxu0 0
    %1885 = vmatpush.bf16.msra.mxu0 0
    %1886 = vmatpush.bf16.msra.mxu0 0
    %1887 = vmatpush.bf16.msra.mxu0 0
    %1888 = vmatpush.bf16.msra.mxu0 0
    %1889 = vmatpush.bf16.msra.mxu0 0
    %1890 = vmatpush.bf16.msra.mxu0 %v380
    %1891 = vmatpush.bf16.msra.mxu0 %v379
    %1892 = vmatmul.bf16.gmra.mxu0 %v1882
    %v1893 = vpop.f32.mrf.mxu0
    %v1894 = vadd.f32 %v1878, %v1893
    %v1895 = vpop.f32.mrf.mxu0
    %1896 = vdwg.mxu0
    %v1897 = vadd.f32 %v1894, %v178
    %1898 = vmatpush.bf16.msra.mxu0 0
    %1899 = vmatpush.bf16.msra.mxu0 0
    %1900 = vmatpush.bf16.msra.mxu0 0
    %1901 = vmatpush.bf16.msra.mxu0 0
    %1902 = vmatpush.bf16.msra.mxu0 0
    %1903 = vmatpush.bf16.msra.mxu0 0
    %1904 = vmatpush.bf16.msra.mxu0 %v409
    %1905 = vmatpush.bf16.msra.mxu0 %v408
    %1906 = vmatmul.bf16.gmra.mxu0 %v1615
    %v1907 = vpop.f32.mrf.mxu0
    %v1908 = vadd.f32 0.0, %v1907
    %v1909 = vpop.f32.mrf.mxu0
    %1910 = vdwg.mxu0
    %1911 = vmatpush.bf16.msra.mxu0 0
    %1912 = vmatpush.bf16.msra.mxu0 0
    %1913 = vmatpush.bf16.msra.mxu0 0
    %1914 = vmatpush.bf16.msra.mxu0 0
    %1915 = vmatpush.bf16.msra.mxu0 0
    %1916 = vmatpush.bf16.msra.mxu0 0
    %1917 = vmatpush.bf16.msra.mxu0 %v434
    %1918 = vmatpush.bf16.msra.mxu0 %v433
    %1919 = vmatmul.bf16.gmra.mxu0 %v1882
    %v1920 = vpop.f32.mrf.mxu0
    %v1921 = vadd.f32 %v1908, %v1920
    %v1922 = vpop.f32.mrf.mxu0
    %1923 = vdwg.mxu0
    %v1924 = vadd.f32 %v1921, %v179
    %1925 = vmatpush.bf16.msra.mxu0 0
    %1926 = vmatpush.bf16.msra.mxu0 0
    %1927 = vmatpush.bf16.msra.mxu0 0
    %1928 = vmatpush.bf16.msra.mxu0 0
    %1929 = vmatpush.bf16.msra.mxu0 0
    %1930 = vmatpush.bf16.msra.mxu0 0
    %1931 = vmatpush.bf16.msra.mxu0 %v460
    %1932 = vmatpush.bf16.msra.mxu0 %v459
    %1933 = vmatmul.bf16.gmra.mxu0 %v1615
    %v1934 = vpop.f32.mrf.mxu0
    %v1935 = vadd.f32 0.0, %v1934
    %v1936 = vpop.f32.mrf.mxu0
    %1937 = vdwg.mxu0
    %1938 = vmatpush.bf16.msra.mxu0 0
    %1939 = vmatpush.bf16.msra.mxu0 0
    %1940 = vmatpush.bf16.msra.mxu0 0
    %1941 = vmatpush.bf16.msra.mxu0 0
    %1942 = vmatpush.bf16.msra.mxu0 0
    %1943 = vmatpush.bf16.msra.mxu0 0
    %1944 = vmatpush.bf16.msra.mxu0 %v485
    %1945 = vmatpush.bf16.msra.mxu0 %v484
    %1946 = vmatmul.bf16.gmra.mxu0 %v1882
    %v1947 = vpop.f32.mrf.mxu0
    %v1948 = vadd.f32 %v1935, %v1947
    %v1949 = vpop.f32.mrf.mxu0
    %1950 = vdwg.mxu0
    %v1951 = vadd.f32 %v1948, %v180
    %1952 = vmatpush.bf16.msra.mxu0 0
    %1953 = vmatpush.bf16.msra.mxu0 0
    %1954 = vmatpush.bf16.msra.mxu0 0
    %1955 = vmatpush.bf16.msra.mxu0 0
    %1956 = vmatpush.bf16.msra.mxu0 0
    %1957 = vmatpush.bf16.msra.mxu0 0
    %1958 = vmatpush.bf16.msra.mxu0 %v511
    %1959 = vmatpush.bf16.msra.mxu0 %v510
    %1960 = vmatmul.bf16.gmra.mxu0 %v1615
    %v1961 = vpop.f32.mrf.mxu0
    %v1962 = vadd.f32 0.0, %v1961
    %v1963 = vpop.f32.mrf.mxu0
    %1964 = vdwg.mxu0
    %1965 = vmatpush.bf16.msra.mxu0 0
    %1966 = vmatpush.bf16.msra.mxu0 0
    %1967 = vmatpush.bf16.msra.mxu0 0
    %1968 = vmatpush.bf16.msra.mxu0 0
    %1969 = vmatpush.bf16.msra.mxu0 0
    %1970 = vmatpush.bf16.msra.mxu0 0
    %1971 = vmatpush.bf16.msra.mxu0 %v536
    %1972 = vmatpush.bf16.msra.mxu0 %v535
    %1973 = vmatmul.bf16.gmra.mxu0 %v1882
    %v1974 = vpop.f32.mrf.mxu0
    %v1975 = vadd.f32 %v1962, %v1974
    %v1976 = vpop.f32.mrf.mxu0
    %1977 = vdwg.mxu0
    %v1978 = vadd.f32 %v1975, %v181
    %v1979 = vxor.u32 %v1897, 2147483648
    %v1980 = vmul.f32 %v1979, 1.442695
    %v1981 = vpow.pop %v1980
    %v1982 = vadd.f32 %v1981, 1.0
    %v1983 = vrcp.pop %v1982
    %v1984 = vmul.f32 %v1982, %v1983
    %v1985 = vsub.f32 1.0, %v1984
    %v1986 = vmul.f32 %v1983, %v1985
    %v1987 = vadd.f32 %v1983, %v1986
    %vm1988 = vweird.f32 %v1982
    %vm1989 = vweird.f32 %v1983
    %vm1990 = vmor %vm1988, %vm1989
    %v1991 = vsel %vm1990, %v1983, %v1987
    %v1992 = vand.u32 2147483647, %v1982
    %vm1993 = vcmp.eq.f32.partialorder %v1992, 8.507059e+37
    %v1994 = vand.u32 %v1982, 2147483648
    %v1995 = vor.u32 1.1754944e-38, %v1994
    %v1996 = vsel %vm1993, %v1995, %v1991
    %v1997 = vmul.f32 1.0, %v1996
    %v1998 = vxor.u32 %v1924, 2147483648
    %v1999 = vmul.f32 %v1998, 1.442695
    %v2000 = vpow.pop %v1999
    %v2001 = vadd.f32 %v2000, 1.0
    %v2002 = vrcp.pop %v2001
    %v2003 = vmul.f32 %v2001, %v2002
    %v2004 = vsub.f32 1.0, %v2003
    %v2005 = vmul.f32 %v2002, %v2004
    %v2006 = vadd.f32 %v2002, %v2005
    %vm2007 = vweird.f32 %v2001
    %vm2008 = vweird.f32 %v2002
    %vm2009 = vmor %vm2007, %vm2008
    %v2010 = vsel %vm2009, %v2002, %v2006
    %v2011 = vand.u32 2147483647, %v2001
    %vm2012 = vcmp.eq.f32.partialorder %v2011, 8.507059e+37
    %v2013 = vand.u32 %v2001, 2147483648
    %v2014 = vor.u32 1.1754944e-38, %v2013
    %v2015 = vsel %vm2012, %v2014, %v2010
    %v2016 = vmul.f32 1.0, %v2015
    %v2017 = vtanh.pop %v1951
    %v2018 = vxor.u32 %v1978, 2147483648
    %v2019 = vmul.f32 %v2018, 1.442695
    %v2020 = vpow.pop %v2019
    %v2021 = vadd.f32 %v2020, 1.0
    %v2022 = vrcp.pop %v2021
    %v2023 = vmul.f32 %v2021, %v2022
    %v2024 = vsub.f32 1.0, %v2023
    %v2025 = vmul.f32 %v2022, %v2024
    %v2026 = vadd.f32 %v2022, %v2025
    %vm2027 = vweird.f32 %v2021
    %vm2028 = vweird.f32 %v2022
    %vm2029 = vmor %vm2027, %vm2028
    %v2030 = vsel %vm2029, %v2022, %v2026
    %v2031 = vand.u32 2147483647, %v2021
    %vm2032 = vcmp.eq.f32.partialorder %v2031, 8.507059e+37
    %v2033 = vand.u32 %v2021, 2147483648
    %v2034 = vor.u32 1.1754944e-38, %v2033
    %v2035 = vsel %vm2032, %v2034, %v2030
    %v2036 = vmul.f32 1.0, %v2035
    %v2037 = vmul.f32 %v2016, %v1597
    %v2038 = vmul.f32 %v1997, %v2017
    %v2039 = vadd.f32 %v2037, %v2038
    %v2040 = vtanh.pop %v2039
    %v2041 = vmul.f32 %v2036, %v2040
    %v2042 = vpack.c.bf16 %v2041, %v2041
    %2043 = vmatpush.bf16.msra.mxu0 0
    %2044 = vmatpush.bf16.msra.mxu0 0
    %2045 = vmatpush.bf16.msra.mxu0 0
    %2046 = vmatpush.bf16.msra.mxu0 0
    %2047 = vmatpush.bf16.msra.mxu0 0
    %2048 = vmatpush.bf16.msra.mxu0 0
    %2049 = vmatpush.bf16.msra.mxu0 %v626
    %2050 = vmatpush.bf16.msra.mxu0 %v625
    %2051 = vmatmul.bf16.gmra.mxu0 %v1791
    %v2052 = vpop.f32.mrf.mxu0
    %v2053 = vadd.f32 0.0, %v2052
    %v2054 = vpop.f32.mrf.mxu0
    %2055 = vdwg.mxu0
    %v2057 = vsel %vm209, %v2042, 0
    %2059 = vmatpush.bf16.msra.mxu0 0
    %2060 = vmatpush.bf16.msra.mxu0 0
    %2061 = vmatpush.bf16.msra.mxu0 0
    %2062 = vmatpush.bf16.msra.mxu0 0
    %2063 = vmatpush.bf16.msra.mxu0 0
    %2064 = vmatpush.bf16.msra.mxu0 0
    %2065 = vmatpush.bf16.msra.mxu0 %v654
    %2066 = vmatpush.bf16.msra.mxu0 %v653
    %2067 = vmatmul.bf16.gmra.mxu0 %v2057
    %v2068 = vpop.f32.mrf.mxu0
    %v2069 = vadd.f32 %v2053, %v2068
    %v2070 = vpop.f32.mrf.mxu0
    %2071 = vdwg.mxu0
    %v2072 = vadd.f32 %v2069, %v182
    %2073 = vmatpush.bf16.msra.mxu0 0
    %2074 = vmatpush.bf16.msra.mxu0 0
    %2075 = vmatpush.bf16.msra.mxu0 0
    %2076 = vmatpush.bf16.msra.mxu0 0
    %2077 = vmatpush.bf16.msra.mxu0 0
    %2078 = vmatpush.bf16.msra.mxu0 0
    %2079 = vmatpush.bf16.msra.mxu0 %v683
    %2080 = vmatpush.bf16.msra.mxu0 %v682
    %2081 = vmatmul.bf16.gmra.mxu0 %v1791
    %v2082 = vpop.f32.mrf.mxu0
    %v2083 = vadd.f32 0.0, %v2082
    %v2084 = vpop.f32.mrf.mxu0
    %2085 = vdwg.mxu0
    %2086 = vmatpush.bf16.msra.mxu0 0
    %2087 = vmatpush.bf16.msra.mxu0 0
    %2088 = vmatpush.bf16.msra.mxu0 0
    %2089 = vmatpush.bf16.msra.mxu0 0
    %2090 = vmatpush.bf16.msra.mxu0 0
    %2091 = vmatpush.bf16.msra.mxu0 0
    %2092 = vmatpush.bf16.msra.mxu0 %v708
    %2093 = vmatpush.bf16.msra.mxu0 %v707
    %2094 = vmatmul.bf16.gmra.mxu0 %v2057
    %v2095 = vpop.f32.mrf.mxu0
    %v2096 = vadd.f32 %v2083, %v2095
    %v2097 = vpop.f32.mrf.mxu0
    %2098 = vdwg.mxu0
    %v2099 = vadd.f32 %v2096, %v183
    %2100 = vmatpush.bf16.msra.mxu0 0
    %2101 = vmatpush.bf16.msra.mxu0 0
    %2102 = vmatpush.bf16.msra.mxu0 0
    %2103 = vmatpush.bf16.msra.mxu0 0
    %2104 = vmatpush.bf16.msra.mxu0 0
    %2105 = vmatpush.bf16.msra.mxu0 0
    %2106 = vmatpush.bf16.msra.mxu0 %v734
    %2107 = vmatpush.bf16.msra.mxu0 %v733
    %2108 = vmatmul.bf16.gmra.mxu0 %v1791
    %v2109 = vpop.f32.mrf.mxu0
    %v2110 = vadd.f32 0.0, %v2109
    %v2111 = vpop.f32.mrf.mxu0
    %2112 = vdwg.mxu0
    %2113 = vmatpush.bf16.msra.mxu0 0
    %2114 = vmatpush.bf16.msra.mxu0 0
    %2115 = vmatpush.bf16.msra.mxu0 0
    %2116 = vmatpush.bf16.msra.mxu0 0
    %2117 = vmatpush.bf16.msra.mxu0 0
    %2118 = vmatpush.bf16.msra.mxu0 0
    %2119 = vmatpush.bf16.msra.mxu0 %v759
    %2120 = vmatpush.bf16.msra.mxu0 %v758
    %2121 = vmatmul.bf16.gmra.mxu0 %v2057
    %v2122 = vpop.f32.mrf.mxu0
    %v2123 = vadd.f32 %v2110, %v2122
    %v2124 = vpop.f32.mrf.mxu0
    %2125 = vdwg.mxu0
    %v2126 = vadd.f32 %v2123, %v184
    %2127 = vmatpush.bf16.msra.mxu0 0
    %2128 = vmatpush.bf16.msra.mxu0 0
    %2129 = vmatpush.bf16.msra.mxu0 0
    %2130 = vmatpush.bf16.msra.mxu0 0
    %2131 = vmatpush.bf16.msra.mxu0 0
    %2132 = vmatpush.bf16.msra.mxu0 0
    %2133 = vmatpush.bf16.msra.mxu0 %v785
    %2134 = vmatpush.bf16.msra.mxu0 %v784
    %2135 = vmatmul.bf16.gmra.mxu0 %v1791
    %v2136 = vpop.f32.mrf.mxu0
    %v2137 = vadd.f32 0.0, %v2136
    %v2138 = vpop.f32.mrf.mxu0
    %2139 = vdwg.mxu0
    %2140 = vmatpush.bf16.msra.mxu0 0
    %2141 = vmatpush.bf16.msra.mxu0 0
    %2142 = vmatpush.bf16.msra.mxu0 0
    %2143 = vmatpush.bf16.msra.mxu0 0
    %2144 = vmatpush.bf16.msra.mxu0 0
    %2145 = vmatpush.bf16.msra.mxu0 0
    %2146 = vmatpush.bf16.msra.mxu0 %v810
    %2147 = vmatpush.bf16.msra.mxu0 %v809
    %2148 = vmatmul.bf16.gmra.mxu0 %v2057
    %v2149 = vpop.f32.mrf.mxu0
    %v2150 = vadd.f32 %v2137, %v2149
    %v2151 = vpop.f32.mrf.mxu0
    %2152 = vdwg.mxu0
    %v2153 = vadd.f32 %v2150, %v185
    %v2154 = vxor.u32 %v2072, 2147483648
    %v2155 = vmul.f32 %v2154, 1.442695
    %v2156 = vpow.pop %v2155
    %v2157 = vadd.f32 %v2156, 1.0
    %v2158 = vrcp.pop %v2157
    %v2159 = vmul.f32 %v2157, %v2158
    %v2160 = vsub.f32 1.0, %v2159
    %v2161 = vmul.f32 %v2158, %v2160
    %v2162 = vadd.f32 %v2158, %v2161
    %vm2163 = vweird.f32 %v2157
    %vm2164 = vweird.f32 %v2158
    %vm2165 = vmor %vm2163, %vm2164
    %v2166 = vsel %vm2165, %v2158, %v2162
    %v2167 = vand.u32 2147483647, %v2157
    %vm2168 = vcmp.eq.f32.partialorder %v2167, 8.507059e+37
    %v2169 = vand.u32 %v2157, 2147483648
    %v2170 = vor.u32 1.1754944e-38, %v2169
    %v2171 = vsel %vm2168, %v2170, %v2166
    %v2172 = vmul.f32 1.0, %v2171
    %v2173 = vxor.u32 %v2099, 2147483648
    %v2174 = vmul.f32 %v2173, 1.442695
    %v2175 = vpow.pop %v2174
    %v2176 = vadd.f32 %v2175, 1.0
    %v2177 = vrcp.pop %v2176
    %v2178 = vmul.f32 %v2176, %v2177
    %v2179 = vsub.f32 1.0, %v2178
    %v2180 = vmul.f32 %v2177, %v2179
    %v2181 = vadd.f32 %v2177, %v2180
    %vm2182 = vweird.f32 %v2176
    %vm2183 = vweird.f32 %v2177
    %vm2184 = vmor %vm2182, %vm2183
    %v2185 = vsel %vm2184, %v2177, %v2181
    %v2186 = vand.u32 2147483647, %v2176
    %vm2187 = vcmp.eq.f32.partialorder %v2186, 8.507059e+37
    %v2188 = vand.u32 %v2176, 2147483648
    %v2189 = vor.u32 1.1754944e-38, %v2188
    %v2190 = vsel %vm2187, %v2189, %v2185
    %v2191 = vmul.f32 1.0, %v2190
    %v2192 = vtanh.pop %v2126
    %v2193 = vxor.u32 %v2153, 2147483648
    %v2194 = vmul.f32 %v2193, 1.442695
    %v2195 = vpow.pop %v2194
    %v2196 = vadd.f32 %v2195, 1.0
    %v2197 = vrcp.pop %v2196
    %v2198 = vmul.f32 %v2196, %v2197
    %v2199 = vsub.f32 1.0, %v2198
    %v2200 = vmul.f32 %v2197, %v2199
    %v2201 = vadd.f32 %v2197, %v2200
    %vm2202 = vweird.f32 %v2196
    %vm2203 = vweird.f32 %v2197
    %vm2204 = vmor %vm2202, %vm2203
    %v2205 = vsel %vm2204, %v2197, %v2201
    %v2206 = vand.u32 2147483647, %v2196
    %vm2207 = vcmp.eq.f32.partialorder %v2206, 8.507059e+37
    %v2208 = vand.u32 %v2196, 2147483648
    %v2209 = vor.u32 1.1754944e-38, %v2208
    %v2210 = vsel %vm2207, %v2209, %v2205
    %v2211 = vmul.f32 1.0, %v2210
    %v2212 = vmul.f32 %v2191, %v1772
    %v2213 = vmul.f32 %v2172, %v2192
    %v2214 = vadd.f32 %v2212, %v2213
    %v2215 = vtanh.pop %v2214
    %v2216 = vmul.f32 %v2211, %v2215
    %v2217 = vpack.c.bf16 %v2216, %v2216
    %2218 = vst.msk [vmem:[#allocation2 + $0x3] sm:$0x1] %vm891, %v2216
    %2219 = vmatpush.bf16.msra.mxu0 0
    %2220 = vmatpush.bf16.msra.mxu0 0
    %2221 = vmatpush.bf16.msra.mxu0 0
    %2222 = vmatpush.bf16.msra.mxu0 0
    %2223 = vmatpush.bf16.msra.mxu0 0
    %2224 = vmatpush.bf16.msra.mxu0 0
    %2225 = vmatpush.bf16.msra.mxu0 %v206
    %2226 = vmatpush.bf16.msra.mxu0 %v205
    %2227 = vmatmul.bf16.gmra.mxu0 %v2057
    %v2228 = vpop.f32.mrf.mxu0
    %v2229 = vadd.f32 0.0, %v2228
    %v2230 = vpop.f32.mrf.mxu0
    %2231 = vdwg.mxu0
    %v2233 = vsel %vm209, %v2217, 0
    %2235 = vmatpush.bf16.msra.mxu0 0
    %2236 = vmatpush.bf16.msra.mxu0 0
    %2237 = vmatpush.bf16.msra.mxu0 0
    %2238 = vmatpush.bf16.msra.mxu0 0
    %2239 = vmatpush.bf16.msra.mxu0 0
    %2240 = vmatpush.bf16.msra.mxu0 0
    %2241 = vmatpush.bf16.msra.mxu0 %v235
    %2242 = vmatpush.bf16.msra.mxu0 %v234
    %2243 = vmatmul.bf16.gmra.mxu0 %v2233
    %v2244 = vpop.f32.mrf.mxu0
    %v2245 = vadd.f32 %v2229, %v2244
    %v2246 = vpop.f32.mrf.mxu0
    %2247 = vdwg.mxu0
    %v2248 = vadd.f32 %v2245, %v176
    %v2249 = vsel %vm255, %v2248, -inf
    %2250 = vmax.xlane.f32.xlu0 %v2249
    %v2251 = vpop.xlane.xlu0 %2250
    %v2252 = vsub.f32 %v2248, %v2251
    %v2253 = vmul.f32 %v2252, 1.442695
    %v2254 = vpow.pop %v2253
    %v2255 = vsel %vm255, %v2254, 0.0
    %2256 = vadd.xlane.f32.xlu0 %v2255
    %v2257 = vpop.xlane.xlu0 %2256
    %v2258 = vrcp.pop %v2257
    %v2259 = vpack.c.bf16 %v2254, %v2254
    %v2261 = vsel %vm267, %v2259, 0
    %2263 = vmatpush.bf16.msra.mxu0 0
    %2264 = vmatpush.bf16.msra.mxu0 0
    %2265 = vmatpush.bf16.msra.mxu0 0
    %2266 = vmatpush.bf16.msra.mxu0 0
    %2267 = vmatpush.bf16.msra.mxu0 0
    %2268 = vmatpush.bf16.msra.mxu0 0
    %2269 = vmatpush.bf16.msra.mxu0 0
    %2270 = vmatpush.bf16.msra.mxu0 %v273
    %2271 = vmatmul.bf16.gmra.mxu0 %v2261
    %v2272 = vpop.f32.mrf.mxu0
    %v2273 = vadd.f32 0.0, %v2272
    %v2274 = vpop.f32.mrf.mxu0
    %2275 = vdwg.mxu0
    %v2276 = vmul.f32 %v2273, %v2258
    %v2277 = vpack.c.bf16 %v2276, %v2276
    %v2279 = vsel %vm209, %v2277, 0
    %2281 = vmatpush.bf16.msra.mxu0 0
    %2282 = vmatpush.bf16.msra.mxu0 0
    %2283 = vmatpush.bf16.msra.mxu0 0
    %2284 = vmatpush.bf16.msra.mxu0 0
    %2285 = vmatpush.bf16.msra.mxu0 0
    %2286 = vmatpush.bf16.msra.mxu0 0
    %2287 = vmatpush.bf16.msra.mxu0 %v299
    %2288 = vmatpush.bf16.msra.mxu0 %v298
    %2289 = vmatmul.bf16.gmra.mxu0 %v2279
    %v2290 = vpop.f32.mrf.mxu0
    %v2291 = vadd.f32 0.0, %v2290
    %v2292 = vpop.f32.mrf.mxu0
    %2293 = vdwg.mxu0
    %2294 = vmatpush.bf16.msra.mxu0 0
    %2295 = vmatpush.bf16.msra.mxu0 0
    %2296 = vmatpush.bf16.msra.mxu0 0
    %2297 = vmatpush.bf16.msra.mxu0 0
    %2298 = vmatpush.bf16.msra.mxu0 0
    %2299 = vmatpush.bf16.msra.mxu0 0
    %2300 = vmatpush.bf16.msra.mxu0 %v327
    %2301 = vmatpush.bf16.msra.mxu0 %v326
    %2302 = vmatmul.bf16.gmra.mxu0 %v2233
    %v2303 = vpop.f32.mrf.mxu0
    %v2304 = vadd.f32 %v2291, %v2303
    %v2305 = vpop.f32.mrf.mxu0
    %2306 = vdwg.mxu0
    %v2307 = vadd.f32 %v2304, %v177
    %v2308 = vmax.f32 %v2307, 0.0
    %v2309 = vpack.c.bf16 %v2308, %v2308
    %2310 = vmatpush.bf16.msra.mxu0 0
    %2311 = vmatpush.bf16.msra.mxu0 0
    %2312 = vmatpush.bf16.msra.mxu0 0
    %2313 = vmatpush.bf16.msra.mxu0 0
    %2314 = vmatpush.bf16.msra.mxu0 0
    %2315 = vmatpush.bf16.msra.mxu0 0
    %2316 = vmatpush.bf16.msra.mxu0 %v355
    %2317 = vmatpush.bf16.msra.mxu0 %v354
    %2318 = vmatmul.bf16.gmra.mxu0 %v2057
    %v2319 = vpop.f32.mrf.mxu0
    %v2320 = vadd.f32 0.0, %v2319
    %v2321 = vpop.f32.mrf.mxu0
    %2322 = vdwg.mxu0
    %v2324 = vsel %vm209, %v2309, 0
    %2326 = vmatpush.bf16.msra.mxu0 0
    %2327 = vmatpush.bf16.msra.mxu0 0
    %2328 = vmatpush.bf16.msra.mxu0 0
    %2329 = vmatpush.bf16.msra.mxu0 0
    %2330 = vmatpush.bf16.msra.mxu0 0
    %2331 = vmatpush.bf16.msra.mxu0 0
    %2332 = vmatpush.bf16.msra.mxu0 %v380
    %2333 = vmatpush.bf16.msra.mxu0 %v379
    %2334 = vmatmul.bf16.gmra.mxu0 %v2324
    %v2335 = vpop.f32.mrf.mxu0
    %v2336 = vadd.f32 %v2320, %v2335
    %v2337 = vpop.f32.mrf.mxu0
    %2338 = vdwg.mxu0
    %v2339 = vadd.f32 %v2336, %v178
    %2340 = vmatpush.bf16.msra.mxu0 0
    %2341 = vmatpush.bf16.msra.mxu0 0
    %2342 = vmatpush.bf16.msra.mxu0 0
    %2343 = vmatpush.bf16.msra.mxu0 0
    %2344 = vmatpush.bf16.msra.mxu0 0
    %2345 = vmatpush.bf16.msra.mxu0 0
    %2346 = vmatpush.bf16.msra.mxu0 %v409
    %2347 = vmatpush.bf16.msra.mxu0 %v408
    %2348 = vmatmul.bf16.gmra.mxu0 %v2057
    %v2349 = vpop.f32.mrf.mxu0
    %v2350 = vadd.f32 0.0, %v2349
    %v2351 = vpop.f32.mrf.mxu0
    %2352 = vdwg.mxu0
    %2353 = vmatpush.bf16.msra.mxu0 0
    %2354 = vmatpush.bf16.msra.mxu0 0
    %2355 = vmatpush.bf16.msra.mxu0 0
    %2356 = vmatpush.bf16.msra.mxu0 0
    %2357 = vmatpush.bf16.msra.mxu0 0
    %2358 = vmatpush.bf16.msra.mxu0 0
    %2359 = vmatpush.bf16.msra.mxu0 %v434
    %2360 = vmatpush.bf16.msra.mxu0 %v433
    %2361 = vmatmul.bf16.gmra.mxu0 %v2324
    %v2362 = vpop.f32.mrf.mxu0
    %v2363 = vadd.f32 %v2350, %v2362
    %v2364 = vpop.f32.mrf.mxu0
    %2365 = vdwg.mxu0
    %v2366 = vadd.f32 %v2363, %v179
    %2367 = vmatpush.bf16.msra.mxu0 0
    %2368 = vmatpush.bf16.msra.mxu0 0
    %2369 = vmatpush.bf16.msra.mxu0 0
    %2370 = vmatpush.bf16.msra.mxu0 0
    %2371 = vmatpush.bf16.msra.mxu0 0
    %2372 = vmatpush.bf16.msra.mxu0 0
    %2373 = vmatpush.bf16.msra.mxu0 %v460
    %2374 = vmatpush.bf16.msra.mxu0 %v459
    %2375 = vmatmul.bf16.gmra.mxu0 %v2057
    %v2376 = vpop.f32.mrf.mxu0
    %v2377 = vadd.f32 0.0, %v2376
    %v2378 = vpop.f32.mrf.mxu0
    %2379 = vdwg.mxu0
    %2380 = vmatpush.bf16.msra.mxu0 0
    %2381 = vmatpush.bf16.msra.mxu0 0
    %2382 = vmatpush.bf16.msra.mxu0 0
    %2383 = vmatpush.bf16.msra.mxu0 0
    %2384 = vmatpush.bf16.msra.mxu0 0
    %2385 = vmatpush.bf16.msra.mxu0 0
    %2386 = vmatpush.bf16.msra.mxu0 %v485
    %2387 = vmatpush.bf16.msra.mxu0 %v484
    %2388 = vmatmul.bf16.gmra.mxu0 %v2324
    %v2389 = vpop.f32.mrf.mxu0
    %v2390 = vadd.f32 %v2377, %v2389
    %v2391 = vpop.f32.mrf.mxu0
    %2392 = vdwg.mxu0
    %v2393 = vadd.f32 %v2390, %v180
    %2394 = vmatpush.bf16.msra.mxu0 0
    %2395 = vmatpush.bf16.msra.mxu0 0
    %2396 = vmatpush.bf16.msra.mxu0 0
    %2397 = vmatpush.bf16.msra.mxu0 0
    %2398 = vmatpush.bf16.msra.mxu0 0
    %2399 = vmatpush.bf16.msra.mxu0 0
    %2400 = vmatpush.bf16.msra.mxu0 %v511
    %2401 = vmatpush.bf16.msra.mxu0 %v510
    %2402 = vmatmul.bf16.gmra.mxu0 %v2057
    %v2403 = vpop.f32.mrf.mxu0
    %v2404 = vadd.f32 0.0, %v2403
    %v2405 = vpop.f32.mrf.mxu0
    %2406 = vdwg.mxu0
    %2407 = vmatpush.bf16.msra.mxu0 0
    %2408 = vmatpush.bf16.msra.mxu0 0
    %2409 = vmatpush.bf16.msra.mxu0 0
    %2410 = vmatpush.bf16.msra.mxu0 0
    %2411 = vmatpush.bf16.msra.mxu0 0
    %2412 = vmatpush.bf16.msra.mxu0 0
    %2413 = vmatpush.bf16.msra.mxu0 %v536
    %2414 = vmatpush.bf16.msra.mxu0 %v535
    %2415 = vmatmul.bf16.gmra.mxu0 %v2324
    %v2416 = vpop.f32.mrf.mxu0
    %v2417 = vadd.f32 %v2404, %v2416
    %v2418 = vpop.f32.mrf.mxu0
    %2419 = vdwg.mxu0
    %v2420 = vadd.f32 %v2417, %v181
    %v2421 = vxor.u32 %v2339, 2147483648
    %v2422 = vmul.f32 %v2421, 1.442695
    %v2423 = vpow.pop %v2422
    %v2424 = vadd.f32 %v2423, 1.0
    %v2425 = vrcp.pop %v2424
    %v2426 = vmul.f32 %v2424, %v2425
    %v2427 = vsub.f32 1.0, %v2426
    %v2428 = vmul.f32 %v2425, %v2427
    %v2429 = vadd.f32 %v2425, %v2428
    %vm2430 = vweird.f32 %v2424
    %vm2431 = vweird.f32 %v2425
    %vm2432 = vmor %vm2430, %vm2431
    %v2433 = vsel %vm2432, %v2425, %v2429
    %v2434 = vand.u32 2147483647, %v2424
    %vm2435 = vcmp.eq.f32.partialorder %v2434, 8.507059e+37
    %v2436 = vand.u32 %v2424, 2147483648
    %v2437 = vor.u32 1.1754944e-38, %v2436
    %v2438 = vsel %vm2435, %v2437, %v2433
    %v2439 = vmul.f32 1.0, %v2438
    %v2440 = vxor.u32 %v2366, 2147483648
    %v2441 = vmul.f32 %v2440, 1.442695
    %v2442 = vpow.pop %v2441
    %v2443 = vadd.f32 %v2442, 1.0
    %v2444 = vrcp.pop %v2443
    %v2445 = vmul.f32 %v2443, %v2444
    %v2446 = vsub.f32 1.0, %v2445
    %v2447 = vmul.f32 %v2444, %v2446
    %v2448 = vadd.f32 %v2444, %v2447
    %vm2449 = vweird.f32 %v2443
    %vm2450 = vweird.f32 %v2444
    %vm2451 = vmor %vm2449, %vm2450
    %v2452 = vsel %vm2451, %v2444, %v2448
    %v2453 = vand.u32 2147483647, %v2443
    %vm2454 = vcmp.eq.f32.partialorder %v2453, 8.507059e+37
    %v2455 = vand.u32 %v2443, 2147483648
    %v2456 = vor.u32 1.1754944e-38, %v2455
    %v2457 = vsel %vm2454, %v2456, %v2452
    %v2458 = vmul.f32 1.0, %v2457
    %v2459 = vtanh.pop %v2393
    %v2460 = vxor.u32 %v2420, 2147483648
    %v2461 = vmul.f32 %v2460, 1.442695
    %v2462 = vpow.pop %v2461
    %v2463 = vadd.f32 %v2462, 1.0
    %v2464 = vrcp.pop %v2463
    %v2465 = vmul.f32 %v2463, %v2464
    %v2466 = vsub.f32 1.0, %v2465
    %v2467 = vmul.f32 %v2464, %v2466
    %v2468 = vadd.f32 %v2464, %v2467
    %vm2469 = vweird.f32 %v2463
    %vm2470 = vweird.f32 %v2464
    %vm2471 = vmor %vm2469, %vm2470
    %v2472 = vsel %vm2471, %v2464, %v2468
    %v2473 = vand.u32 2147483647, %v2463
    %vm2474 = vcmp.eq.f32.partialorder %v2473, 8.507059e+37
    %v2475 = vand.u32 %v2463, 2147483648
    %v2476 = vor.u32 1.1754944e-38, %v2475
    %v2477 = vsel %vm2474, %v2476, %v2472
    %v2478 = vmul.f32 1.0, %v2477
    %v2479 = vmul.f32 %v2458, %v2039
    %v2480 = vmul.f32 %v2439, %v2459
    %v2481 = vadd.f32 %v2479, %v2480
    %v2482 = vtanh.pop %v2481
    %v2483 = vmul.f32 %v2478, %v2482
    %v2484 = vpack.c.bf16 %v2483, %v2483
    %2485 = vmatpush.bf16.msra.mxu0 0
    %2486 = vmatpush.bf16.msra.mxu0 0
    %2487 = vmatpush.bf16.msra.mxu0 0
    %2488 = vmatpush.bf16.msra.mxu0 0
    %2489 = vmatpush.bf16.msra.mxu0 0
    %2490 = vmatpush.bf16.msra.mxu0 0
    %2491 = vmatpush.bf16.msra.mxu0 %v626
    %2492 = vmatpush.bf16.msra.mxu0 %v625
    %2493 = vmatmul.bf16.gmra.mxu0 %v2233
    %v2494 = vpop.f32.mrf.mxu0
    %v2495 = vadd.f32 0.0, %v2494
    %v2496 = vpop.f32.mrf.mxu0
    %2497 = vdwg.mxu0
    %v2499 = vsel %vm209, %v2484, 0
    %2501 = vmatpush.bf16.msra.mxu0 0
    %2502 = vmatpush.bf16.msra.mxu0 0
    %2503 = vmatpush.bf16.msra.mxu0 0
    %2504 = vmatpush.bf16.msra.mxu0 0
    %2505 = vmatpush.bf16.msra.mxu0 0
    %2506 = vmatpush.bf16.msra.mxu0 0
    %2507 = vmatpush.bf16.msra.mxu0 %v654
    %2508 = vmatpush.bf16.msra.mxu0 %v653
    %2509 = vmatmul.bf16.gmra.mxu0 %v2499
    %v2510 = vpop.f32.mrf.mxu0
    %v2511 = vadd.f32 %v2495, %v2510
    %v2512 = vpop.f32.mrf.mxu0
    %2513 = vdwg.mxu0
    %v2514 = vadd.f32 %v2511, %v182
    %2515 = vmatpush.bf16.msra.mxu0 0
    %2516 = vmatpush.bf16.msra.mxu0 0
    %2517 = vmatpush.bf16.msra.mxu0 0
    %2518 = vmatpush.bf16.msra.mxu0 0
    %2519 = vmatpush.bf16.msra.mxu0 0
    %2520 = vmatpush.bf16.msra.mxu0 0
    %2521 = vmatpush.bf16.msra.mxu0 %v683
    %2522 = vmatpush.bf16.msra.mxu0 %v682
    %2523 = vmatmul.bf16.gmra.mxu0 %v2233
    %v2524 = vpop.f32.mrf.mxu0
    %v2525 = vadd.f32 0.0, %v2524
    %v2526 = vpop.f32.mrf.mxu0
    %2527 = vdwg.mxu0
    %2528 = vmatpush.bf16.msra.mxu0 0
    %2529 = vmatpush.bf16.msra.mxu0 0
    %2530 = vmatpush.bf16.msra.mxu0 0
    %2531 = vmatpush.bf16.msra.mxu0 0
    %2532 = vmatpush.bf16.msra.mxu0 0
    %2533 = vmatpush.bf16.msra.mxu0 0
    %2534 = vmatpush.bf16.msra.mxu0 %v708
    %2535 = vmatpush.bf16.msra.mxu0 %v707
    %2536 = vmatmul.bf16.gmra.mxu0 %v2499
    %v2537 = vpop.f32.mrf.mxu0
    %v2538 = vadd.f32 %v2525, %v2537
    %v2539 = vpop.f32.mrf.mxu0
    %2540 = vdwg.mxu0
    %v2541 = vadd.f32 %v2538, %v183
    %2542 = vmatpush.bf16.msra.mxu0 0
    %2543 = vmatpush.bf16.msra.mxu0 0
    %2544 = vmatpush.bf16.msra.mxu0 0
    %2545 = vmatpush.bf16.msra.mxu0 0
    %2546 = vmatpush.bf16.msra.mxu0 0
    %2547 = vmatpush.bf16.msra.mxu0 0
    %2548 = vmatpush.bf16.msra.mxu0 %v734
    %2549 = vmatpush.bf16.msra.mxu0 %v733
    %2550 = vmatmul.bf16.gmra.mxu0 %v2233
    %v2551 = vpop.f32.mrf.mxu0
    %v2552 = vadd.f32 0.0, %v2551
    %v2553 = vpop.f32.mrf.mxu0
    %2554 = vdwg.mxu0
    %2555 = vmatpush.bf16.msra.mxu0 0
    %2556 = vmatpush.bf16.msra.mxu0 0
    %2557 = vmatpush.bf16.msra.mxu0 0
    %2558 = vmatpush.bf16.msra.mxu0 0
    %2559 = vmatpush.bf16.msra.mxu0 0
    %2560 = vmatpush.bf16.msra.mxu0 0
    %2561 = vmatpush.bf16.msra.mxu0 %v759
    %2562 = vmatpush.bf16.msra.mxu0 %v758
    %2563 = vmatmul.bf16.gmra.mxu0 %v2499
    %v2564 = vpop.f32.mrf.mxu0
    %v2565 = vadd.f32 %v2552, %v2564
    %v2566 = vpop.f32.mrf.mxu0
    %2567 = vdwg.mxu0
    %v2568 = vadd.f32 %v2565, %v184
    %2569 = vmatpush.bf16.msra.mxu0 0
    %2570 = vmatpush.bf16.msra.mxu0 0
    %2571 = vmatpush.bf16.msra.mxu0 0
    %2572 = vmatpush.bf16.msra.mxu0 0
    %2573 = vmatpush.bf16.msra.mxu0 0
    %2574 = vmatpush.bf16.msra.mxu0 0
    %2575 = vmatpush.bf16.msra.mxu0 %v785
    %2576 = vmatpush.bf16.msra.mxu0 %v784
    %2577 = vmatmul.bf16.gmra.mxu0 %v2233
    %v2578 = vpop.f32.mrf.mxu0
    %v2579 = vadd.f32 0.0, %v2578
    %v2580 = vpop.f32.mrf.mxu0
    %2581 = vdwg.mxu0
    %2582 = vmatpush.bf16.msra.mxu0 0
    %2583 = vmatpush.bf16.msra.mxu0 0
    %2584 = vmatpush.bf16.msra.mxu0 0
    %2585 = vmatpush.bf16.msra.mxu0 0
    %2586 = vmatpush.bf16.msra.mxu0 0
    %2587 = vmatpush.bf16.msra.mxu0 0
    %2588 = vmatpush.bf16.msra.mxu0 %v810
    %2589 = vmatpush.bf16.msra.mxu0 %v809
    %2590 = vmatmul.bf16.gmra.mxu0 %v2499
    %v2591 = vpop.f32.mrf.mxu0
    %v2592 = vadd.f32 %v2579, %v2591
    %v2593 = vpop.f32.mrf.mxu0
    %2594 = vdwg.mxu0
    %v2595 = vadd.f32 %v2592, %v185
    %v2596 = vxor.u32 %v2514, 2147483648
    %v2597 = vmul.f32 %v2596, 1.442695
    %v2598 = vpow.pop %v2597
    %v2599 = vadd.f32 %v2598, 1.0
    %v2600 = vrcp.pop %v2599
    %v2601 = vmul.f32 %v2599, %v2600
    %v2602 = vsub.f32 1.0, %v2601
    %v2603 = vmul.f32 %v2600, %v2602
    %v2604 = vadd.f32 %v2600, %v2603
    %vm2605 = vweird.f32 %v2599
    %vm2606 = vweird.f32 %v2600
    %vm2607 = vmor %vm2605, %vm2606
    %v2608 = vsel %vm2607, %v2600, %v2604
    %v2609 = vand.u32 2147483647, %v2599
    %vm2610 = vcmp.eq.f32.partialorder %v2609, 8.507059e+37
    %v2611 = vand.u32 %v2599, 2147483648
    %v2612 = vor.u32 1.1754944e-38, %v2611
    %v2613 = vsel %vm2610, %v2612, %v2608
    %v2614 = vmul.f32 1.0, %v2613
    %v2615 = vxor.u32 %v2541, 2147483648
    %v2616 = vmul.f32 %v2615, 1.442695
    %v2617 = vpow.pop %v2616
    %v2618 = vadd.f32 %v2617, 1.0
    %v2619 = vrcp.pop %v2618
    %v2620 = vmul.f32 %v2618, %v2619
    %v2621 = vsub.f32 1.0, %v2620
    %v2622 = vmul.f32 %v2619, %v2621
    %v2623 = vadd.f32 %v2619, %v2622
    %vm2624 = vweird.f32 %v2618
    %vm2625 = vweird.f32 %v2619
    %vm2626 = vmor %vm2624, %vm2625
    %v2627 = vsel %vm2626, %v2619, %v2623
    %v2628 = vand.u32 2147483647, %v2618
    %vm2629 = vcmp.eq.f32.partialorder %v2628, 8.507059e+37
    %v2630 = vand.u32 %v2618, 2147483648
    %v2631 = vor.u32 1.1754944e-38, %v2630
    %v2632 = vsel %vm2629, %v2631, %v2627
    %v2633 = vmul.f32 1.0, %v2632
    %v2634 = vtanh.pop %v2568
    %v2635 = vxor.u32 %v2595, 2147483648
    %v2636 = vmul.f32 %v2635, 1.442695
    %v2637 = vpow.pop %v2636
    %v2638 = vadd.f32 %v2637, 1.0
    %v2639 = vrcp.pop %v2638
    %v2640 = vmul.f32 %v2638, %v2639
    %v2641 = vsub.f32 1.0, %v2640
    %v2642 = vmul.f32 %v2639, %v2641
    %v2643 = vadd.f32 %v2639, %v2642
    %vm2644 = vweird.f32 %v2638
    %vm2645 = vweird.f32 %v2639
    %vm2646 = vmor %vm2644, %vm2645
    %v2647 = vsel %vm2646, %v2639, %v2643
    %v2648 = vand.u32 2147483647, %v2638
    %vm2649 = vcmp.eq.f32.partialorder %v2648, 8.507059e+37
    %v2650 = vand.u32 %v2638, 2147483648
    %v2651 = vor.u32 1.1754944e-38, %v2650
    %v2652 = vsel %vm2649, %v2651, %v2647
    %v2653 = vmul.f32 1.0, %v2652
    %v2654 = vmul.f32 %v2633, %v2214
    %v2655 = vmul.f32 %v2614, %v2634
    %v2656 = vadd.f32 %v2654, %v2655
    %v2657 = vtanh.pop %v2656
    %v2658 = vmul.f32 %v2653, %v2657
    %v2659 = vpack.c.bf16 %v2658, %v2658
    %2660 = vst.msk [vmem:[#allocation2 + $0x4] sm:$0x1] %vm891, %v2658
    %2661 = vmatpush.bf16.msra.mxu0 0
    %2662 = vmatpush.bf16.msra.mxu0 0
    %2663 = vmatpush.bf16.msra.mxu0 0
    %2664 = vmatpush.bf16.msra.mxu0 0
    %2665 = vmatpush.bf16.msra.mxu0 0
    %2666 = vmatpush.bf16.msra.mxu0 0
    %2667 = vmatpush.bf16.msra.mxu0 %v206
    %2668 = vmatpush.bf16.msra.mxu0 %v205
    %2669 = vmatmul.bf16.gmra.mxu0 %v2499
    %v2670 = vpop.f32.mrf.mxu0
    %v2671 = vadd.f32 0.0, %v2670
    %v2672 = vpop.f32.mrf.mxu0
    %2673 = vdwg.mxu0
    %v2675 = vsel %vm209, %v2659, 0
    %2677 = vmatpush.bf16.msra.mxu0 0
    %2678 = vmatpush.bf16.msra.mxu0 0
    %2679 = vmatpush.bf16.msra.mxu0 0
    %2680 = vmatpush.bf16.msra.mxu0 0
    %2681 = vmatpush.bf16.msra.mxu0 0
    %2682 = vmatpush.bf16.msra.mxu0 0
    %2683 = vmatpush.bf16.msra.mxu0 %v235
    %2684 = vmatpush.bf16.msra.mxu0 %v234
    %2685 = vmatmul.bf16.gmra.mxu0 %v2675
    %v2686 = vpop.f32.mrf.mxu0
    %v2687 = vadd.f32 %v2671, %v2686
    %v2688 = vpop.f32.mrf.mxu0
    %2689 = vdwg.mxu0
    %v2690 = vadd.f32 %v2687, %v176
    %v2691 = vsel %vm255, %v2690, -inf
    %2692 = vmax.xlane.f32.xlu0 %v2691
    %v2693 = vpop.xlane.xlu0 %2692
    %v2694 = vsub.f32 %v2690, %v2693
    %v2695 = vmul.f32 %v2694, 1.442695
    %v2696 = vpow.pop %v2695
    %v2697 = vsel %vm255, %v2696, 0.0
    %2698 = vadd.xlane.f32.xlu0 %v2697
    %v2699 = vpop.xlane.xlu0 %2698
    %v2700 = vrcp.pop %v2699
    %v2701 = vpack.c.bf16 %v2696, %v2696
    %v2703 = vsel %vm267, %v2701, 0
    %2705 = vmatpush.bf16.msra.mxu0 0
    %2706 = vmatpush.bf16.msra.mxu0 0
    %2707 = vmatpush.bf16.msra.mxu0 0
    %2708 = vmatpush.bf16.msra.mxu0 0
    %2709 = vmatpush.bf16.msra.mxu0 0
    %2710 = vmatpush.bf16.msra.mxu0 0
    %2711 = vmatpush.bf16.msra.mxu0 0
    %2712 = vmatpush.bf16.msra.mxu0 %v273
    %2713 = vmatmul.bf16.gmra.mxu0 %v2703
    %v2714 = vpop.f32.mrf.mxu0
    %v2715 = vadd.f32 0.0, %v2714
    %v2716 = vpop.f32.mrf.mxu0
    %2717 = vdwg.mxu0
    %v2718 = vmul.f32 %v2715, %v2700
    %v2719 = vpack.c.bf16 %v2718, %v2718
    %v2721 = vsel %vm209, %v2719, 0
    %2723 = vmatpush.bf16.msra.mxu0 0
    %2724 = vmatpush.bf16.msra.mxu0 0
    %2725 = vmatpush.bf16.msra.mxu0 0
    %2726 = vmatpush.bf16.msra.mxu0 0
    %2727 = vmatpush.bf16.msra.mxu0 0
    %2728 = vmatpush.bf16.msra.mxu0 0
    %2729 = vmatpush.bf16.msra.mxu0 %v299
    %2730 = vmatpush.bf16.msra.mxu0 %v298
    %2731 = vmatmul.bf16.gmra.mxu0 %v2721
    %v2732 = vpop.f32.mrf.mxu0
    %v2733 = vadd.f32 0.0, %v2732
    %v2734 = vpop.f32.mrf.mxu0
    %2735 = vdwg.mxu0
    %2736 = vmatpush.bf16.msra.mxu0 0
    %2737 = vmatpush.bf16.msra.mxu0 0
    %2738 = vmatpush.bf16.msra.mxu0 0
    %2739 = vmatpush.bf16.msra.mxu0 0
    %2740 = vmatpush.bf16.msra.mxu0 0
    %2741 = vmatpush.bf16.msra.mxu0 0
    %2742 = vmatpush.bf16.msra.mxu0 %v327
    %2743 = vmatpush.bf16.msra.mxu0 %v326
    %2744 = vmatmul.bf16.gmra.mxu0 %v2675
    %v2745 = vpop.f32.mrf.mxu0
    %v2746 = vadd.f32 %v2733, %v2745
    %v2747 = vpop.f32.mrf.mxu0
    %2748 = vdwg.mxu0
    %v2749 = vadd.f32 %v2746, %v177
    %v2750 = vmax.f32 %v2749, 0.0
    %v2751 = vpack.c.bf16 %v2750, %v2750
    %2752 = vmatpush.bf16.msra.mxu0 0
    %2753 = vmatpush.bf16.msra.mxu0 0
    %2754 = vmatpush.bf16.msra.mxu0 0
    %2755 = vmatpush.bf16.msra.mxu0 0
    %2756 = vmatpush.bf16.msra.mxu0 0
    %2757 = vmatpush.bf16.msra.mxu0 0
    %2758 = vmatpush.bf16.msra.mxu0 %v355
    %2759 = vmatpush.bf16.msra.mxu0 %v354
    %2760 = vmatmul.bf16.gmra.mxu0 %v2499
    %v2761 = vpop.f32.mrf.mxu0
    %v2762 = vadd.f32 0.0, %v2761
    %v2763 = vpop.f32.mrf.mxu0
    %2764 = vdwg.mxu0
    %v2766 = vsel %vm209, %v2751, 0
    %2768 = vmatpush.bf16.msra.mxu0 0
    %2769 = vmatpush.bf16.msra.mxu0 0
    %2770 = vmatpush.bf16.msra.mxu0 0
    %2771 = vmatpush.bf16.msra.mxu0 0
    %2772 = vmatpush.bf16.msra.mxu0 0
    %2773 = vmatpush.bf16.msra.mxu0 0
    %2774 = vmatpush.bf16.msra.mxu0 %v380
    %2775 = vmatpush.bf16.msra.mxu0 %v379
    %2776 = vmatmul.bf16.gmra.mxu0 %v2766
    %v2777 = vpop.f32.mrf.mxu0
    %v2778 = vadd.f32 %v2762, %v2777
    %v2779 = vpop.f32.mrf.mxu0
    %2780 = vdwg.mxu0
    %v2781 = vadd.f32 %v2778, %v178
    %2782 = vmatpush.bf16.msra.mxu0 0
    %2783 = vmatpush.bf16.msra.mxu0 0
    %2784 = vmatpush.bf16.msra.mxu0 0
    %2785 = vmatpush.bf16.msra.mxu0 0
    %2786 = vmatpush.bf16.msra.mxu0 0
    %2787 = vmatpush.bf16.msra.mxu0 0
    %2788 = vmatpush.bf16.msra.mxu0 %v409
    %2789 = vmatpush.bf16.msra.mxu0 %v408
    %2790 = vmatmul.bf16.gmra.mxu0 %v2499
    %v2791 = vpop.f32.mrf.mxu0
    %v2792 = vadd.f32 0.0, %v2791
    %v2793 = vpop.f32.mrf.mxu0
    %2794 = vdwg.mxu0
    %2795 = vmatpush.bf16.msra.mxu0 0
    %2796 = vmatpush.bf16.msra.mxu0 0
    %2797 = vmatpush.bf16.msra.mxu0 0
    %2798 = vmatpush.bf16.msra.mxu0 0
    %2799 = vmatpush.bf16.msra.mxu0 0
    %2800 = vmatpush.bf16.msra.mxu0 0
    %2801 = vmatpush.bf16.msra.mxu0 %v434
    %2802 = vmatpush.bf16.msra.mxu0 %v433
    %2803 = vmatmul.bf16.gmra.mxu0 %v2766
    %v2804 = vpop.f32.mrf.mxu0
    %v2805 = vadd.f32 %v2792, %v2804
    %v2806 = vpop.f32.mrf.mxu0
    %2807 = vdwg.mxu0
    %v2808 = vadd.f32 %v2805, %v179
    %2809 = vmatpush.bf16.msra.mxu0 0
    %2810 = vmatpush.bf16.msra.mxu0 0
    %2811 = vmatpush.bf16.msra.mxu0 0
    %2812 = vmatpush.bf16.msra.mxu0 0
    %2813 = vmatpush.bf16.msra.mxu0 0
    %2814 = vmatpush.bf16.msra.mxu0 0
    %2815 = vmatpush.bf16.msra.mxu0 %v460
    %2816 = vmatpush.bf16.msra.mxu0 %v459
    %2817 = vmatmul.bf16.gmra.mxu0 %v2499
    %v2818 = vpop.f32.mrf.mxu0
    %v2819 = vadd.f32 0.0, %v2818
    %v2820 = vpop.f32.mrf.mxu0
    %2821 = vdwg.mxu0
    %2822 = vmatpush.bf16.msra.mxu0 0
    %2823 = vmatpush.bf16.msra.mxu0 0
    %2824 = vmatpush.bf16.msra.mxu0 0
    %2825 = vmatpush.bf16.msra.mxu0 0
    %2826 = vmatpush.bf16.msra.mxu0 0
    %2827 = vmatpush.bf16.msra.mxu0 0
    %2828 = vmatpush.bf16.msra.mxu0 %v485
    %2829 = vmatpush.bf16.msra.mxu0 %v484
    %2830 = vmatmul.bf16.gmra.mxu0 %v2766
    %v2831 = vpop.f32.mrf.mxu0
    %v2832 = vadd.f32 %v2819, %v2831
    %v2833 = vpop.f32.mrf.mxu0
    %2834 = vdwg.mxu0
    %v2835 = vadd.f32 %v2832, %v180
    %2836 = vmatpush.bf16.msra.mxu0 0
    %2837 = vmatpush.bf16.msra.mxu0 0
    %2838 = vmatpush.bf16.msra.mxu0 0
    %2839 = vmatpush.bf16.msra.mxu0 0
    %2840 = vmatpush.bf16.msra.mxu0 0
    %2841 = vmatpush.bf16.msra.mxu0 0
    %2842 = vmatpush.bf16.msra.mxu0 %v511
    %2843 = vmatpush.bf16.msra.mxu0 %v510
    %2844 = vmatmul.bf16.gmra.mxu0 %v2499
    %v2845 = vpop.f32.mrf.mxu0
    %v2846 = vadd.f32 0.0, %v2845
    %v2847 = vpop.f32.mrf.mxu0
    %2848 = vdwg.mxu0
    %2849 = vmatpush.bf16.msra.mxu0 0
    %2850 = vmatpush.bf16.msra.mxu0 0
    %2851 = vmatpush.bf16.msra.mxu0 0
    %2852 = vmatpush.bf16.msra.mxu0 0
    %2853 = vmatpush.bf16.msra.mxu0 0
    %2854 = vmatpush.bf16.msra.mxu0 0
    %2855 = vmatpush.bf16.msra.mxu0 %v536
    %2856 = vmatpush.bf16.msra.mxu0 %v535
    %2857 = vmatmul.bf16.gmra.mxu0 %v2766
    %v2858 = vpop.f32.mrf.mxu0
    %v2859 = vadd.f32 %v2846, %v2858
    %v2860 = vpop.f32.mrf.mxu0
    %2861 = vdwg.mxu0
    %v2862 = vadd.f32 %v2859, %v181
    %v2863 = vxor.u32 %v2781, 2147483648
    %v2864 = vmul.f32 %v2863, 1.442695
    %v2865 = vpow.pop %v2864
    %v2866 = vadd.f32 %v2865, 1.0
    %v2867 = vrcp.pop %v2866
    %v2868 = vmul.f32 %v2866, %v2867
    %v2869 = vsub.f32 1.0, %v2868
    %v2870 = vmul.f32 %v2867, %v2869
    %v2871 = vadd.f32 %v2867, %v2870
    %vm2872 = vweird.f32 %v2866
    %vm2873 = vweird.f32 %v2867
    %vm2874 = vmor %vm2872, %vm2873
    %v2875 = vsel %vm2874, %v2867, %v2871
    %v2876 = vand.u32 2147483647, %v2866
    %vm2877 = vcmp.eq.f32.partialorder %v2876, 8.507059e+37
    %v2878 = vand.u32 %v2866, 2147483648
    %v2879 = vor.u32 1.1754944e-38, %v2878
    %v2880 = vsel %vm2877, %v2879, %v2875
    %v2881 = vmul.f32 1.0, %v2880
    %v2882 = vxor.u32 %v2808, 2147483648
    %v2883 = vmul.f32 %v2882, 1.442695
    %v2884 = vpow.pop %v2883
    %v2885 = vadd.f32 %v2884, 1.0
    %v2886 = vrcp.pop %v2885
    %v2887 = vmul.f32 %v2885, %v2886
    %v2888 = vsub.f32 1.0, %v2887
    %v2889 = vmul.f32 %v2886, %v2888
    %v2890 = vadd.f32 %v2886, %v2889
    %vm2891 = vweird.f32 %v2885
    %vm2892 = vweird.f32 %v2886
    %vm2893 = vmor %vm2891, %vm2892
    %v2894 = vsel %vm2893, %v2886, %v2890
    %v2895 = vand.u32 2147483647, %v2885
    %vm2896 = vcmp.eq.f32.partialorder %v2895, 8.507059e+37
    %v2897 = vand.u32 %v2885, 2147483648
    %v2898 = vor.u32 1.1754944e-38, %v2897
    %v2899 = vsel %vm2896, %v2898, %v2894
    %v2900 = vmul.f32 1.0, %v2899
    %v2901 = vtanh.pop %v2835
    %v2902 = vxor.u32 %v2862, 2147483648
    %v2903 = vmul.f32 %v2902, 1.442695
    %v2904 = vpow.pop %v2903
    %v2905 = vadd.f32 %v2904, 1.0
    %v2906 = vrcp.pop %v2905
    %v2907 = vmul.f32 %v2905, %v2906
    %v2908 = vsub.f32 1.0, %v2907
    %v2909 = vmul.f32 %v2906, %v2908
    %v2910 = vadd.f32 %v2906, %v2909
    %vm2911 = vweird.f32 %v2905
    %vm2912 = vweird.f32 %v2906
    %vm2913 = vmor %vm2911, %vm2912
    %v2914 = vsel %vm2913, %v2906, %v2910
    %v2915 = vand.u32 2147483647, %v2905
    %vm2916 = vcmp.eq.f32.partialorder %v2915, 8.507059e+37
    %v2917 = vand.u32 %v2905, 2147483648
    %v2918 = vor.u32 1.1754944e-38, %v2917
    %v2919 = vsel %vm2916, %v2918, %v2914
    %v2920 = vmul.f32 1.0, %v2919
    %v2921 = vmul.f32 %v2900, %v2481
    %v2922 = vmul.f32 %v2881, %v2901
    %v2923 = vadd.f32 %v2921, %v2922
    %v2924 = vtanh.pop %v2923
    %v2925 = vmul.f32 %v2920, %v2924
    %v2926 = vpack.c.bf16 %v2925, %v2925
    %2927 = vmatpush.bf16.msra.mxu0 0
    %2928 = vmatpush.bf16.msra.mxu0 0
    %2929 = vmatpush.bf16.msra.mxu0 0
    %2930 = vmatpush.bf16.msra.mxu0 0
    %2931 = vmatpush.bf16.msra.mxu0 0
    %2932 = vmatpush.bf16.msra.mxu0 0
    %2933 = vmatpush.bf16.msra.mxu0 %v626
    %2934 = vmatpush.bf16.msra.mxu0 %v625
    %2935 = vmatmul.bf16.gmra.mxu0 %v2675
    %v2936 = vpop.f32.mrf.mxu0
    %v2937 = vadd.f32 0.0, %v2936
    %v2938 = vpop.f32.mrf.mxu0
    %2939 = vdwg.mxu0
    %v2941 = vsel %vm209, %v2926, 0
    %2943 = vmatpush.bf16.msra.mxu0 0
    %2944 = vmatpush.bf16.msra.mxu0 0
    %2945 = vmatpush.bf16.msra.mxu0 0
    %2946 = vmatpush.bf16.msra.mxu0 0
    %2947 = vmatpush.bf16.msra.mxu0 0
    %2948 = vmatpush.bf16.msra.mxu0 0
    %2949 = vmatpush.bf16.msra.mxu0 %v654
    %2950 = vmatpush.bf16.msra.mxu0 %v653
    %2951 = vmatmul.bf16.gmra.mxu0 %v2941
    %v2952 = vpop.f32.mrf.mxu0
    %v2953 = vadd.f32 %v2937, %v2952
    %v2954 = vpop.f32.mrf.mxu0
    %2955 = vdwg.mxu0
    %v2956 = vadd.f32 %v2953, %v182
    %2957 = vmatpush.bf16.msra.mxu0 0
    %2958 = vmatpush.bf16.msra.mxu0 0
    %2959 = vmatpush.bf16.msra.mxu0 0
    %2960 = vmatpush.bf16.msra.mxu0 0
    %2961 = vmatpush.bf16.msra.mxu0 0
    %2962 = vmatpush.bf16.msra.mxu0 0
    %2963 = vmatpush.bf16.msra.mxu0 %v683
    %2964 = vmatpush.bf16.msra.mxu0 %v682
    %2965 = vmatmul.bf16.gmra.mxu0 %v2675
    %v2966 = vpop.f32.mrf.mxu0
    %v2967 = vadd.f32 0.0, %v2966
    %v2968 = vpop.f32.mrf.mxu0
    %2969 = vdwg.mxu0
    %2970 = vmatpush.bf16.msra.mxu0 0
    %2971 = vmatpush.bf16.msra.mxu0 0
    %2972 = vmatpush.bf16.msra.mxu0 0
    %2973 = vmatpush.bf16.msra.mxu0 0
    %2974 = vmatpush.bf16.msra.mxu0 0
    %2975 = vmatpush.bf16.msra.mxu0 0
    %2976 = vmatpush.bf16.msra.mxu0 %v708
    %2977 = vmatpush.bf16.msra.mxu0 %v707
    %2978 = vmatmul.bf16.gmra.mxu0 %v2941
    %v2979 = vpop.f32.mrf.mxu0
    %v2980 = vadd.f32 %v2967, %v2979
    %v2981 = vpop.f32.mrf.mxu0
    %2982 = vdwg.mxu0
    %v2983 = vadd.f32 %v2980, %v183
    %2984 = vmatpush.bf16.msra.mxu0 0
    %2985 = vmatpush.bf16.msra.mxu0 0
    %2986 = vmatpush.bf16.msra.mxu0 0
    %2987 = vmatpush.bf16.msra.mxu0 0
    %2988 = vmatpush.bf16.msra.mxu0 0
    %2989 = vmatpush.bf16.msra.mxu0 0
    %2990 = vmatpush.bf16.msra.mxu0 %v734
    %2991 = vmatpush.bf16.msra.mxu0 %v733
    %2992 = vmatmul.bf16.gmra.mxu0 %v2675
    %v2993 = vpop.f32.mrf.mxu0
    %v2994 = vadd.f32 0.0, %v2993
    %v2995 = vpop.f32.mrf.mxu0
    %2996 = vdwg.mxu0
    %2997 = vmatpush.bf16.msra.mxu0 0
    %2998 = vmatpush.bf16.msra.mxu0 0
    %2999 = vmatpush.bf16.msra.mxu0 0
    %3000 = vmatpush.bf16.msra.mxu0 0
    %3001 = vmatpush.bf16.msra.mxu0 0
    %3002 = vmatpush.bf16.msra.mxu0 0
    %3003 = vmatpush.bf16.msra.mxu0 %v759
    %3004 = vmatpush.bf16.msra.mxu0 %v758
    %3005 = vmatmul.bf16.gmra.mxu0 %v2941
    %v3006 = vpop.f32.mrf.mxu0
    %v3007 = vadd.f32 %v2994, %v3006
    %v3008 = vpop.f32.mrf.mxu0
    %3009 = vdwg.mxu0
    %v3010 = vadd.f32 %v3007, %v184
    %3011 = vmatpush.bf16.msra.mxu0 0
    %3012 = vmatpush.bf16.msra.mxu0 0
    %3013 = vmatpush.bf16.msra.mxu0 0
    %3014 = vmatpush.bf16.msra.mxu0 0
    %3015 = vmatpush.bf16.msra.mxu0 0
    %3016 = vmatpush.bf16.msra.mxu0 0
    %3017 = vmatpush.bf16.msra.mxu0 %v785
    %3018 = vmatpush.bf16.msra.mxu0 %v784
    %3019 = vmatmul.bf16.gmra.mxu0 %v2675
    %v3020 = vpop.f32.mrf.mxu0
    %v3021 = vadd.f32 0.0, %v3020
    %v3022 = vpop.f32.mrf.mxu0
    %3023 = vdwg.mxu0
    %3024 = vmatpush.bf16.msra.mxu0 0
    %3025 = vmatpush.bf16.msra.mxu0 0
    %3026 = vmatpush.bf16.msra.mxu0 0
    %3027 = vmatpush.bf16.msra.mxu0 0
    %3028 = vmatpush.bf16.msra.mxu0 0
    %3029 = vmatpush.bf16.msra.mxu0 0
    %3030 = vmatpush.bf16.msra.mxu0 %v810
    %3031 = vmatpush.bf16.msra.mxu0 %v809
    %3032 = vmatmul.bf16.gmra.mxu0 %v2941
    %v3033 = vpop.f32.mrf.mxu0
    %v3034 = vadd.f32 %v3021, %v3033
    %v3035 = vpop.f32.mrf.mxu0
    %3036 = vdwg.mxu0
    %v3037 = vadd.f32 %v3034, %v185
    %v3038 = vxor.u32 %v2956, 2147483648
    %v3039 = vmul.f32 %v3038, 1.442695
    %v3040 = vpow.pop %v3039
    %v3041 = vadd.f32 %v3040, 1.0
    %v3042 = vrcp.pop %v3041
    %v3043 = vmul.f32 %v3041, %v3042
    %v3044 = vsub.f32 1.0, %v3043
    %v3045 = vmul.f32 %v3042, %v3044
    %v3046 = vadd.f32 %v3042, %v3045
    %vm3047 = vweird.f32 %v3041
    %vm3048 = vweird.f32 %v3042
    %vm3049 = vmor %vm3047, %vm3048
    %v3050 = vsel %vm3049, %v3042, %v3046
    %v3051 = vand.u32 2147483647, %v3041
    %vm3052 = vcmp.eq.f32.partialorder %v3051, 8.507059e+37
    %v3053 = vand.u32 %v3041, 2147483648
    %v3054 = vor.u32 1.1754944e-38, %v3053
    %v3055 = vsel %vm3052, %v3054, %v3050
    %v3056 = vmul.f32 1.0, %v3055
    %v3057 = vxor.u32 %v2983, 2147483648
    %v3058 = vmul.f32 %v3057, 1.442695
    %v3059 = vpow.pop %v3058
    %v3060 = vadd.f32 %v3059, 1.0
    %v3061 = vrcp.pop %v3060
    %v3062 = vmul.f32 %v3060, %v3061
    %v3063 = vsub.f32 1.0, %v3062
    %v3064 = vmul.f32 %v3061, %v3063
    %v3065 = vadd.f32 %v3061, %v3064
    %vm3066 = vweird.f32 %v3060
    %vm3067 = vweird.f32 %v3061
    %vm3068 = vmor %vm3066, %vm3067
    %v3069 = vsel %vm3068, %v3061, %v3065
    %v3070 = vand.u32 2147483647, %v3060
    %vm3071 = vcmp.eq.f32.partialorder %v3070, 8.507059e+37
    %v3072 = vand.u32 %v3060, 2147483648
    %v3073 = vor.u32 1.1754944e-38, %v3072
    %v3074 = vsel %vm3071, %v3073, %v3069
    %v3075 = vmul.f32 1.0, %v3074
    %v3076 = vtanh.pop %v3010
    %v3077 = vxor.u32 %v3037, 2147483648
    %v3078 = vmul.f32 %v3077, 1.442695
    %v3079 = vpow.pop %v3078
    %v3080 = vadd.f32 %v3079, 1.0
    %v3081 = vrcp.pop %v3080
    %v3082 = vmul.f32 %v3080, %v3081
    %v3083 = vsub.f32 1.0, %v3082
    %v3084 = vmul.f32 %v3081, %v3083
    %v3085 = vadd.f32 %v3081, %v3084
    %vm3086 = vweird.f32 %v3080
    %vm3087 = vweird.f32 %v3081
    %vm3088 = vmor %vm3086, %vm3087
    %v3089 = vsel %vm3088, %v3081, %v3085
    %v3090 = vand.u32 2147483647, %v3080
    %vm3091 = vcmp.eq.f32.partialorder %v3090, 8.507059e+37
    %v3092 = vand.u32 %v3080, 2147483648
    %v3093 = vor.u32 1.1754944e-38, %v3092
    %v3094 = vsel %vm3091, %v3093, %v3089
    %v3095 = vmul.f32 1.0, %v3094
    %v3096 = vmul.f32 %v3075, %v2656
    %v3097 = vmul.f32 %v3056, %v3076
    %v3098 = vadd.f32 %v3096, %v3097
    %v3099 = vtanh.pop %v3098
    %v3100 = vmul.f32 %v3095, %v3099
    %v3101 = vpack.c.bf16 %v3100, %v3100
    %3102 = vst.msk [vmem:[#allocation2 + $0x5] sm:$0x1] %vm891, %v3100
    %3103 = vmatpush.bf16.msra.mxu0 0
    %3104 = vmatpush.bf16.msra.mxu0 0
    %3105 = vmatpush.bf16.msra.mxu0 0
    %3106 = vmatpush.bf16.msra.mxu0 0
    %3107 = vmatpush.bf16.msra.mxu0 0
    %3108 = vmatpush.bf16.msra.mxu0 0
    %3109 = vmatpush.bf16.msra.mxu0 %v206
    %3110 = vmatpush.bf16.msra.mxu0 %v205
    %3111 = vmatmul.bf16.gmra.mxu0 %v2941
    %v3112 = vpop.f32.mrf.mxu0
    %v3113 = vadd.f32 0.0, %v3112
    %v3114 = vpop.f32.mrf.mxu0
    %3115 = vdwg.mxu0
    %v3117 = vsel %vm209, %v3101, 0
    %3119 = vmatpush.bf16.msra.mxu0 0
    %3120 = vmatpush.bf16.msra.mxu0 0
    %3121 = vmatpush.bf16.msra.mxu0 0
    %3122 = vmatpush.bf16.msra.mxu0 0
    %3123 = vmatpush.bf16.msra.mxu0 0
    %3124 = vmatpush.bf16.msra.mxu0 0
    %3125 = vmatpush.bf16.msra.mxu0 %v235
    %3126 = vmatpush.bf16.msra.mxu0 %v234
    %3127 = vmatmul.bf16.gmra.mxu0 %v3117
    %v3128 = vpop.f32.mrf.mxu0
    %v3129 = vadd.f32 %v3113, %v3128
    %v3130 = vpop.f32.mrf.mxu0
    %3131 = vdwg.mxu0
    %v3132 = vadd.f32 %v3129, %v176
    %v3133 = vsel %vm255, %v3132, -inf
    %3134 = vmax.xlane.f32.xlu0 %v3133
    %v3135 = vpop.xlane.xlu0 %3134
    %v3136 = vsub.f32 %v3132, %v3135
    %v3137 = vmul.f32 %v3136, 1.442695
    %v3138 = vpow.pop %v3137
    %v3139 = vsel %vm255, %v3138, 0.0
    %3140 = vadd.xlane.f32.xlu0 %v3139
    %v3141 = vpop.xlane.xlu0 %3140
    %v3142 = vrcp.pop %v3141
    %v3143 = vpack.c.bf16 %v3138, %v3138
    %v3145 = vsel %vm267, %v3143, 0
    %3147 = vmatpush.bf16.msra.mxu0 0
    %3148 = vmatpush.bf16.msra.mxu0 0
    %3149 = vmatpush.bf16.msra.mxu0 0
    %3150 = vmatpush.bf16.msra.mxu0 0
    %3151 = vmatpush.bf16.msra.mxu0 0
    %3152 = vmatpush.bf16.msra.mxu0 0
    %3153 = vmatpush.bf16.msra.mxu0 0
    %3154 = vmatpush.bf16.msra.mxu0 %v273
    %3155 = vmatmul.bf16.gmra.mxu0 %v3145
    %v3156 = vpop.f32.mrf.mxu0
    %v3157 = vadd.f32 0.0, %v3156
    %v3158 = vpop.f32.mrf.mxu0
    %3159 = vdwg.mxu0
    %v3160 = vmul.f32 %v3157, %v3142
    %v3161 = vpack.c.bf16 %v3160, %v3160
    %v3163 = vsel %vm209, %v3161, 0
    %3165 = vmatpush.bf16.msra.mxu0 0
    %3166 = vmatpush.bf16.msra.mxu0 0
    %3167 = vmatpush.bf16.msra.mxu0 0
    %3168 = vmatpush.bf16.msra.mxu0 0
    %3169 = vmatpush.bf16.msra.mxu0 0
    %3170 = vmatpush.bf16.msra.mxu0 0
    %3171 = vmatpush.bf16.msra.mxu0 %v299
    %3172 = vmatpush.bf16.msra.mxu0 %v298
    %3173 = vmatmul.bf16.gmra.mxu0 %v3163
    %v3174 = vpop.f32.mrf.mxu0
    %v3175 = vadd.f32 0.0, %v3174
    %v3176 = vpop.f32.mrf.mxu0
    %3177 = vdwg.mxu0
    %3178 = vmatpush.bf16.msra.mxu0 0
    %3179 = vmatpush.bf16.msra.mxu0 0
    %3180 = vmatpush.bf16.msra.mxu0 0
    %3181 = vmatpush.bf16.msra.mxu0 0
    %3182 = vmatpush.bf16.msra.mxu0 0
    %3183 = vmatpush.bf16.msra.mxu0 0
    %3184 = vmatpush.bf16.msra.mxu0 %v327
    %3185 = vmatpush.bf16.msra.mxu0 %v326
    %3186 = vmatmul.bf16.gmra.mxu0 %v3117
    %v3187 = vpop.f32.mrf.mxu0
    %v3188 = vadd.f32 %v3175, %v3187
    %v3189 = vpop.f32.mrf.mxu0
    %3190 = vdwg.mxu0
    %v3191 = vadd.f32 %v3188, %v177
    %v3192 = vmax.f32 %v3191, 0.0
    %v3193 = vpack.c.bf16 %v3192, %v3192
    %3194 = vmatpush.bf16.msra.mxu0 0
    %3195 = vmatpush.bf16.msra.mxu0 0
    %3196 = vmatpush.bf16.msra.mxu0 0
    %3197 = vmatpush.bf16.msra.mxu0 0
    %3198 = vmatpush.bf16.msra.mxu0 0
    %3199 = vmatpush.bf16.msra.mxu0 0
    %3200 = vmatpush.bf16.msra.mxu0 %v355
    %3201 = vmatpush.bf16.msra.mxu0 %v354
    %3202 = vmatmul.bf16.gmra.mxu0 %v2941
    %v3203 = vpop.f32.mrf.mxu0
    %v3204 = vadd.f32 0.0, %v3203
    %v3205 = vpop.f32.mrf.mxu0
    %3206 = vdwg.mxu0
    %v3208 = vsel %vm209, %v3193, 0
    %3210 = vmatpush.bf16.msra.mxu0 0
    %3211 = vmatpush.bf16.msra.mxu0 0
    %3212 = vmatpush.bf16.msra.mxu0 0
    %3213 = vmatpush.bf16.msra.mxu0 0
    %3214 = vmatpush.bf16.msra.mxu0 0
    %3215 = vmatpush.bf16.msra.mxu0 0
    %3216 = vmatpush.bf16.msra.mxu0 %v380
    %3217 = vmatpush.bf16.msra.mxu0 %v379
    %3218 = vmatmul.bf16.gmra.mxu0 %v3208
    %v3219 = vpop.f32.mrf.mxu0
    %v3220 = vadd.f32 %v3204, %v3219
    %v3221 = vpop.f32.mrf.mxu0
    %3222 = vdwg.mxu0
    %v3223 = vadd.f32 %v3220, %v178
    %3224 = vmatpush.bf16.msra.mxu0 0
    %3225 = vmatpush.bf16.msra.mxu0 0
    %3226 = vmatpush.bf16.msra.mxu0 0
    %3227 = vmatpush.bf16.msra.mxu0 0
    %3228 = vmatpush.bf16.msra.mxu0 0
    %3229 = vmatpush.bf16.msra.mxu0 0
    %3230 = vmatpush.bf16.msra.mxu0 %v409
    %3231 = vmatpush.bf16.msra.mxu0 %v408
    %3232 = vmatmul.bf16.gmra.mxu0 %v2941
    %v3233 = vpop.f32.mrf.mxu0
    %v3234 = vadd.f32 0.0, %v3233
    %v3235 = vpop.f32.mrf.mxu0
    %3236 = vdwg.mxu0
    %3237 = vmatpush.bf16.msra.mxu0 0
    %3238 = vmatpush.bf16.msra.mxu0 0
    %3239 = vmatpush.bf16.msra.mxu0 0
    %3240 = vmatpush.bf16.msra.mxu0 0
    %3241 = vmatpush.bf16.msra.mxu0 0
    %3242 = vmatpush.bf16.msra.mxu0 0
    %3243 = vmatpush.bf16.msra.mxu0 %v434
    %3244 = vmatpush.bf16.msra.mxu0 %v433
    %3245 = vmatmul.bf16.gmra.mxu0 %v3208
    %v3246 = vpop.f32.mrf.mxu0
    %v3247 = vadd.f32 %v3234, %v3246
    %v3248 = vpop.f32.mrf.mxu0
    %3249 = vdwg.mxu0
    %v3250 = vadd.f32 %v3247, %v179
    %3251 = vmatpush.bf16.msra.mxu0 0
    %3252 = vmatpush.bf16.msra.mxu0 0
    %3253 = vmatpush.bf16.msra.mxu0 0
    %3254 = vmatpush.bf16.msra.mxu0 0
    %3255 = vmatpush.bf16.msra.mxu0 0
    %3256 = vmatpush.bf16.msra.mxu0 0
    %3257 = vmatpush.bf16.msra.mxu0 %v460
    %3258 = vmatpush.bf16.msra.mxu0 %v459
    %3259 = vmatmul.bf16.gmra.mxu0 %v2941
    %v3260 = vpop.f32.mrf.mxu0
    %v3261 = vadd.f32 0.0, %v3260
    %v3262 = vpop.f32.mrf.mxu0
    %3263 = vdwg.mxu0
    %3264 = vmatpush.bf16.msra.mxu0 0
    %3265 = vmatpush.bf16.msra.mxu0 0
    %3266 = vmatpush.bf16.msra.mxu0 0
    %3267 = vmatpush.bf16.msra.mxu0 0
    %3268 = vmatpush.bf16.msra.mxu0 0
    %3269 = vmatpush.bf16.msra.mxu0 0
    %3270 = vmatpush.bf16.msra.mxu0 %v485
    %3271 = vmatpush.bf16.msra.mxu0 %v484
    %3272 = vmatmul.bf16.gmra.mxu0 %v3208
    %v3273 = vpop.f32.mrf.mxu0
    %v3274 = vadd.f32 %v3261, %v3273
    %v3275 = vpop.f32.mrf.mxu0
    %3276 = vdwg.mxu0
    %v3277 = vadd.f32 %v3274, %v180
    %3278 = vmatpush.bf16.msra.mxu0 0
    %3279 = vmatpush.bf16.msra.mxu0 0
    %3280 = vmatpush.bf16.msra.mxu0 0
    %3281 = vmatpush.bf16.msra.mxu0 0
    %3282 = vmatpush.bf16.msra.mxu0 0
    %3283 = vmatpush.bf16.msra.mxu0 0
    %3284 = vmatpush.bf16.msra.mxu0 %v511
    %3285 = vmatpush.bf16.msra.mxu0 %v510
    %3286 = vmatmul.bf16.gmra.mxu0 %v2941
    %v3287 = vpop.f32.mrf.mxu0
    %v3288 = vadd.f32 0.0, %v3287
    %v3289 = vpop.f32.mrf.mxu0
    %3290 = vdwg.mxu0
    %3291 = vmatpush.bf16.msra.mxu0 0
    %3292 = vmatpush.bf16.msra.mxu0 0
    %3293 = vmatpush.bf16.msra.mxu0 0
    %3294 = vmatpush.bf16.msra.mxu0 0
    %3295 = vmatpush.bf16.msra.mxu0 0
    %3296 = vmatpush.bf16.msra.mxu0 0
    %3297 = vmatpush.bf16.msra.mxu0 %v536
    %3298 = vmatpush.bf16.msra.mxu0 %v535
    %3299 = vmatmul.bf16.gmra.mxu0 %v3208
    %v3300 = vpop.f32.mrf.mxu0
    %v3301 = vadd.f32 %v3288, %v3300
    %v3302 = vpop.f32.mrf.mxu0
    %3303 = vdwg.mxu0
    %v3304 = vadd.f32 %v3301, %v181
    %v3305 = vxor.u32 %v3223, 2147483648
    %v3306 = vmul.f32 %v3305, 1.442695
    %v3307 = vpow.pop %v3306
    %v3308 = vadd.f32 %v3307, 1.0
    %v3309 = vrcp.pop %v3308
    %v3310 = vmul.f32 %v3308, %v3309
    %v3311 = vsub.f32 1.0, %v3310
    %v3312 = vmul.f32 %v3309, %v3311
    %v3313 = vadd.f32 %v3309, %v3312
    %vm3314 = vweird.f32 %v3308
    %vm3315 = vweird.f32 %v3309
    %vm3316 = vmor %vm3314, %vm3315
    %v3317 = vsel %vm3316, %v3309, %v3313
    %v3318 = vand.u32 2147483647, %v3308
    %vm3319 = vcmp.eq.f32.partialorder %v3318, 8.507059e+37
    %v3320 = vand.u32 %v3308, 2147483648
    %v3321 = vor.u32 1.1754944e-38, %v3320
    %v3322 = vsel %vm3319, %v3321, %v3317
    %v3323 = vmul.f32 1.0, %v3322
    %v3324 = vxor.u32 %v3250, 2147483648
    %v3325 = vmul.f32 %v3324, 1.442695
    %v3326 = vpow.pop %v3325
    %v3327 = vadd.f32 %v3326, 1.0
    %v3328 = vrcp.pop %v3327
    %v3329 = vmul.f32 %v3327, %v3328
    %v3330 = vsub.f32 1.0, %v3329
    %v3331 = vmul.f32 %v3328, %v3330
    %v3332 = vadd.f32 %v3328, %v3331
    %vm3333 = vweird.f32 %v3327
    %vm3334 = vweird.f32 %v3328
    %vm3335 = vmor %vm3333, %vm3334
    %v3336 = vsel %vm3335, %v3328, %v3332
    %v3337 = vand.u32 2147483647, %v3327
    %vm3338 = vcmp.eq.f32.partialorder %v3337, 8.507059e+37
    %v3339 = vand.u32 %v3327, 2147483648
    %v3340 = vor.u32 1.1754944e-38, %v3339
    %v3341 = vsel %vm3338, %v3340, %v3336
    %v3342 = vmul.f32 1.0, %v3341
    %v3343 = vtanh.pop %v3277
    %v3344 = vxor.u32 %v3304, 2147483648
    %v3345 = vmul.f32 %v3344, 1.442695
    %v3346 = vpow.pop %v3345
    %v3347 = vadd.f32 %v3346, 1.0
    %v3348 = vrcp.pop %v3347
    %v3349 = vmul.f32 %v3347, %v3348
    %v3350 = vsub.f32 1.0, %v3349
    %v3351 = vmul.f32 %v3348, %v3350
    %v3352 = vadd.f32 %v3348, %v3351
    %vm3353 = vweird.f32 %v3347
    %vm3354 = vweird.f32 %v3348
    %vm3355 = vmor %vm3353, %vm3354
    %v3356 = vsel %vm3355, %v3348, %v3352
    %v3357 = vand.u32 2147483647, %v3347
    %vm3358 = vcmp.eq.f32.partialorder %v3357, 8.507059e+37
    %v3359 = vand.u32 %v3347, 2147483648
    %v3360 = vor.u32 1.1754944e-38, %v3359
    %v3361 = vsel %vm3358, %v3360, %v3356
    %v3362 = vmul.f32 1.0, %v3361
    %v3363 = vmul.f32 %v3342, %v2923
    %v3364 = vmul.f32 %v3323, %v3343
    %v3365 = vadd.f32 %v3363, %v3364
    %v3366 = vtanh.pop %v3365
    %v3367 = vmul.f32 %v3362, %v3366
    %v3368 = vpack.c.bf16 %v3367, %v3367
    %3369 = vmatpush.bf16.msra.mxu0 0
    %3370 = vmatpush.bf16.msra.mxu0 0
    %3371 = vmatpush.bf16.msra.mxu0 0
    %3372 = vmatpush.bf16.msra.mxu0 0
    %3373 = vmatpush.bf16.msra.mxu0 0
    %3374 = vmatpush.bf16.msra.mxu0 0
    %3375 = vmatpush.bf16.msra.mxu0 %v626
    %3376 = vmatpush.bf16.msra.mxu0 %v625
    %3377 = vmatmul.bf16.gmra.mxu0 %v3117
    %v3378 = vpop.f32.mrf.mxu0
    %v3379 = vadd.f32 0.0, %v3378
    %v3380 = vpop.f32.mrf.mxu0
    %3381 = vdwg.mxu0
    %v3383 = vsel %vm209, %v3368, 0
    %3385 = vmatpush.bf16.msra.mxu0 0
    %3386 = vmatpush.bf16.msra.mxu0 0
    %3387 = vmatpush.bf16.msra.mxu0 0
    %3388 = vmatpush.bf16.msra.mxu0 0
    %3389 = vmatpush.bf16.msra.mxu0 0
    %3390 = vmatpush.bf16.msra.mxu0 0
    %3391 = vmatpush.bf16.msra.mxu0 %v654
    %3392 = vmatpush.bf16.msra.mxu0 %v653
    %3393 = vmatmul.bf16.gmra.mxu0 %v3383
    %v3394 = vpop.f32.mrf.mxu0
    %v3395 = vadd.f32 %v3379, %v3394
    %v3396 = vpop.f32.mrf.mxu0
    %3397 = vdwg.mxu0
    %v3398 = vadd.f32 %v3395, %v182
    %3399 = vmatpush.bf16.msra.mxu0 0
    %3400 = vmatpush.bf16.msra.mxu0 0
    %3401 = vmatpush.bf16.msra.mxu0 0
    %3402 = vmatpush.bf16.msra.mxu0 0
    %3403 = vmatpush.bf16.msra.mxu0 0
    %3404 = vmatpush.bf16.msra.mxu0 0
    %3405 = vmatpush.bf16.msra.mxu0 %v683
    %3406 = vmatpush.bf16.msra.mxu0 %v682
    %3407 = vmatmul.bf16.gmra.mxu0 %v3117
    %v3408 = vpop.f32.mrf.mxu0
    %v3409 = vadd.f32 0.0, %v3408
    %v3410 = vpop.f32.mrf.mxu0
    %3411 = vdwg.mxu0
    %3412 = vmatpush.bf16.msra.mxu0 0
    %3413 = vmatpush.bf16.msra.mxu0 0
    %3414 = vmatpush.bf16.msra.mxu0 0
    %3415 = vmatpush.bf16.msra.mxu0 0
    %3416 = vmatpush.bf16.msra.mxu0 0
    %3417 = vmatpush.bf16.msra.mxu0 0
    %3418 = vmatpush.bf16.msra.mxu0 %v708
    %3419 = vmatpush.bf16.msra.mxu0 %v707
    %3420 = vmatmul.bf16.gmra.mxu0 %v3383
    %v3421 = vpop.f32.mrf.mxu0
    %v3422 = vadd.f32 %v3409, %v3421
    %v3423 = vpop.f32.mrf.mxu0
    %3424 = vdwg.mxu0
    %v3425 = vadd.f32 %v3422, %v183
    %3426 = vmatpush.bf16.msra.mxu0 0
    %3427 = vmatpush.bf16.msra.mxu0 0
    %3428 = vmatpush.bf16.msra.mxu0 0
    %3429 = vmatpush.bf16.msra.mxu0 0
    %3430 = vmatpush.bf16.msra.mxu0 0
    %3431 = vmatpush.bf16.msra.mxu0 0
    %3432 = vmatpush.bf16.msra.mxu0 %v734
    %3433 = vmatpush.bf16.msra.mxu0 %v733
    %3434 = vmatmul.bf16.gmra.mxu0 %v3117
    %v3435 = vpop.f32.mrf.mxu0
    %v3436 = vadd.f32 0.0, %v3435
    %v3437 = vpop.f32.mrf.mxu0
    %3438 = vdwg.mxu0
    %3439 = vmatpush.bf16.msra.mxu0 0
    %3440 = vmatpush.bf16.msra.mxu0 0
    %3441 = vmatpush.bf16.msra.mxu0 0
    %3442 = vmatpush.bf16.msra.mxu0 0
    %3443 = vmatpush.bf16.msra.mxu0 0
    %3444 = vmatpush.bf16.msra.mxu0 0
    %3445 = vmatpush.bf16.msra.mxu0 %v759
    %3446 = vmatpush.bf16.msra.mxu0 %v758
    %3447 = vmatmul.bf16.gmra.mxu0 %v3383
    %v3448 = vpop.f32.mrf.mxu0
    %v3449 = vadd.f32 %v3436, %v3448
    %v3450 = vpop.f32.mrf.mxu0
    %3451 = vdwg.mxu0
    %v3452 = vadd.f32 %v3449, %v184
    %3453 = vmatpush.bf16.msra.mxu0 0
    %3454 = vmatpush.bf16.msra.mxu0 0
    %3455 = vmatpush.bf16.msra.mxu0 0
    %3456 = vmatpush.bf16.msra.mxu0 0
    %3457 = vmatpush.bf16.msra.mxu0 0
    %3458 = vmatpush.bf16.msra.mxu0 0
    %3459 = vmatpush.bf16.msra.mxu0 %v785
    %3460 = vmatpush.bf16.msra.mxu0 %v784
    %3461 = vmatmul.bf16.gmra.mxu0 %v3117
    %v3462 = vpop.f32.mrf.mxu0
    %v3463 = vadd.f32 0.0, %v3462
    %v3464 = vpop.f32.mrf.mxu0
    %3465 = vdwg.mxu0
    %3466 = vmatpush.bf16.msra.mxu0 0
    %3467 = vmatpush.bf16.msra.mxu0 0
    %3468 = vmatpush.bf16.msra.mxu0 0
    %3469 = vmatpush.bf16.msra.mxu0 0
    %3470 = vmatpush.bf16.msra.mxu0 0
    %3471 = vmatpush.bf16.msra.mxu0 0
    %3472 = vmatpush.bf16.msra.mxu0 %v810
    %3473 = vmatpush.bf16.msra.mxu0 %v809
    %3474 = vmatmul.bf16.gmra.mxu0 %v3383
    %v3475 = vpop.f32.mrf.mxu0
    %v3476 = vadd.f32 %v3463, %v3475
    %v3477 = vpop.f32.mrf.mxu0
    %3478 = vdwg.mxu0
    %v3479 = vadd.f32 %v3476, %v185
    %v3480 = vxor.u32 %v3398, 2147483648
    %v3481 = vmul.f32 %v3480, 1.442695
    %v3482 = vpow.pop %v3481
    %v3483 = vadd.f32 %v3482, 1.0
    %v3484 = vrcp.pop %v3483
    %v3485 = vmul.f32 %v3483, %v3484
    %v3486 = vsub.f32 1.0, %v3485
    %v3487 = vmul.f32 %v3484, %v3486
    %v3488 = vadd.f32 %v3484, %v3487
    %vm3489 = vweird.f32 %v3483
    %vm3490 = vweird.f32 %v3484
    %vm3491 = vmor %vm3489, %vm3490
    %v3492 = vsel %vm3491, %v3484, %v3488
    %v3493 = vand.u32 2147483647, %v3483
    %vm3494 = vcmp.eq.f32.partialorder %v3493, 8.507059e+37
    %v3495 = vand.u32 %v3483, 2147483648
    %v3496 = vor.u32 1.1754944e-38, %v3495
    %v3497 = vsel %vm3494, %v3496, %v3492
    %v3498 = vmul.f32 1.0, %v3497
    %v3499 = vxor.u32 %v3425, 2147483648
    %v3500 = vmul.f32 %v3499, 1.442695
    %v3501 = vpow.pop %v3500
    %v3502 = vadd.f32 %v3501, 1.0
    %v3503 = vrcp.pop %v3502
    %v3504 = vmul.f32 %v3502, %v3503
    %v3505 = vsub.f32 1.0, %v3504
    %v3506 = vmul.f32 %v3503, %v3505
    %v3507 = vadd.f32 %v3503, %v3506
    %vm3508 = vweird.f32 %v3502
    %vm3509 = vweird.f32 %v3503
    %vm3510 = vmor %vm3508, %vm3509
    %v3511 = vsel %vm3510, %v3503, %v3507
    %v3512 = vand.u32 2147483647, %v3502
    %vm3513 = vcmp.eq.f32.partialorder %v3512, 8.507059e+37
    %v3514 = vand.u32 %v3502, 2147483648
    %v3515 = vor.u32 1.1754944e-38, %v3514
    %v3516 = vsel %vm3513, %v3515, %v3511
    %v3517 = vmul.f32 1.0, %v3516
    %v3518 = vtanh.pop %v3452
    %v3519 = vxor.u32 %v3479, 2147483648
    %v3520 = vmul.f32 %v3519, 1.442695
    %v3521 = vpow.pop %v3520
    %v3522 = vadd.f32 %v3521, 1.0
    %v3523 = vrcp.pop %v3522
    %v3524 = vmul.f32 %v3522, %v3523
    %v3525 = vsub.f32 1.0, %v3524
    %v3526 = vmul.f32 %v3523, %v3525
    %v3527 = vadd.f32 %v3523, %v3526
    %vm3528 = vweird.f32 %v3522
    %vm3529 = vweird.f32 %v3523
    %vm3530 = vmor %vm3528, %vm3529
    %v3531 = vsel %vm3530, %v3523, %v3527
    %v3532 = vand.u32 2147483647, %v3522
    %vm3533 = vcmp.eq.f32.partialorder %v3532, 8.507059e+37
    %v3534 = vand.u32 %v3522, 2147483648
    %v3535 = vor.u32 1.1754944e-38, %v3534
    %v3536 = vsel %vm3533, %v3535, %v3531
    %v3537 = vmul.f32 1.0, %v3536
    %v3538 = vmul.f32 %v3517, %v3098
    %v3539 = vmul.f32 %v3498, %v3518
    %v3540 = vadd.f32 %v3538, %v3539
    %v3541 = vtanh.pop %v3540
    %v3542 = vmul.f32 %v3537, %v3541
    %v3543 = vpack.c.bf16 %v3542, %v3542
    %3544 = vst.msk [vmem:[#allocation2 + $0x6] sm:$0x1] %vm891, %v3542
    %3545 = vmatpush.bf16.msra.mxu0 0
    %3546 = vmatpush.bf16.msra.mxu0 0
    %3547 = vmatpush.bf16.msra.mxu0 0
    %3548 = vmatpush.bf16.msra.mxu0 0
    %3549 = vmatpush.bf16.msra.mxu0 0
    %3550 = vmatpush.bf16.msra.mxu0 0
    %3551 = vmatpush.bf16.msra.mxu0 %v206
    %3552 = vmatpush.bf16.msra.mxu0 %v205
    %3553 = vmatmul.bf16.gmra.mxu0 %v3383
    %v3554 = vpop.f32.mrf.mxu0
    %v3555 = vadd.f32 0.0, %v3554
    %v3556 = vpop.f32.mrf.mxu0
    %3557 = vdwg.mxu0
    %v3559 = vsel %vm209, %v3543, 0
    %3561 = vmatpush.bf16.msra.mxu0 0
    %3562 = vmatpush.bf16.msra.mxu0 0
    %3563 = vmatpush.bf16.msra.mxu0 0
    %3564 = vmatpush.bf16.msra.mxu0 0
    %3565 = vmatpush.bf16.msra.mxu0 0
    %3566 = vmatpush.bf16.msra.mxu0 0
    %3567 = vmatpush.bf16.msra.mxu0 %v235
    %3568 = vmatpush.bf16.msra.mxu0 %v234
    %3569 = vmatmul.bf16.gmra.mxu0 %v3559
    %v3570 = vpop.f32.mrf.mxu0
    %v3571 = vadd.f32 %v3555, %v3570
    %v3572 = vpop.f32.mrf.mxu0
    %3573 = vdwg.mxu0
    %v3574 = vadd.f32 %v3571, %v176
    %v3575 = vsel %vm255, %v3574, -inf
    %3576 = vmax.xlane.f32.xlu0 %v3575
    %v3577 = vpop.xlane.xlu0 %3576
    %v3578 = vsub.f32 %v3574, %v3577
    %v3579 = vmul.f32 %v3578, 1.442695
    %v3580 = vpow.pop %v3579
    %v3581 = vsel %vm255, %v3580, 0.0
    %3582 = vadd.xlane.f32.xlu0 %v3581
    %v3583 = vpop.xlane.xlu0 %3582
    %v3584 = vrcp.pop %v3583
    %v3585 = vpack.c.bf16 %v3580, %v3580
    %v3587 = vsel %vm267, %v3585, 0
    %3589 = vmatpush.bf16.msra.mxu0 0
    %3590 = vmatpush.bf16.msra.mxu0 0
    %3591 = vmatpush.bf16.msra.mxu0 0
    %3592 = vmatpush.bf16.msra.mxu0 0
    %3593 = vmatpush.bf16.msra.mxu0 0
    %3594 = vmatpush.bf16.msra.mxu0 0
    %3595 = vmatpush.bf16.msra.mxu0 0
    %3596 = vmatpush.bf16.msra.mxu0 %v273
    %3597 = vmatmul.bf16.gmra.mxu0 %v3587
    %v3598 = vpop.f32.mrf.mxu0
    %v3599 = vadd.f32 0.0, %v3598
    %v3600 = vpop.f32.mrf.mxu0
    %3601 = vdwg.mxu0
    %v3602 = vmul.f32 %v3599, %v3584
    %v3603 = vpack.c.bf16 %v3602, %v3602
    %v3605 = vsel %vm209, %v3603, 0
    %3607 = vmatpush.bf16.msra.mxu0 0
    %3608 = vmatpush.bf16.msra.mxu0 0
    %3609 = vmatpush.bf16.msra.mxu0 0
    %3610 = vmatpush.bf16.msra.mxu0 0
    %3611 = vmatpush.bf16.msra.mxu0 0
    %3612 = vmatpush.bf16.msra.mxu0 0
    %3613 = vmatpush.bf16.msra.mxu0 %v299
    %3614 = vmatpush.bf16.msra.mxu0 %v298
    %3615 = vmatmul.bf16.gmra.mxu0 %v3605
    %v3616 = vpop.f32.mrf.mxu0
    %v3617 = vadd.f32 0.0, %v3616
    %v3618 = vpop.f32.mrf.mxu0
    %3619 = vdwg.mxu0
    %3620 = vmatpush.bf16.msra.mxu0 0
    %3621 = vmatpush.bf16.msra.mxu0 0
    %3622 = vmatpush.bf16.msra.mxu0 0
    %3623 = vmatpush.bf16.msra.mxu0 0
    %3624 = vmatpush.bf16.msra.mxu0 0
    %3625 = vmatpush.bf16.msra.mxu0 0
    %3626 = vmatpush.bf16.msra.mxu0 %v327
    %3627 = vmatpush.bf16.msra.mxu0 %v326
    %3628 = vmatmul.bf16.gmra.mxu0 %v3559
    %v3629 = vpop.f32.mrf.mxu0
    %v3630 = vadd.f32 %v3617, %v3629
    %v3631 = vpop.f32.mrf.mxu0
    %3632 = vdwg.mxu0
    %v3633 = vadd.f32 %v3630, %v177
    %v3634 = vmax.f32 %v3633, 0.0
    %v3635 = vpack.c.bf16 %v3634, %v3634
    %3636 = vmatpush.bf16.msra.mxu0 0
    %3637 = vmatpush.bf16.msra.mxu0 0
    %3638 = vmatpush.bf16.msra.mxu0 0
    %3639 = vmatpush.bf16.msra.mxu0 0
    %3640 = vmatpush.bf16.msra.mxu0 0
    %3641 = vmatpush.bf16.msra.mxu0 0
    %3642 = vmatpush.bf16.msra.mxu0 %v355
    %3643 = vmatpush.bf16.msra.mxu0 %v354
    %3644 = vmatmul.bf16.gmra.mxu0 %v3383
    %v3645 = vpop.f32.mrf.mxu0
    %v3646 = vadd.f32 0.0, %v3645
    %v3647 = vpop.f32.mrf.mxu0
    %3648 = vdwg.mxu0
    %v3650 = vsel %vm209, %v3635, 0
    %3652 = vmatpush.bf16.msra.mxu0 0
    %3653 = vmatpush.bf16.msra.mxu0 0
    %3654 = vmatpush.bf16.msra.mxu0 0
    %3655 = vmatpush.bf16.msra.mxu0 0
    %3656 = vmatpush.bf16.msra.mxu0 0
    %3657 = vmatpush.bf16.msra.mxu0 0
    %3658 = vmatpush.bf16.msra.mxu0 %v380
    %3659 = vmatpush.bf16.msra.mxu0 %v379
    %3660 = vmatmul.bf16.gmra.mxu0 %v3650
    %v3661 = vpop.f32.mrf.mxu0
    %v3662 = vadd.f32 %v3646, %v3661
    %v3663 = vpop.f32.mrf.mxu0
    %3664 = vdwg.mxu0
    %v3665 = vadd.f32 %v3662, %v178
    %3666 = vmatpush.bf16.msra.mxu0 0
    %3667 = vmatpush.bf16.msra.mxu0 0
    %3668 = vmatpush.bf16.msra.mxu0 0
    %3669 = vmatpush.bf16.msra.mxu0 0
    %3670 = vmatpush.bf16.msra.mxu0 0
    %3671 = vmatpush.bf16.msra.mxu0 0
    %3672 = vmatpush.bf16.msra.mxu0 %v409
    %3673 = vmatpush.bf16.msra.mxu0 %v408
    %3674 = vmatmul.bf16.gmra.mxu0 %v3383
    %v3675 = vpop.f32.mrf.mxu0
    %v3676 = vadd.f32 0.0, %v3675
    %v3677 = vpop.f32.mrf.mxu0
    %3678 = vdwg.mxu0
    %3679 = vmatpush.bf16.msra.mxu0 0
    %3680 = vmatpush.bf16.msra.mxu0 0
    %3681 = vmatpush.bf16.msra.mxu0 0
    %3682 = vmatpush.bf16.msra.mxu0 0
    %3683 = vmatpush.bf16.msra.mxu0 0
    %3684 = vmatpush.bf16.msra.mxu0 0
    %3685 = vmatpush.bf16.msra.mxu0 %v434
    %3686 = vmatpush.bf16.msra.mxu0 %v433
    %3687 = vmatmul.bf16.gmra.mxu0 %v3650
    %v3688 = vpop.f32.mrf.mxu0
    %v3689 = vadd.f32 %v3676, %v3688
    %v3690 = vpop.f32.mrf.mxu0
    %3691 = vdwg.mxu0
    %v3692 = vadd.f32 %v3689, %v179
    %3693 = vmatpush.bf16.msra.mxu0 0
    %3694 = vmatpush.bf16.msra.mxu0 0
    %3695 = vmatpush.bf16.msra.mxu0 0
    %3696 = vmatpush.bf16.msra.mxu0 0
    %3697 = vmatpush.bf16.msra.mxu0 0
    %3698 = vmatpush.bf16.msra.mxu0 0
    %3699 = vmatpush.bf16.msra.mxu0 %v460
    %3700 = vmatpush.bf16.msra.mxu0 %v459
    %3701 = vmatmul.bf16.gmra.mxu0 %v3383
    %v3702 = vpop.f32.mrf.mxu0
    %v3703 = vadd.f32 0.0, %v3702
    %v3704 = vpop.f32.mrf.mxu0
    %3705 = vdwg.mxu0
    %3706 = vmatpush.bf16.msra.mxu0 0
    %3707 = vmatpush.bf16.msra.mxu0 0
    %3708 = vmatpush.bf16.msra.mxu0 0
    %3709 = vmatpush.bf16.msra.mxu0 0
    %3710 = vmatpush.bf16.msra.mxu0 0
    %3711 = vmatpush.bf16.msra.mxu0 0
    %3712 = vmatpush.bf16.msra.mxu0 %v485
    %3713 = vmatpush.bf16.msra.mxu0 %v484
    %3714 = vmatmul.bf16.gmra.mxu0 %v3650
    %v3715 = vpop.f32.mrf.mxu0
    %v3716 = vadd.f32 %v3703, %v3715
    %v3717 = vpop.f32.mrf.mxu0
    %3718 = vdwg.mxu0
    %v3719 = vadd.f32 %v3716, %v180
    %3720 = vmatpush.bf16.msra.mxu0 0
    %3721 = vmatpush.bf16.msra.mxu0 0
    %3722 = vmatpush.bf16.msra.mxu0 0
    %3723 = vmatpush.bf16.msra.mxu0 0
    %3724 = vmatpush.bf16.msra.mxu0 0
    %3725 = vmatpush.bf16.msra.mxu0 0
    %3726 = vmatpush.bf16.msra.mxu0 %v511
    %3727 = vmatpush.bf16.msra.mxu0 %v510
    %3728 = vmatmul.bf16.gmra.mxu0 %v3383
    %v3729 = vpop.f32.mrf.mxu0
    %v3730 = vadd.f32 0.0, %v3729
    %v3731 = vpop.f32.mrf.mxu0
    %3732 = vdwg.mxu0
    %3733 = vmatpush.bf16.msra.mxu0 0
    %3734 = vmatpush.bf16.msra.mxu0 0
    %3735 = vmatpush.bf16.msra.mxu0 0
    %3736 = vmatpush.bf16.msra.mxu0 0
    %3737 = vmatpush.bf16.msra.mxu0 0
    %3738 = vmatpush.bf16.msra.mxu0 0
    %3739 = vmatpush.bf16.msra.mxu0 %v536
    %3740 = vmatpush.bf16.msra.mxu0 %v535
    %3741 = vmatmul.bf16.gmra.mxu0 %v3650
    %v3742 = vpop.f32.mrf.mxu0
    %v3743 = vadd.f32 %v3730, %v3742
    %v3744 = vpop.f32.mrf.mxu0
    %3745 = vdwg.mxu0
    %v3746 = vadd.f32 %v3743, %v181
    %v3747 = vxor.u32 %v3665, 2147483648
    %v3748 = vmul.f32 %v3747, 1.442695
    %v3749 = vpow.pop %v3748
    %v3750 = vadd.f32 %v3749, 1.0
    %v3751 = vrcp.pop %v3750
    %v3752 = vmul.f32 %v3750, %v3751
    %v3753 = vsub.f32 1.0, %v3752
    %v3754 = vmul.f32 %v3751, %v3753
    %v3755 = vadd.f32 %v3751, %v3754
    %vm3756 = vweird.f32 %v3750
    %vm3757 = vweird.f32 %v3751
    %vm3758 = vmor %vm3756, %vm3757
    %v3759 = vsel %vm3758, %v3751, %v3755
    %v3760 = vand.u32 2147483647, %v3750
    %vm3761 = vcmp.eq.f32.partialorder %v3760, 8.507059e+37
    %v3762 = vand.u32 %v3750, 2147483648
    %v3763 = vor.u32 1.1754944e-38, %v3762
    %v3764 = vsel %vm3761, %v3763, %v3759
    %v3765 = vmul.f32 1.0, %v3764
    %v3766 = vxor.u32 %v3692, 2147483648
    %v3767 = vmul.f32 %v3766, 1.442695
    %v3768 = vpow.pop %v3767
    %v3769 = vadd.f32 %v3768, 1.0
    %v3770 = vrcp.pop %v3769
    %v3771 = vmul.f32 %v3769, %v3770
    %v3772 = vsub.f32 1.0, %v3771
    %v3773 = vmul.f32 %v3770, %v3772
    %v3774 = vadd.f32 %v3770, %v3773
    %vm3775 = vweird.f32 %v3769
    %vm3776 = vweird.f32 %v3770
    %vm3777 = vmor %vm3775, %vm3776
    %v3778 = vsel %vm3777, %v3770, %v3774
    %v3779 = vand.u32 2147483647, %v3769
    %vm3780 = vcmp.eq.f32.partialorder %v3779, 8.507059e+37
    %v3781 = vand.u32 %v3769, 2147483648
    %v3782 = vor.u32 1.1754944e-38, %v3781
    %v3783 = vsel %vm3780, %v3782, %v3778
    %v3784 = vmul.f32 1.0, %v3783
    %v3785 = vtanh.pop %v3719
    %v3786 = vxor.u32 %v3746, 2147483648
    %v3787 = vmul.f32 %v3786, 1.442695
    %v3788 = vpow.pop %v3787
    %v3789 = vadd.f32 %v3788, 1.0
    %v3790 = vrcp.pop %v3789
    %v3791 = vmul.f32 %v3789, %v3790
    %v3792 = vsub.f32 1.0, %v3791
    %v3793 = vmul.f32 %v3790, %v3792
    %v3794 = vadd.f32 %v3790, %v3793
    %vm3795 = vweird.f32 %v3789
    %vm3796 = vweird.f32 %v3790
    %vm3797 = vmor %vm3795, %vm3796
    %v3798 = vsel %vm3797, %v3790, %v3794
    %v3799 = vand.u32 2147483647, %v3789
    %vm3800 = vcmp.eq.f32.partialorder %v3799, 8.507059e+37
    %v3801 = vand.u32 %v3789, 2147483648
    %v3802 = vor.u32 1.1754944e-38, %v3801
    %v3803 = vsel %vm3800, %v3802, %v3798
    %v3804 = vmul.f32 1.0, %v3803
    %v3805 = vmul.f32 %v3784, %v3365
    %v3806 = vmul.f32 %v3765, %v3785
    %v3807 = vadd.f32 %v3805, %v3806
    %v3808 = vtanh.pop %v3807
    %v3809 = vmul.f32 %v3804, %v3808
    %v3810 = vpack.c.bf16 %v3809, %v3809
    %3811 = vmatpush.bf16.msra.mxu0 0
    %3812 = vmatpush.bf16.msra.mxu0 0
    %3813 = vmatpush.bf16.msra.mxu0 0
    %3814 = vmatpush.bf16.msra.mxu0 0
    %3815 = vmatpush.bf16.msra.mxu0 0
    %3816 = vmatpush.bf16.msra.mxu0 0
    %3817 = vmatpush.bf16.msra.mxu0 %v626
    %3818 = vmatpush.bf16.msra.mxu0 %v625
    %3819 = vmatmul.bf16.gmra.mxu0 %v3559
    %v3820 = vpop.f32.mrf.mxu0
    %v3821 = vadd.f32 0.0, %v3820
    %v3822 = vpop.f32.mrf.mxu0
    %3823 = vdwg.mxu0
    %v3825 = vsel %vm209, %v3810, 0
    %3827 = vmatpush.bf16.msra.mxu0 0
    %3828 = vmatpush.bf16.msra.mxu0 0
    %3829 = vmatpush.bf16.msra.mxu0 0
    %3830 = vmatpush.bf16.msra.mxu0 0
    %3831 = vmatpush.bf16.msra.mxu0 0
    %3832 = vmatpush.bf16.msra.mxu0 0
    %3833 = vmatpush.bf16.msra.mxu0 %v654
    %3834 = vmatpush.bf16.msra.mxu0 %v653
    %3835 = vmatmul.bf16.gmra.mxu0 %v3825
    %v3836 = vpop.f32.mrf.mxu0
    %v3837 = vadd.f32 %v3821, %v3836
    %v3838 = vpop.f32.mrf.mxu0
    %3839 = vdwg.mxu0
    %v3840 = vadd.f32 %v3837, %v182
    %3841 = vmatpush.bf16.msra.mxu0 0
    %3842 = vmatpush.bf16.msra.mxu0 0
    %3843 = vmatpush.bf16.msra.mxu0 0
    %3844 = vmatpush.bf16.msra.mxu0 0
    %3845 = vmatpush.bf16.msra.mxu0 0
    %3846 = vmatpush.bf16.msra.mxu0 0
    %3847 = vmatpush.bf16.msra.mxu0 %v683
    %3848 = vmatpush.bf16.msra.mxu0 %v682
    %3849 = vmatmul.bf16.gmra.mxu0 %v3559
    %v3850 = vpop.f32.mrf.mxu0
    %v3851 = vadd.f32 0.0, %v3850
    %v3852 = vpop.f32.mrf.mxu0
    %3853 = vdwg.mxu0
    %3854 = vmatpush.bf16.msra.mxu0 0
    %3855 = vmatpush.bf16.msra.mxu0 0
    %3856 = vmatpush.bf16.msra.mxu0 0
    %3857 = vmatpush.bf16.msra.mxu0 0
    %3858 = vmatpush.bf16.msra.mxu0 0
    %3859 = vmatpush.bf16.msra.mxu0 0
    %3860 = vmatpush.bf16.msra.mxu0 %v708
    %3861 = vmatpush.bf16.msra.mxu0 %v707
    %3862 = vmatmul.bf16.gmra.mxu0 %v3825
    %v3863 = vpop.f32.mrf.mxu0
    %v3864 = vadd.f32 %v3851, %v3863
    %v3865 = vpop.f32.mrf.mxu0
    %3866 = vdwg.mxu0
    %v3867 = vadd.f32 %v3864, %v183
    %3868 = vmatpush.bf16.msra.mxu0 0
    %3869 = vmatpush.bf16.msra.mxu0 0
    %3870 = vmatpush.bf16.msra.mxu0 0
    %3871 = vmatpush.bf16.msra.mxu0 0
    %3872 = vmatpush.bf16.msra.mxu0 0
    %3873 = vmatpush.bf16.msra.mxu0 0
    %3874 = vmatpush.bf16.msra.mxu0 %v734
    %3875 = vmatpush.bf16.msra.mxu0 %v733
    %3876 = vmatmul.bf16.gmra.mxu0 %v3559
    %v3877 = vpop.f32.mrf.mxu0
    %v3878 = vadd.f32 0.0, %v3877
    %v3879 = vpop.f32.mrf.mxu0
    %3880 = vdwg.mxu0
    %3881 = vmatpush.bf16.msra.mxu0 0
    %3882 = vmatpush.bf16.msra.mxu0 0
    %3883 = vmatpush.bf16.msra.mxu0 0
    %3884 = vmatpush.bf16.msra.mxu0 0
    %3885 = vmatpush.bf16.msra.mxu0 0
    %3886 = vmatpush.bf16.msra.mxu0 0
    %3887 = vmatpush.bf16.msra.mxu0 %v759
    %3888 = vmatpush.bf16.msra.mxu0 %v758
    %3889 = vmatmul.bf16.gmra.mxu0 %v3825
    %v3890 = vpop.f32.mrf.mxu0
    %v3891 = vadd.f32 %v3878, %v3890
    %v3892 = vpop.f32.mrf.mxu0
    %3893 = vdwg.mxu0
    %v3894 = vadd.f32 %v3891, %v184
    %3895 = vmatpush.bf16.msra.mxu0 0
    %3896 = vmatpush.bf16.msra.mxu0 0
    %3897 = vmatpush.bf16.msra.mxu0 0
    %3898 = vmatpush.bf16.msra.mxu0 0
    %3899 = vmatpush.bf16.msra.mxu0 0
    %3900 = vmatpush.bf16.msra.mxu0 0
    %3901 = vmatpush.bf16.msra.mxu0 %v785
    %3902 = vmatpush.bf16.msra.mxu0 %v784
    %3903 = vmatmul.bf16.gmra.mxu0 %v3559
    %v3904 = vpop.f32.mrf.mxu0
    %v3905 = vadd.f32 0.0, %v3904
    %v3906 = vpop.f32.mrf.mxu0
    %3907 = vdwg.mxu0
    %3908 = vmatpush.bf16.msra.mxu0 0
    %3909 = vmatpush.bf16.msra.mxu0 0
    %3910 = vmatpush.bf16.msra.mxu0 0
    %3911 = vmatpush.bf16.msra.mxu0 0
    %3912 = vmatpush.bf16.msra.mxu0 0
    %3913 = vmatpush.bf16.msra.mxu0 0
    %3914 = vmatpush.bf16.msra.mxu0 %v810
    %3915 = vmatpush.bf16.msra.mxu0 %v809
    %3916 = vmatmul.bf16.gmra.mxu0 %v3825
    %v3917 = vpop.f32.mrf.mxu0
    %v3918 = vadd.f32 %v3905, %v3917
    %v3919 = vpop.f32.mrf.mxu0
    %3920 = vdwg.mxu0
    %v3921 = vadd.f32 %v3918, %v185
    %v3922 = vxor.u32 %v3840, 2147483648
    %v3923 = vmul.f32 %v3922, 1.442695
    %v3924 = vpow.pop %v3923
    %v3925 = vadd.f32 %v3924, 1.0
    %v3926 = vrcp.pop %v3925
    %v3927 = vmul.f32 %v3925, %v3926
    %v3928 = vsub.f32 1.0, %v3927
    %v3929 = vmul.f32 %v3926, %v3928
    %v3930 = vadd.f32 %v3926, %v3929
    %vm3931 = vweird.f32 %v3925
    %vm3932 = vweird.f32 %v3926
    %vm3933 = vmor %vm3931, %vm3932
    %v3934 = vsel %vm3933, %v3926, %v3930
    %v3935 = vand.u32 2147483647, %v3925
    %vm3936 = vcmp.eq.f32.partialorder %v3935, 8.507059e+37
    %v3937 = vand.u32 %v3925, 2147483648
    %v3938 = vor.u32 1.1754944e-38, %v3937
    %v3939 = vsel %vm3936, %v3938, %v3934
    %v3940 = vmul.f32 1.0, %v3939
    %v3941 = vxor.u32 %v3867, 2147483648
    %v3942 = vmul.f32 %v3941, 1.442695
    %v3943 = vpow.pop %v3942
    %v3944 = vadd.f32 %v3943, 1.0
    %v3945 = vrcp.pop %v3944
    %v3946 = vmul.f32 %v3944, %v3945
    %v3947 = vsub.f32 1.0, %v3946
    %v3948 = vmul.f32 %v3945, %v3947
    %v3949 = vadd.f32 %v3945, %v3948
    %vm3950 = vweird.f32 %v3944
    %vm3951 = vweird.f32 %v3945
    %vm3952 = vmor %vm3950, %vm3951
    %v3953 = vsel %vm3952, %v3945, %v3949
    %v3954 = vand.u32 2147483647, %v3944
    %vm3955 = vcmp.eq.f32.partialorder %v3954, 8.507059e+37
    %v3956 = vand.u32 %v3944, 2147483648
    %v3957 = vor.u32 1.1754944e-38, %v3956
    %v3958 = vsel %vm3955, %v3957, %v3953
    %v3959 = vmul.f32 1.0, %v3958
    %v3960 = vtanh.pop %v3894
    %v3961 = vxor.u32 %v3921, 2147483648
    %v3962 = vmul.f32 %v3961, 1.442695
    %v3963 = vpow.pop %v3962
    %v3964 = vadd.f32 %v3963, 1.0
    %v3965 = vrcp.pop %v3964
    %v3966 = vmul.f32 %v3964, %v3965
    %v3967 = vsub.f32 1.0, %v3966
    %v3968 = vmul.f32 %v3965, %v3967
    %v3969 = vadd.f32 %v3965, %v3968
    %vm3970 = vweird.f32 %v3964
    %vm3971 = vweird.f32 %v3965
    %vm3972 = vmor %vm3970, %vm3971
    %v3973 = vsel %vm3972, %v3965, %v3969
    %v3974 = vand.u32 2147483647, %v3964
    %vm3975 = vcmp.eq.f32.partialorder %v3974, 8.507059e+37
    %v3976 = vand.u32 %v3964, 2147483648
    %v3977 = vor.u32 1.1754944e-38, %v3976
    %v3978 = vsel %vm3975, %v3977, %v3973
    %v3979 = vmul.f32 1.0, %v3978
    %v3980 = vmul.f32 %v3959, %v3540
    %v3981 = vmul.f32 %v3940, %v3960
    %v3982 = vadd.f32 %v3980, %v3981
    %v3983 = vtanh.pop %v3982
    %v3984 = vmul.f32 %v3979, %v3983
    %3985 = vst.msk [vmem:[#allocation2 + $0x7] sm:$0x1] %vm891, %v3984
    %v3986 = vld [vmem:[#allocation2] sm:$0xff]
    %v3987 = vpack.c.bf16 %v3986, %v3986
    %v3988 = vperm.slane %v186, 0
    %v3993 = vunpack.c.l.b16 %v164
    %v3994 = vunpack.c.l.b16 %v165
    %v3995 = vunpack.c.l.b16 %v166
    %v3996 = vunpack.c.l.b16 %v167
    %v3997 = vpack.c.b16 %v3994, %v3993
    %v3998 = vpack.c.b16 %v3996, %v3995
    %v4002 = vsel %vm209, %v3987, 0
    %4004 = vmatpush.bf16.msra.mxu0 0
    %4005 = vmatpush.bf16.msra.mxu0 0
    %4006 = vmatpush.bf16.msra.mxu0 0
    %4007 = vmatpush.bf16.msra.mxu0 0
    %4008 = vmatpush.bf16.msra.mxu0 0
    %4009 = vmatpush.bf16.msra.mxu0 0
    %4010 = vmatpush.bf16.msra.mxu0 %v3998
    %4011 = vmatpush.bf16.msra.mxu0 %v3997
    %4012 = vmatmul.bf16.gmra.mxu0 %v4002
    %v4013 = vpop.f32.mrf.mxu0
    %v4014 = vadd.f32 %v3988, %v4013
    %v4015 = vpop.f32.mrf.mxu0
    %4016 = vdwg.mxu0
    %v4017 = vmax.f32 %v4014, 0.0
    %v4018 = vpack.c.bf16 %v4017, %v4017
    %v4019 = vperm.slane %v187, 0
    %v4028 = vunpack.c.l.b16 %v168
    %v4029 = vunpack.c.l.b16 %v169
    %v4030 = vunpack.c.l.b16 %v170
    %v4031 = vunpack.c.l.b16 %v171
    %v4032 = vunpack.c.l.b16 %v172
    %v4033 = vunpack.c.l.b16 %v173
    %v4034 = vunpack.c.l.b16 %v174
    %v4035 = vunpack.c.l.b16 %v175
    %v4036 = vpack.c.b16 %v4029, %v4028
    %v4037 = vpack.c.b16 %v4031, %v4030
    %v4038 = vpack.c.b16 %v4033, %v4032
    %v4039 = vpack.c.b16 %v4035, %v4034
    %vm4044 = vcmask 523264
    %v4046 = vsel %vm4044, %v4018, 0
    %4048 = vmatpush.bf16.msra.mxu0 0
    %4049 = vmatpush.bf16.msra.mxu0 0
    %4050 = vmatpush.bf16.msra.mxu0 0
    %4051 = vmatpush.bf16.msra.mxu0 0
    %4052 = vmatpush.bf16.msra.mxu0 %v4039
    %4053 = vmatpush.bf16.msra.mxu0 %v4038
    %4054 = vmatpush.bf16.msra.mxu0 %v4037
    %4055 = vmatpush.bf16.msra.mxu0 %v4036
    %4056 = vmatmul.bf16.gmra.mxu0 %v4046
    %v4057 = vpop.f32.mrf.mxu0
    %v4058 = vadd.f32 %v4019, %v4057
    %v4059 = vpop.f32.mrf.mxu0
    %4060 = vdwg.mxu0
    %4061 = vmax.xlane.f32.xlu0 %v4058
    %v4062 = vpop.xlane.xlu0 %4061
    %v4063 = vsub.f32 %v4058, %v4062
    %v4064 = vmul.f32 %v4063, 1.442695
    %v4065 = vpow.pop %v4064
    %4066 = vadd.xlane.f32.xlu0 %v4065
    %v4067 = vpop.xlane.xlu0 %4066
    %v4068 = vrcp.pop %v4067
    %v4069 = vmul.f32 %v4065, %v4068
    %4070 = vst [vmem:[%s5] sm:$0xff] %v4069
    %4071 = vst.msk [vmem:[%s5 + $0x8] sm:$0x1] %vm891, %v3809
    %4072 = vst.msk [vmem:[%s5 + $0xa] sm:$0x1] %vm891, %v3807
    %4073 = vst.msk [vmem:[%s5 + $0x9] sm:$0x1] %vm891, %v3984
    %4074 = vst.msk [vmem:[%s5 + $0xb] sm:$0x1] %vm891, %v3982
    // Predicated region
    $region38: #{decoder_forward.1} parent=1 // pred_check
      _
    $region39: #{decoder_forward.1} parent=1 // pred_check_branch
      %4076 = sbr.rel (0) target = $region41
    $region40: #{decoder_forward.1} parent=1 // pred_region
      _
    $region41: #{decoder_forward.1} parent=1 // pred_fallthru
      _
    // Predicated region
    $region42: #{decoder_forward.1} parent=1 // pred_check
      _
    $region43: #{decoder_forward.1} parent=1 // pred_check_branch
      %4078 = sbr.rel (0) target = $region45
    $region44: #{decoder_forward.1} parent=1 // pred_region
      _
    $region45: #{decoder_forward.1} parent=1 // pred_fallthru
      _
    %4079 = vsyncpa [#allocation4], 1
    %4080 = vsyncpa [#allocation6], 1
    %4081 = vsyncpa [#allocation9], 1

</llo_original>
